<compile_context>
chip_gen: v5e
topology: v5e:2x2
jax: 0.10.0
libtpu: 0.0.40
codegen_flags: <defaults>
</compile_context>

<pallas_src>
import numpy as np
import jax
import jax.numpy as jnp
from jax import lax
from jax.experimental import pallas as pl
from jax.experimental.pallas import tpu as pltpu

_BN_EPS = 1e-5
_VMEM = pl.BlockSpec(memory_space=pltpu.MemorySpace.VMEM)

# ----------------------- fixed LeNet / CIFAR geometry ------------------------
_H = 32; _W = 32; _C0 = 3; _K = 5
_OC1, _OC1P = 6, 8              # conv1 out channels, padded to 8
_OH1 = _OW1 = _H - _K + 1       # 28
_PH1 = _PW1 = _OH1 // 2         # 14
_OC2 = 16
_OH2 = _OW2 = _PH1 - _K + 1     # 10
_PH2 = _PW2 = _OH2 // 2         # 5
_XC = _W * _C0                  # 96   input row columns, order (w, c)
_N1 = _OW1 * _OC1P              # 224  conv1 matmul N, order (parity, pw, oc)
_P1C = _PW1 * _OC1P             # 112  pooled-1 columns, order (pw, oc)
_N2 = _OW2 * _OC2               # 160  conv2 matmul N, order (parity, pw, oc)
_P2C = _PW2 * _OC2              # 80   pooled-2 row width, order (pw, oc)
_FLAT = _PH2 * _PW2 * _OC2      # 400  flatten order (h, w, c)


# ------------------------------- Pallas kernel -------------------------------

def _bn_relu(h, gamma, beta):
    # BatchNorm1d in training mode: batch statistics, biased variance.
    mean = jnp.mean(h, axis=0, keepdims=True)
    var = jnp.mean((h - mean) ** 2, axis=0, keepdims=True)
    y = (h - mean) * lax.rsqrt(var + _BN_EPS) * gamma + beta
    return jnp.maximum(y, 0.0)


def _cnn_kernel(xe_ref, xo_ref, wb1_ref, cb1_ref, wb2_ref, cb2_ref,
                w1_ref, b1_ref, g1_ref, be1_ref,
                w2_ref, b2_ref, g2_ref, be2_ref,
                w3_ref, b3_ref, o_ref, p1_ref, flat_ref):
    B = o_ref.shape[0]
    f32 = jnp.float32

    for b in range(B):
        # ---- conv1 (banded matmuls over kh) + 2x2 maxpool + bias + ReLU ----
        # acc[dh][t, :] = conv1 pre-bias output row oh=2t+dh, columns ordered
        # (ow parity, pw, oc) so the width-pool is a max of the column halves.
        acc = [None, None]
        for dh in range(2):
            for kh in range(_K):
                m = (dh + kh) // 2
                src = xe_ref if (dh + kh) % 2 == 0 else xo_ref
                lhs = src[pl.ds(b * (_H // 2) + m, _PH1), :]          # (14, 96)
                prod = jnp.dot(lhs, wb1_ref[kh], preferred_element_type=f32)
                acc[dh] = prod if acc[dh] is None else acc[dh] + prod
        rowmax = jnp.maximum(acc[0], acc[1])                          # (14, 224)
        pooled1 = jnp.maximum(rowmax[:, :_P1C], rowmax[:, _P1C:])     # (14, 112)
        p1_ref[pl.ds(b * _PH1, _PH1), :] = jnp.maximum(
            pooled1 + cb1_ref[...], 0.0)                              # one wide store

        # ---- conv2 + 2x2 maxpool + bias + ReLU, scattered into flat_ref ----
        acc2 = None
        for kh in range(_K):
            lhs = p1_ref[pl.ds(b * _PH1 + kh, _OH2), :]               # (10, 112)
            prod = jnp.dot(lhs, wb2_ref[kh], preferred_element_type=f32)
            acc2 = prod if acc2 is None else acc2 + prod              # (10, 160)
        wpool = jnp.maximum(acc2[:, :_P2C], acc2[:, _P2C:])           # (10, 80)
        for ph in range(_PH2):
            rm = jnp.maximum(wpool[2 * ph:2 * ph + 1, :],
                             wpool[2 * ph + 1:2 * ph + 2, :])         # (1, 80)
            flat_ref[pl.ds(b, 1), pl.ds(ph * _P2C, _P2C)] = (
                jnp.maximum(rm + cb2_ref[...], 0.0))                  # (h, w, c) order

    # ---- FC head: fc1 -> BN -> ReLU -> fc2 -> BN -> ReLU -> fc3 ----
    flat = flat_ref[...]                                              # (B, 400)
    h = jnp.dot(flat, w1_ref[...], preferred_element_type=f32) + b1_ref[...]
    h = _bn_relu(h, g1_ref[...], be1_ref[...])
    h = jnp.dot(h, w2_ref[...], preferred_element_type=f32) + b2_ref[...]
    h = _bn_relu(h, g2_ref[...], be2_ref[...])
    o_ref[...] = (jnp.dot(h, w3_ref[...], preferred_element_type=f32)
                  + b3_ref[...]).astype(o_ref.dtype)


# ------------------------ offline weight preparation --------------------------

def _banded_conv_weights(w_oihw, cin_pad, w_in, ocp):
    """Build B[kh] of shape (w_in*cin_pad, ow_out*ocp) s.t. a row-slab of the
    activation (rows = spatial h, cols = (w, c)) matmul'd with B[kh] and summed
    over kh gives the valid conv output.  Output columns are ordered
    (ow parity, pw, oc): even-ow outputs occupy the first half of the columns,
    odd-ow outputs the second half, so 2x-width max-pooling is a single
    lane-dense max of the two halves."""
    oc, cin, k, _ = w_oihw.shape
    ow_out = w_in - k + 1
    half = (ow_out // 2) * ocp
    wp = jnp.zeros((oc, cin_pad, k, k), jnp.float32).at[:, :cin].set(w_oihw)
    wk = jnp.transpose(wp, (2, 3, 1, 0)).reshape(k, k * cin_pad, oc)  # (kh,(kw,c),oc)
    band = jnp.zeros((k, w_in * cin_pad, ow_out * ocp), jnp.float32)
    for ow in range(ow_out):
        col = (ow % 2) * half + (ow // 2) * ocp
        band = band.at[:, ow * cin_pad:ow * cin_pad + k * cin_pad,
                       col:col + oc].set(wk)
    return band


def prepare_params(p):
    """One-time conversion of PyTorch-layout params into the kernel layout."""
    cb1_pad = jnp.zeros((_OC1P,), jnp.float32).at[:_OC1].set(p["conv1_b"])
    cb1 = jnp.tile(cb1_pad, _PW1).reshape(1, _P1C)            # (1, 112), (pw, oc)
    cb2 = jnp.tile(p["conv2_b"], _PW2).reshape(1, _P2C)       # (1, 80),  (pw, oc)
    # fc1 input permuted from torch flatten order (c, h, w) to ours (h, w, c).
    w1p = (p["fc1_w"].reshape(120, _OC2, _PH2, _PW2)
           .transpose(2, 3, 1, 0).reshape(_FLAT, 120))
    return {
        "band1": _banded_conv_weights(p["conv1_w"], _C0, _W, _OC1P),
        "cb1": cb1,
        "band2": _banded_conv_weights(p["conv2_w"], _OC1P, _PW1, _OC2),
        "cb2": cb2,
        "w1": w1p, "b1": p["fc1_b"].reshape(1, -1),
        "g1": p["bn1_g"].reshape(1, -1), "be1": p["bn1_b"].reshape(1, -1),
        "w2": p["fc2_w"].T, "b2": p["fc2_b"].reshape(1, -1),
        "g2": p["bn2_g"].reshape(1, -1), "be2": p["bn2_b"].reshape(1, -1),
        "w3": p["fc3_w"].T, "b3": p["fc3_b"].reshape(1, -1),
    }


# ------------------------------ forward wrapper -------------------------------

def cnn_forward(x, pp):
    # x: (B, 3, 32, 32) NCHW (PyTorch interface).
    B = x.shape[0]
    xh = jnp.transpose(x, (0, 2, 3, 1)).astype(jnp.float32)           # NHWC
    # Pre-split rows by h parity so the in-kernel oh-pooling is a plain max.
    x_e = xh[:, 0::2].reshape(B * (_H // 2), _XC)                      # (B*16, 96)
    x_o = xh[:, 1::2].reshape(B * (_H // 2), _XC)
    args = (x_e, x_o, pp["band1"], pp["cb1"], pp["band2"], pp["cb2"],
            pp["w1"], pp["b1"], pp["g1"], pp["be1"],
            pp["w2"], pp["b2"], pp["g2"], pp["be2"],
            pp["w3"], pp["b3"])
    return pl.pallas_call(
        _cnn_kernel,
        out_shape=jax.ShapeDtypeStruct((B, 10), jnp.float32),
        in_specs=[_VMEM] * len(args),
        out_specs=_VMEM,
        scratch_shapes=[pltpu.VMEM((B * _PH1, _P1C), jnp.float32),    # pool1 out
                        pltpu.VMEM((B, _FLAT), jnp.float32)],         # flattened
    )(*args)


# ----------------------------- params & reference -----------------------------

def init_params(key):
    def uni(k, shape, fan_in):
        bound = 1.0 / np.sqrt(fan_in)
        return jax.random.uniform(k, shape, jnp.float32, -bound, bound)

    ks = jax.random.split(key, 10)
    return {
        "conv1_w": uni(ks[0], (6, 3, 5, 5), 3 * 25),
        "conv1_b": uni(ks[1], (6,), 3 * 25),
        "conv2_w": uni(ks[2], (16, 6, 5, 5), 6 * 25),
        "conv2_b": uni(ks[3], (16,), 6 * 25),
        "fc1_w": uni(ks[4], (120, 400), 400),
        "fc1_b": uni(ks[5], (120,), 400),
        "bn1_g": jnp.ones((120,), jnp.float32),
        "bn1_b": jnp.zeros((120,), jnp.float32),
        "fc2_w": uni(ks[6], (84, 120), 120),
        "fc2_b": uni(ks[7], (84,), 120),
        "bn2_g": jnp.ones((84,), jnp.float32),
        "bn2_b": jnp.zeros((84,), jnp.float32),
        "fc3_w": uni(ks[8], (10, 84), 84),
        "fc3_b": uni(ks[9], (10,), 84),
    }


def reference_forward(x, p):
    dn = ("NCHW", "OIHW", "NCHW")

    def pool(y):
        B, C, H, W = y.shape
        return y.reshape(B, C, H // 2, 2, W // 2, 2).max(axis=(3, 5))

    def bn(h, g, b):
        m = h.mean(0, keepdims=True)
        v = ((h - m) ** 2).mean(0, keepdims=True)
        return (h - m) / jnp.sqrt(v + _BN_EPS) * g + b

    y = lax.conv_general_dilated(x, p["conv1_w"], (1, 1), "VALID", dimension_numbers=dn)
    y = pool(jax.nn.relu(y + p["conv1_b"][None, :, None, None]))
    y = lax.conv_general_dilated(y, p["conv2_w"], (1, 1), "VALID", dimension_numbers=dn)
    y = pool(jax.nn.relu(y + p["conv2_b"][None, :, None, None]))
    y = y.reshape(y.shape[0], -1)
    h = jax.nn.relu(bn(y @ p["fc1_w"].T + p["fc1_b"], p["bn1_g"], p["bn1_b"]))
    h = jax.nn.relu(bn(h @ p["fc2_w"].T + p["fc2_b"], p["bn2_g"], p["bn2_b"]))
    return h @ p["fc3_w"].T + p["fc3_b"]


# ----------------------------------- main -------------------------------------

if __name__ == "__main__":
    key = jax.random.PRNGKey(0)
    params = init_params(key)
    prepped = prepare_params(params)          # one-time weight re-layout
    x = jax.random.normal(jax.random.fold_in(key, 999), (2, 3, 32, 32), jnp.float32)

    fwd = jax.jit(cnn_forward)
    out = jax.block_until_ready(fwd(x, prepped))
    assert out.shape == (2, 10) and out.dtype == jnp.float32

    ref = jax.block_until_ready(reference_forward(x, params))
    np.testing.assert_allclose(np.asarray(out), np.asarray(ref), rtol=2e-2, atol=5e-2)

    print("KERNEL_OK")
</pallas_src>

<mosaic_0001>
module attributes {stable_mosaic.version = 11 : i64} {
  func.func @_cnn_kernel(%arg0: memref<32x96xf32, #tpu.memory_space<vmem>>, %arg1: memref<32x96xf32, #tpu.memory_space<vmem>>, %arg2: memref<5x96x224xf32, #tpu.memory_space<vmem>>, %arg3: memref<1x112xf32, #tpu.memory_space<vmem>>, %arg4: memref<5x112x160xf32, #tpu.memory_space<vmem>>, %arg5: memref<1x80xf32, #tpu.memory_space<vmem>>, %arg6: memref<400x120xf32, #tpu.memory_space<vmem>>, %arg7: memref<1x120xf32, #tpu.memory_space<vmem>>, %arg8: memref<1x120xf32, #tpu.memory_space<vmem>>, %arg9: memref<1x120xf32, #tpu.memory_space<vmem>>, %arg10: memref<120x84xf32, #tpu.memory_space<vmem>>, %arg11: memref<1x84xf32, #tpu.memory_space<vmem>>, %arg12: memref<1x84xf32, #tpu.memory_space<vmem>>, %arg13: memref<1x84xf32, #tpu.memory_space<vmem>>, %arg14: memref<84x10xf32, #tpu.memory_space<vmem>>, %arg15: memref<1x10xf32, #tpu.memory_space<vmem>>, %arg16: memref<2x10xf32, #tpu.memory_space<vmem>>, %arg17: memref<28x112xf32, #tpu.memory_space<vmem>>, %arg18: memref<2x400xf32, #tpu.memory_space<vmem>>) attributes {dimension_semantics = [], scalar_prefetch = 0 : i64, scratch_operands = 2 : i64, tpu.core_type = #tpu.core_type<tc>} {
    %c0 = arith.constant 0 : index
    %c0_0 = arith.constant 0 : index
    %0 = vector.load %arg0[%c0, %c0_0] : memref<32x96xf32, #tpu.memory_space<vmem>>, vector<14x96xf32>
    %c0_1 = arith.constant 0 : index
    %c0_2 = arith.constant 0 : index
    %c0_3 = arith.constant 0 : index
    %1 = vector.load %arg2[%c0_1, %c0_2, %c0_3] : memref<5x96x224xf32, #tpu.memory_space<vmem>>, vector<1x96x224xf32>
    %2 = vector.shape_cast %1 : vector<1x96x224xf32> to vector<96x224xf32>
    %cst = arith.constant dense<0.000000e+00> : vector<14x224xf32>
    %3 = tpu.matmul %0, %2, %cst {dimension_numbers = #tpu.dot_dimension_numbers<[1], [0], [0], [1], [0, 0, 1, 1], [], []>} : vector<14x96xf32>, vector<96x224xf32>, vector<14x224xf32> -> vector<14x224xf32>
    %c0_4 = arith.constant 0 : index
    %c0_5 = arith.constant 0 : index
    %4 = vector.load %arg1[%c0_4, %c0_5] : memref<32x96xf32, #tpu.memory_space<vmem>>, vector<14x96xf32>
    %c1 = arith.constant 1 : index
    %c0_6 = arith.constant 0 : index
    %c0_7 = arith.constant 0 : index
    %5 = vector.load %arg2[%c1, %c0_6, %c0_7] : memref<5x96x224xf32, #tpu.memory_space<vmem>>, vector<1x96x224xf32>
    %6 = vector.shape_cast %5 : vector<1x96x224xf32> to vector<96x224xf32>
    %cst_8 = arith.constant dense<0.000000e+00> : vector<14x224xf32>
    %7 = tpu.matmul %4, %6, %cst_8 {dimension_numbers = #tpu.dot_dimension_numbers<[1], [0], [0], [1], [0, 0, 1, 1], [], []>} : vector<14x96xf32>, vector<96x224xf32>, vector<14x224xf32> -> vector<14x224xf32>
    %8 = arith.addf %3, %7 : vector<14x224xf32>
    %c1_9 = arith.constant 1 : index
    %c0_10 = arith.constant 0 : index
    %9 = vector.load %arg0[%c1_9, %c0_10] : memref<32x96xf32, #tpu.memory_space<vmem>>, vector<14x96xf32>
    %c2 = arith.constant 2 : index
    %c0_11 = arith.constant 0 : index
    %c0_12 = arith.constant 0 : index
    %10 = vector.load %arg2[%c2, %c0_11, %c0_12] : memref<5x96x224xf32, #tpu.memory_space<vmem>>, vector<1x96x224xf32>
    %11 = vector.shape_cast %10 : vector<1x96x224xf32> to vector<96x224xf32>
    %cst_13 = arith.constant dense<0.000000e+00> : vector<14x224xf32>
    %12 = tpu.matmul %9, %11, %cst_13 {dimension_numbers = #tpu.dot_dimension_numbers<[1], [0], [0], [1], [0, 0, 1, 1], [], []>} : vector<14x96xf32>, vector<96x224xf32>, vector<14x224xf32> -> vector<14x224xf32>
    %13 = arith.addf %8, %12 : vector<14x224xf32>
    %c1_14 = arith.constant 1 : index
    %c0_15 = arith.constant 0 : index
    %14 = vector.load %arg1[%c1_14, %c0_15] : memref<32x96xf32, #tpu.memory_space<vmem>>, vector<14x96xf32>
    %c3 = arith.constant 3 : index
    %c0_16 = arith.constant 0 : index
    %c0_17 = arith.constant 0 : index
    %15 = vector.load %arg2[%c3, %c0_16, %c0_17] : memref<5x96x224xf32, #tpu.memory_space<vmem>>, vector<1x96x224xf32>
    %16 = vector.shape_cast %15 : vector<1x96x224xf32> to vector<96x224xf32>
    %cst_18 = arith.constant dense<0.000000e+00> : vector<14x224xf32>
    %17 = tpu.matmul %14, %16, %cst_18 {dimension_numbers = #tpu.dot_dimension_numbers<[1], [0], [0], [1], [0, 0, 1, 1], [], []>} : vector<14x96xf32>, vector<96x224xf32>, vector<14x224xf32> -> vector<14x224xf32>
    %18 = arith.addf %13, %17 : vector<14x224xf32>
    %c2_19 = arith.constant 2 : index
    %c0_20 = arith.constant 0 : index
    %19 = vector.load %arg0[%c2_19, %c0_20] : memref<32x96xf32, #tpu.memory_space<vmem>>, vector<14x96xf32>
    %c4 = arith.constant 4 : index
    %c0_21 = arith.constant 0 : index
    %c0_22 = arith.constant 0 : index
    %20 = vector.load %arg2[%c4, %c0_21, %c0_22] : memref<5x96x224xf32, #tpu.memory_space<vmem>>, vector<1x96x224xf32>
    %21 = vector.shape_cast %20 : vector<1x96x224xf32> to vector<96x224xf32>
    %cst_23 = arith.constant dense<0.000000e+00> : vector<14x224xf32>
    %22 = tpu.matmul %19, %21, %cst_23 {dimension_numbers = #tpu.dot_dimension_numbers<[1], [0], [0], [1], [0, 0, 1, 1], [], []>} : vector<14x96xf32>, vector<96x224xf32>, vector<14x224xf32> -> vector<14x224xf32>
    %23 = arith.addf %18, %22 : vector<14x224xf32>
    %c0_24 = arith.constant 0 : index
    %c0_25 = arith.constant 0 : index
    %24 = vector.load %arg1[%c0_24, %c0_25] : memref<32x96xf32, #tpu.memory_space<vmem>>, vector<14x96xf32>
    %c0_26 = arith.constant 0 : index
    %c0_27 = arith.constant 0 : index
    %c0_28 = arith.constant 0 : index
    %25 = vector.load %arg2[%c0_26, %c0_27, %c0_28] : memref<5x96x224xf32, #tpu.memory_space<vmem>>, vector<1x96x224xf32>
    %26 = vector.shape_cast %25 : vector<1x96x224xf32> to vector<96x224xf32>
    %cst_29 = arith.constant dense<0.000000e+00> : vector<14x224xf32>
    %27 = tpu.matmul %24, %26, %cst_29 {dimension_numbers = #tpu.dot_dimension_numbers<[1], [0], [0], [1], [0, 0, 1, 1], [], []>} : vector<14x96xf32>, vector<96x224xf32>, vector<14x224xf32> -> vector<14x224xf32>
    %c1_30 = arith.constant 1 : index
    %c0_31 = arith.constant 0 : index
    %28 = vector.load %arg0[%c1_30, %c0_31] : memref<32x96xf32, #tpu.memory_space<vmem>>, vector<14x96xf32>
    %c1_32 = arith.constant 1 : index
    %c0_33 = arith.constant 0 : index
    %c0_34 = arith.constant 0 : index
    %29 = vector.load %arg2[%c1_32, %c0_33, %c0_34] : memref<5x96x224xf32, #tpu.memory_space<vmem>>, vector<1x96x224xf32>
    %30 = vector.shape_cast %29 : vector<1x96x224xf32> to vector<96x224xf32>
    %cst_35 = arith.constant dense<0.000000e+00> : vector<14x224xf32>
    %31 = tpu.matmul %28, %30, %cst_35 {dimension_numbers = #tpu.dot_dimension_numbers<[1], [0], [0], [1], [0, 0, 1, 1], [], []>} : vector<14x96xf32>, vector<96x224xf32>, vector<14x224xf32> -> vector<14x224xf32>
    %32 = arith.addf %27, %31 : vector<14x224xf32>
    %c1_36 = arith.constant 1 : index
    %c0_37 = arith.constant 0 : index
    %33 = vector.load %arg1[%c1_36, %c0_37] : memref<32x96xf32, #tpu.memory_space<vmem>>, vector<14x96xf32>
    %c2_38 = arith.constant 2 : index
    %c0_39 = arith.constant 0 : index
    %c0_40 = arith.constant 0 : index
    %34 = vector.load %arg2[%c2_38, %c0_39, %c0_40] : memref<5x96x224xf32, #tpu.memory_space<vmem>>, vector<1x96x224xf32>
    %35 = vector.shape_cast %34 : vector<1x96x224xf32> to vector<96x224xf32>
    %cst_41 = arith.constant dense<0.000000e+00> : vector<14x224xf32>
    %36 = tpu.matmul %33, %35, %cst_41 {dimension_numbers = #tpu.dot_dimension_numbers<[1], [0], [0], [1], [0, 0, 1, 1], [], []>} : vector<14x96xf32>, vector<96x224xf32>, vector<14x224xf32> -> vector<14x224xf32>
    %37 = arith.addf %32, %36 : vector<14x224xf32>
    %c2_42 = arith.constant 2 : index
    %c0_43 = arith.constant 0 : index
    %38 = vector.load %arg0[%c2_42, %c0_43] : memref<32x96xf32, #tpu.memory_space<vmem>>, vector<14x96xf32>
    %c3_44 = arith.constant 3 : index
    %c0_45 = arith.constant 0 : index
    %c0_46 = arith.constant 0 : index
    %39 = vector.load %arg2[%c3_44, %c0_45, %c0_46] : memref<5x96x224xf32, #tpu.memory_space<vmem>>, vector<1x96x224xf32>
    %40 = vector.shape_cast %39 : vector<1x96x224xf32> to vector<96x224xf32>
    %cst_47 = arith.constant dense<0.000000e+00> : vector<14x224xf32>
    %41 = tpu.matmul %38, %40, %cst_47 {dimension_numbers = #tpu.dot_dimension_numbers<[1], [0], [0], [1], [0, 0, 1, 1], [], []>} : vector<14x96xf32>, vector<96x224xf32>, vector<14x224xf32> -> vector<14x224xf32>
    %42 = arith.addf %37, %41 : vector<14x224xf32>
    %c2_48 = arith.constant 2 : index
    %c0_49 = arith.constant 0 : index
    %43 = vector.load %arg1[%c2_48, %c0_49] : memref<32x96xf32, #tpu.memory_space<vmem>>, vector<14x96xf32>
    %c4_50 = arith.constant 4 : index
    %c0_51 = arith.constant 0 : index
    %c0_52 = arith.constant 0 : index
    %44 = vector.load %arg2[%c4_50, %c0_51, %c0_52] : memref<5x96x224xf32, #tpu.memory_space<vmem>>, vector<1x96x224xf32>
    %45 = vector.shape_cast %44 : vector<1x96x224xf32> to vector<96x224xf32>
    %cst_53 = arith.constant dense<0.000000e+00> : vector<14x224xf32>
    %46 = tpu.matmul %43, %45, %cst_53 {dimension_numbers = #tpu.dot_dimension_numbers<[1], [0], [0], [1], [0, 0, 1, 1], [], []>} : vector<14x96xf32>, vector<96x224xf32>, vector<14x224xf32> -> vector<14x224xf32>
    %47 = arith.addf %42, %46 : vector<14x224xf32>
    %48 = arith.maximumf %23, %47 : vector<14x224xf32>
    %49 = vector.extract_strided_slice %48 {offsets = [0, 0], sizes = [14, 112], strides = [1, 1]} : vector<14x224xf32> to vector<14x112xf32>
    %50 = vector.extract_strided_slice %48 {offsets = [0, 112], sizes = [14, 112], strides = [1, 1]} : vector<14x224xf32> to vector<14x112xf32>
    %51 = arith.maximumf %49, %50 : vector<14x112xf32>
    %c0_54 = arith.constant 0 : index
    %c0_55 = arith.constant 0 : index
    %52 = vector.load %arg3[%c0_54, %c0_55] : memref<1x112xf32, #tpu.memory_space<vmem>>, vector<1x112xf32>
    %53 = vector.broadcast %52 : vector<1x112xf32> to vector<14x112xf32>
    %54 = arith.addf %51, %53 : vector<14x112xf32>
    %cst_56 = arith.constant 0.000000e+00 : f32
    %55 = vector.broadcast %cst_56 : f32 to vector<14x112xf32>
    %56 = arith.maximumf %54, %55 : vector<14x112xf32>
    %c0_57 = arith.constant 0 : index
    %c0_58 = arith.constant 0 : index
    %57 = vector.load %arg17[%c0_57, %c0_58] : memref<28x112xf32, #tpu.memory_space<vmem>>, vector<14x112xf32>
    tpu.vector_store %arg17[%c0_57, %c0_58], %56 {strides = array<i32>} : memref<28x112xf32, #tpu.memory_space<vmem>>, vector<14x112xf32>,
    %c0_59 = arith.constant 0 : index
    %c0_60 = arith.constant 0 : index
    %58 = vector.load %arg17[%c0_59, %c0_60] : memref<28x112xf32, #tpu.memory_space<vmem>>, vector<10x112xf32>
    %c0_61 = arith.constant 0 : index
    %c0_62 = arith.constant 0 : index
    %c0_63 = arith.constant 0 : index
    %59 = vector.load %arg4[%c0_61, %c0_62, %c0_63] : memref<5x112x160xf32, #tpu.memory_space<vmem>>, vector<1x112x160xf32>
    %60 = vector.shape_cast %59 : vector<1x112x160xf32> to vector<112x160xf32>
    %cst_64 = arith.constant dense<0.000000e+00> : vector<10x160xf32>
    %61 = tpu.matmul %58, %60, %cst_64 {dimension_numbers = #tpu.dot_dimension_numbers<[1], [0], [0], [1], [0, 0, 1, 1], [], []>} : vector<10x112xf32>, vector<112x160xf32>, vector<10x160xf32> -> vector<10x160xf32>
    %c1_65 = arith.constant 1 : index
    %c0_66 = arith.constant 0 : index
    %62 = vector.load %arg17[%c1_65, %c0_66] : memref<28x112xf32, #tpu.memory_space<vmem>>, vector<10x112xf32>
    %c1_67 = arith.constant 1 : index
    %c0_68 = arith.constant 0 : index
    %c0_69 = arith.constant 0 : index
    %63 = vector.load %arg4[%c1_67, %c0_68, %c0_69] : memref<5x112x160xf32, #tpu.memory_space<vmem>>, vector<1x112x160xf32>
    %64 = vector.shape_cast %63 : vector<1x112x160xf32> to vector<112x160xf32>
    %cst_70 = arith.constant dense<0.000000e+00> : vector<10x160xf32>
    %65 = tpu.matmul %62, %64, %cst_70 {dimension_numbers = #tpu.dot_dimension_numbers<[1], [0], [0], [1], [0, 0, 1, 1], [], []>} : vector<10x112xf32>, vector<112x160xf32>, vector<10x160xf32> -> vector<10x160xf32>
    %66 = arith.addf %61, %65 : vector<10x160xf32>
    %c2_71 = arith.constant 2 : index
    %c0_72 = arith.constant 0 : index
    %67 = vector.load %arg17[%c2_71, %c0_72] : memref<28x112xf32, #tpu.memory_space<vmem>>, vector<10x112xf32>
    %c2_73 = arith.constant 2 : index
    %c0_74 = arith.constant 0 : index
    %c0_75 = arith.constant 0 : index
    %68 = vector.load %arg4[%c2_73, %c0_74, %c0_75] : memref<5x112x160xf32, #tpu.memory_space<vmem>>, vector<1x112x160xf32>
    %69 = vector.shape_cast %68 : vector<1x112x160xf32> to vector<112x160xf32>
    %cst_76 = arith.constant dense<0.000000e+00> : vector<10x160xf32>
    %70 = tpu.matmul %67, %69, %cst_76 {dimension_numbers = #tpu.dot_dimension_numbers<[1], [0], [0], [1], [0, 0, 1, 1], [], []>} : vector<10x112xf32>, vector<112x160xf32>, vector<10x160xf32> -> vector<10x160xf32>
    %71 = arith.addf %66, %70 : vector<10x160xf32>
    %c3_77 = arith.constant 3 : index
    %c0_78 = arith.constant 0 : index
    %72 = vector.load %arg17[%c3_77, %c0_78] : memref<28x112xf32, #tpu.memory_space<vmem>>, vector<10x112xf32>
    %c3_79 = arith.constant 3 : index
    %c0_80 = arith.constant 0 : index
    %c0_81 = arith.constant 0 : index
    %73 = vector.load %arg4[%c3_79, %c0_80, %c0_81] : memref<5x112x160xf32, #tpu.memory_space<vmem>>, vector<1x112x160xf32>
    %74 = vector.shape_cast %73 : vector<1x112x160xf32> to vector<112x160xf32>
    %cst_82 = arith.constant dense<0.000000e+00> : vector<10x160xf32>
    %75 = tpu.matmul %72, %74, %cst_82 {dimension_numbers = #tpu.dot_dimension_numbers<[1], [0], [0], [1], [0, 0, 1, 1], [], []>} : vector<10x112xf32>, vector<112x160xf32>, vector<10x160xf32> -> vector<10x160xf32>
    %76 = arith.addf %71, %75 : vector<10x160xf32>
    %c4_83 = arith.constant 4 : index
    %c0_84 = arith.constant 0 : index
    %77 = vector.load %arg17[%c4_83, %c0_84] : memref<28x112xf32, #tpu.memory_space<vmem>>, vector<10x112xf32>
    %c4_85 = arith.constant 4 : index
    %c0_86 = arith.constant 0 : index
    %c0_87 = arith.constant 0 : index
    %78 = vector.load %arg4[%c4_85, %c0_86, %c0_87] : memref<5x112x160xf32, #tpu.memory_space<vmem>>, vector<1x112x160xf32>
    %79 = vector.shape_cast %78 : vector<1x112x160xf32> to vector<112x160xf32>
    %cst_88 = arith.constant dense<0.000000e+00> : vector<10x160xf32>
    %80 = tpu.matmul %77, %79, %cst_88 {dimension_numbers = #tpu.dot_dimension_numbers<[1], [0], [0], [1], [0, 0, 1, 1], [], []>} : vector<10x112xf32>, vector<112x160xf32>, vector<10x160xf32> -> vector<10x160xf32>
    %81 = arith.addf %76, %80 : vector<10x160xf32>
    %82 = vector.extract_strided_slice %81 {offsets = [0, 0], sizes = [10, 80], strides = [1, 1]} : vector<10x160xf32> to vector<10x80xf32>
    %83 = vector.extract_strided_slice %81 {offsets = [0, 80], sizes = [10, 80], strides = [1, 1]} : vector<10x160xf32> to vector<10x80xf32>
    %84 = arith.maximumf %82, %83 : vector<10x80xf32>
    %85 = vector.extract_strided_slice %84 {offsets = [0, 0], sizes = [1, 80], strides = [1, 1]} : vector<10x80xf32> to vector<1x80xf32>
    %86 = vector.extract_strided_slice %84 {offsets = [1, 0], sizes = [1, 80], strides = [1, 1]} : vector<10x80xf32> to vector<1x80xf32>
    %87 = arith.maximumf %85, %86 : vector<1x80xf32>
    %c0_89 = arith.constant 0 : index
    %c0_90 = arith.constant 0 : index
    %88 = vector.load %arg5[%c0_89, %c0_90] : memref<1x80xf32, #tpu.memory_space<vmem>>, vector<1x80xf32>
    %89 = arith.addf %87, %88 : vector<1x80xf32>
    %cst_91 = arith.constant 0.000000e+00 : f32
    %90 = vector.broadcast %cst_91 : f32 to vector<1x80xf32>
    %91 = arith.maximumf %89, %90 : vector<1x80xf32>
    %c0_92 = arith.constant 0 : index
    %c0_93 = arith.constant 0 : index
    %92 = vector.load %arg18[%c0_92, %c0_93] : memref<2x400xf32, #tpu.memory_space<vmem>>, vector<1x80xf32>
    tpu.vector_store %arg18[%c0_92, %c0_93], %91 {strides = array<i32>} : memref<2x400xf32, #tpu.memory_space<vmem>>, vector<1x80xf32>,
    %93 = vector.extract_strided_slice %84 {offsets = [2, 0], sizes = [1, 80], strides = [1, 1]} : vector<10x80xf32> to vector<1x80xf32>
    %94 = vector.extract_strided_slice %84 {offsets = [3, 0], sizes = [1, 80], strides = [1, 1]} : vector<10x80xf32> to vector<1x80xf32>
    %95 = arith.maximumf %93, %94 : vector<1x80xf32>
    %c0_94 = arith.constant 0 : index
    %c0_95 = arith.constant 0 : index
    %96 = vector.load %arg5[%c0_94, %c0_95] : memref<1x80xf32, #tpu.memory_space<vmem>>, vector<1x80xf32>
    %97 = arith.addf %95, %96 : vector<1x80xf32>
    %cst_96 = arith.constant 0.000000e+00 : f32
    %98 = vector.broadcast %cst_96 : f32 to vector<1x80xf32>
    %99 = arith.maximumf %97, %98 : vector<1x80xf32>
    %c0_97 = arith.constant 0 : index
    %c80 = arith.constant 80 : index
    %100 = vector.load %arg18[%c0_97, %c80] : memref<2x400xf32, #tpu.memory_space<vmem>>, vector<1x80xf32>
    tpu.vector_store %arg18[%c0_97, %c80], %99 {strides = array<i32>} : memref<2x400xf32, #tpu.memory_space<vmem>>, vector<1x80xf32>,
    %101 = vector.extract_strided_slice %84 {offsets = [4, 0], sizes = [1, 80], strides = [1, 1]} : vector<10x80xf32> to vector<1x80xf32>
    %102 = vector.extract_strided_slice %84 {offsets = [5, 0], sizes = [1, 80], strides = [1, 1]} : vector<10x80xf32> to vector<1x80xf32>
    %103 = arith.maximumf %101, %102 : vector<1x80xf32>
    %c0_98 = arith.constant 0 : index
    %c0_99 = arith.constant 0 : index
    %104 = vector.load %arg5[%c0_98, %c0_99] : memref<1x80xf32, #tpu.memory_space<vmem>>, vector<1x80xf32>
    %105 = arith.addf %103, %104 : vector<1x80xf32>
    %cst_100 = arith.constant 0.000000e+00 : f32
    %106 = vector.broadcast %cst_100 : f32 to vector<1x80xf32>
    %107 = arith.maximumf %105, %106 : vector<1x80xf32>
    %c0_101 = arith.constant 0 : index
    %c160 = arith.constant 160 : index
    %108 = vector.load %arg18[%c0_101, %c160] : memref<2x400xf32, #tpu.memory_space<vmem>>, vector<1x80xf32>
    tpu.vector_store %arg18[%c0_101, %c160], %107 {strides = array<i32>} : memref<2x400xf32, #tpu.memory_space<vmem>>, vector<1x80xf32>,
    %109 = vector.extract_strided_slice %84 {offsets = [6, 0], sizes = [1, 80], strides = [1, 1]} : vector<10x80xf32> to vector<1x80xf32>
    %110 = vector.extract_strided_slice %84 {offsets = [7, 0], sizes = [1, 80], strides = [1, 1]} : vector<10x80xf32> to vector<1x80xf32>
    %111 = arith.maximumf %109, %110 : vector<1x80xf32>
    %c0_102 = arith.constant 0 : index
    %c0_103 = arith.constant 0 : index
    %112 = vector.load %arg5[%c0_102, %c0_103] : memref<1x80xf32, #tpu.memory_space<vmem>>, vector<1x80xf32>
    %113 = arith.addf %111, %112 : vector<1x80xf32>
    %cst_104 = arith.constant 0.000000e+00 : f32
    %114 = vector.broadcast %cst_104 : f32 to vector<1x80xf32>
    %115 = arith.maximumf %113, %114 : vector<1x80xf32>
    %c0_105 = arith.constant 0 : index
    %c240 = arith.constant 240 : index
    %116 = vector.load %arg18[%c0_105, %c240] : memref<2x400xf32, #tpu.memory_space<vmem>>, vector<1x80xf32>
    tpu.vector_store %arg18[%c0_105, %c240], %115 {strides = array<i32>} : memref<2x400xf32, #tpu.memory_space<vmem>>, vector<1x80xf32>,
    %117 = vector.extract_strided_slice %84 {offsets = [8, 0], sizes = [1, 80], strides = [1, 1]} : vector<10x80xf32> to vector<1x80xf32>
    %118 = vector.extract_strided_slice %84 {offsets = [9, 0], sizes = [1, 80], strides = [1, 1]} : vector<10x80xf32> to vector<1x80xf32>
    %119 = arith.maximumf %117, %118 : vector<1x80xf32>
    %c0_106 = arith.constant 0 : index
    %c0_107 = arith.constant 0 : index
    %120 = vector.load %arg5[%c0_106, %c0_107] : memref<1x80xf32, #tpu.memory_space<vmem>>, vector<1x80xf32>
    %121 = arith.addf %119, %120 : vector<1x80xf32>
    %cst_108 = arith.constant 0.000000e+00 : f32
    %122 = vector.broadcast %cst_108 : f32 to vector<1x80xf32>
    %123 = arith.maximumf %121, %122 : vector<1x80xf32>
    %c0_109 = arith.constant 0 : index
    %c320 = arith.constant 320 : index
    %124 = vector.load %arg18[%c0_109, %c320] : memref<2x400xf32, #tpu.memory_space<vmem>>, vector<1x80xf32>
    tpu.vector_store %arg18[%c0_109, %c320], %123 {strides = array<i32>} : memref<2x400xf32, #tpu.memory_space<vmem>>, vector<1x80xf32>,
    %c16 = arith.constant 16 : index
    %c0_110 = arith.constant 0 : index
    %125 = vector.load %arg0[%c16, %c0_110] : memref<32x96xf32, #tpu.memory_space<vmem>>, vector<14x96xf32>
    %c0_111 = arith.constant 0 : index
    %c0_112 = arith.constant 0 : index
    %c0_113 = arith.constant 0 : index
    %126 = vector.load %arg2[%c0_111, %c0_112, %c0_113] : memref<5x96x224xf32, #tpu.memory_space<vmem>>, vector<1x96x224xf32>
    %127 = vector.shape_cast %126 : vector<1x96x224xf32> to vector<96x224xf32>
    %cst_114 = arith.constant dense<0.000000e+00> : vector<14x224xf32>
    %128 = tpu.matmul %125, %127, %cst_114 {dimension_numbers = #tpu.dot_dimension_numbers<[1], [0], [0], [1], [0, 0, 1, 1], [], []>} : vector<14x96xf32>, vector<96x224xf32>, vector<14x224xf32> -> vector<14x224xf32>
    %c16_115 = arith.constant 16 : index
    %c0_116 = arith.constant 0 : index
    %129 = vector.load %arg1[%c16_115, %c0_116] : memref<32x96xf32, #tpu.memory_space<vmem>>, vector<14x96xf32>
    %c1_117 = arith.constant 1 : index
    %c0_118 = arith.constant 0 : index
    %c0_119 = arith.constant 0 : index
    %130 = vector.load %arg2[%c1_117, %c0_118, %c0_119] : memref<5x96x224xf32, #tpu.memory_space<vmem>>, vector<1x96x224xf32>
    %131 = vector.shape_cast %130 : vector<1x96x224xf32> to vector<96x224xf32>
    %cst_120 = arith.constant dense<0.000000e+00> : vector<14x224xf32>
    %132 = tpu.matmul %129, %131, %cst_120 {dimension_numbers = #tpu.dot_dimension_numbers<[1], [0], [0], [1], [0, 0, 1, 1], [], []>} : vector<14x96xf32>, vector<96x224xf32>, vector<14x224xf32> -> vector<14x224xf32>
    %133 = arith.addf %128, %132 : vector<14x224xf32>
    %c17 = arith.constant 17 : index
    %c0_121 = arith.constant 0 : index
    %134 = vector.load %arg0[%c17, %c0_121] : memref<32x96xf32, #tpu.memory_space<vmem>>, vector<14x96xf32>
    %c2_122 = arith.constant 2 : index
    %c0_123 = arith.constant 0 : index
    %c0_124 = arith.constant 0 : index
    %135 = vector.load %arg2[%c2_122, %c0_123, %c0_124] : memref<5x96x224xf32, #tpu.memory_space<vmem>>, vector<1x96x224xf32>
    %136 = vector.shape_cast %135 : vector<1x96x224xf32> to vector<96x224xf32>
    %cst_125 = arith.constant dense<0.000000e+00> : vector<14x224xf32>
    %137 = tpu.matmul %134, %136, %cst_125 {dimension_numbers = #tpu.dot_dimension_numbers<[1], [0], [0], [1], [0, 0, 1, 1], [], []>} : vector<14x96xf32>, vector<96x224xf32>, vector<14x224xf32> -> vector<14x224xf32>
    %138 = arith.addf %133, %137 : vector<14x224xf32>
    %c17_126 = arith.constant 17 : index
    %c0_127 = arith.constant 0 : index
    %139 = vector.load %arg1[%c17_126, %c0_127] : memref<32x96xf32, #tpu.memory_space<vmem>>, vector<14x96xf32>
    %c3_128 = arith.constant 3 : index
    %c0_129 = arith.constant 0 : index
    %c0_130 = arith.constant 0 : index
    %140 = vector.load %arg2[%c3_128, %c0_129, %c0_130] : memref<5x96x224xf32, #tpu.memory_space<vmem>>, vector<1x96x224xf32>
    %141 = vector.shape_cast %140 : vector<1x96x224xf32> to vector<96x224xf32>
    %cst_131 = arith.constant dense<0.000000e+00> : vector<14x224xf32>
    %142 = tpu.matmul %139, %141, %cst_131 {dimension_numbers = #tpu.dot_dimension_numbers<[1], [0], [0], [1], [0, 0, 1, 1], [], []>} : vector<14x96xf32>, vector<96x224xf32>, vector<14x224xf32> -> vector<14x224xf32>
    %143 = arith.addf %138, %142 : vector<14x224xf32>
    %c18 = arith.constant 18 : index
    %c0_132 = arith.constant 0 : index
    %144 = vector.load %arg0[%c18, %c0_132] : memref<32x96xf32, #tpu.memory_space<vmem>>, vector<14x96xf32>
    %c4_133 = arith.constant 4 : index
    %c0_134 = arith.constant 0 : index
    %c0_135 = arith.constant 0 : index
    %145 = vector.load %arg2[%c4_133, %c0_134, %c0_135] : memref<5x96x224xf32, #tpu.memory_space<vmem>>, vector<1x96x224xf32>
    %146 = vector.shape_cast %145 : vector<1x96x224xf32> to vector<96x224xf32>
    %cst_136 = arith.constant dense<0.000000e+00> : vector<14x224xf32>
    %147 = tpu.matmul %144, %146, %cst_136 {dimension_numbers = #tpu.dot_dimension_numbers<[1], [0], [0], [1], [0, 0, 1, 1], [], []>} : vector<14x96xf32>, vector<96x224xf32>, vector<14x224xf32> -> vector<14x224xf32>
    %148 = arith.addf %143, %147 : vector<14x224xf32>
    %c16_137 = arith.constant 16 : index
    %c0_138 = arith.constant 0 : index
    %149 = vector.load %arg1[%c16_137, %c0_138] : memref<32x96xf32, #tpu.memory_space<vmem>>, vector<14x96xf32>
    %c0_139 = arith.constant 0 : index
    %c0_140 = arith.constant 0 : index
    %c0_141 = arith.constant 0 : index
    %150 = vector.load %arg2[%c0_139, %c0_140, %c0_141] : memref<5x96x224xf32, #tpu.memory_space<vmem>>, vector<1x96x224xf32>
    %151 = vector.shape_cast %150 : vector<1x96x224xf32> to vector<96x224xf32>
    %cst_142 = arith.constant dense<0.000000e+00> : vector<14x224xf32>
    %152 = tpu.matmul %149, %151, %cst_142 {dimension_numbers = #tpu.dot_dimension_numbers<[1], [0], [0], [1], [0, 0, 1, 1], [], []>} : vector<14x96xf32>, vector<96x224xf32>, vector<14x224xf32> -> vector<14x224xf32>
    %c17_143 = arith.constant 17 : index
    %c0_144 = arith.constant 0 : index
    %153 = vector.load %arg0[%c17_143, %c0_144] : memref<32x96xf32, #tpu.memory_space<vmem>>, vector<14x96xf32>
    %c1_145 = arith.constant 1 : index
    %c0_146 = arith.constant 0 : index
    %c0_147 = arith.constant 0 : index
    %154 = vector.load %arg2[%c1_145, %c0_146, %c0_147] : memref<5x96x224xf32, #tpu.memory_space<vmem>>, vector<1x96x224xf32>
    %155 = vector.shape_cast %154 : vector<1x96x224xf32> to vector<96x224xf32>
    %cst_148 = arith.constant dense<0.000000e+00> : vector<14x224xf32>
    %156 = tpu.matmul %153, %155, %cst_148 {dimension_numbers = #tpu.dot_dimension_numbers<[1], [0], [0], [1], [0, 0, 1, 1], [], []>} : vector<14x96xf32>, vector<96x224xf32>, vector<14x224xf32> -> vector<14x224xf32>
    %157 = arith.addf %152, %156 : vector<14x224xf32>
    %c17_149 = arith.constant 17 : index
    %c0_150 = arith.constant 0 : index
    %158 = vector.load %arg1[%c17_149, %c0_150] : memref<32x96xf32, #tpu.memory_space<vmem>>, vector<14x96xf32>
    %c2_151 = arith.constant 2 : index
    %c0_152 = arith.constant 0 : index
    %c0_153 = arith.constant 0 : index
    %159 = vector.load %arg2[%c2_151, %c0_152, %c0_153] : memref<5x96x224xf32, #tpu.memory_space<vmem>>, vector<1x96x224xf32>
    %160 = vector.shape_cast %159 : vector<1x96x224xf32> to vector<96x224xf32>
    %cst_154 = arith.constant dense<0.000000e+00> : vector<14x224xf32>
    %161 = tpu.matmul %158, %160, %cst_154 {dimension_numbers = #tpu.dot_dimension_numbers<[1], [0], [0], [1], [0, 0, 1, 1], [], []>} : vector<14x96xf32>, vector<96x224xf32>, vector<14x224xf32> -> vector<14x224xf32>
    %162 = arith.addf %157, %161 : vector<14x224xf32>
    %c18_155 = arith.constant 18 : index
    %c0_156 = arith.constant 0 : index
    %163 = vector.load %arg0[%c18_155, %c0_156] : memref<32x96xf32, #tpu.memory_space<vmem>>, vector<14x96xf32>
    %c3_157 = arith.constant 3 : index
    %c0_158 = arith.constant 0 : index
    %c0_159 = arith.constant 0 : index
    %164 = vector.load %arg2[%c3_157, %c0_158, %c0_159] : memref<5x96x224xf32, #tpu.memory_space<vmem>>, vector<1x96x224xf32>
    %165 = vector.shape_cast %164 : vector<1x96x224xf32> to vector<96x224xf32>
    %cst_160 = arith.constant dense<0.000000e+00> : vector<14x224xf32>
    %166 = tpu.matmul %163, %165, %cst_160 {dimension_numbers = #tpu.dot_dimension_numbers<[1], [0], [0], [1], [0, 0, 1, 1], [], []>} : vector<14x96xf32>, vector<96x224xf32>, vector<14x224xf32> -> vector<14x224xf32>
    %167 = arith.addf %162, %166 : vector<14x224xf32>
    %c18_161 = arith.constant 18 : index
    %c0_162 = arith.constant 0 : index
    %168 = vector.load %arg1[%c18_161, %c0_162] : memref<32x96xf32, #tpu.memory_space<vmem>>, vector<14x96xf32>
    %c4_163 = arith.constant 4 : index
    %c0_164 = arith.constant 0 : index
    %c0_165 = arith.constant 0 : index
    %169 = vector.load %arg2[%c4_163, %c0_164, %c0_165] : memref<5x96x224xf32, #tpu.memory_space<vmem>>, vector<1x96x224xf32>
    %170 = vector.shape_cast %169 : vector<1x96x224xf32> to vector<96x224xf32>
    %cst_166 = arith.constant dense<0.000000e+00> : vector<14x224xf32>
    %171 = tpu.matmul %168, %170, %cst_166 {dimension_numbers = #tpu.dot_dimension_numbers<[1], [0], [0], [1], [0, 0, 1, 1], [], []>} : vector<14x96xf32>, vector<96x224xf32>, vector<14x224xf32> -> vector<14x224xf32>
    %172 = arith.addf %167, %171 : vector<14x224xf32>
    %173 = arith.maximumf %148, %172 : vector<14x224xf32>
    %174 = vector.extract_strided_slice %173 {offsets = [0, 0], sizes = [14, 112], strides = [1, 1]} : vector<14x224xf32> to vector<14x112xf32>
    %175 = vector.extract_strided_slice %173 {offsets = [0, 112], sizes = [14, 112], strides = [1, 1]} : vector<14x224xf32> to vector<14x112xf32>
    %176 = arith.maximumf %174, %175 : vector<14x112xf32>
    %c0_167 = arith.constant 0 : index
    %c0_168 = arith.constant 0 : index
    %177 = vector.load %arg3[%c0_167, %c0_168] : memref<1x112xf32, #tpu.memory_space<vmem>>, vector<1x112xf32>
    %178 = vector.broadcast %177 : vector<1x112xf32> to vector<14x112xf32>
    %179 = arith.addf %176, %178 : vector<14x112xf32>
    %cst_169 = arith.constant 0.000000e+00 : f32
    %180 = vector.broadcast %cst_169 : f32 to vector<14x112xf32>
    %181 = arith.maximumf %179, %180 : vector<14x112xf32>
    %c14 = arith.constant 14 : index
    %c0_170 = arith.constant 0 : index
    %182 = vector.load %arg17[%c14, %c0_170] : memref<28x112xf32, #tpu.memory_space<vmem>>, vector<14x112xf32>
    tpu.vector_store %arg17[%c14, %c0_170], %181 {strides = array<i32>} : memref<28x112xf32, #tpu.memory_space<vmem>>, vector<14x112xf32>,
    %c14_171 = arith.constant 14 : index
    %c0_172 = arith.constant 0 : index
    %183 = vector.load %arg17[%c14_171, %c0_172] : memref<28x112xf32, #tpu.memory_space<vmem>>, vector<10x112xf32>
    %c0_173 = arith.constant 0 : index
    %c0_174 = arith.constant 0 : index
    %c0_175 = arith.constant 0 : index
    %184 = vector.load %arg4[%c0_173, %c0_174, %c0_175] : memref<5x112x160xf32, #tpu.memory_space<vmem>>, vector<1x112x160xf32>
    %185 = vector.shape_cast %184 : vector<1x112x160xf32> to vector<112x160xf32>
    %cst_176 = arith.constant dense<0.000000e+00> : vector<10x160xf32>
    %186 = tpu.matmul %183, %185, %cst_176 {dimension_numbers = #tpu.dot_dimension_numbers<[1], [0], [0], [1], [0, 0, 1, 1], [], []>} : vector<10x112xf32>, vector<112x160xf32>, vector<10x160xf32> -> vector<10x160xf32>
    %c15 = arith.constant 15 : index
    %c0_177 = arith.constant 0 : index
    %187 = vector.load %arg17[%c15, %c0_177] : memref<28x112xf32, #tpu.memory_space<vmem>>, vector<10x112xf32>
    %c1_178 = arith.constant 1 : index
    %c0_179 = arith.constant 0 : index
    %c0_180 = arith.constant 0 : index
    %188 = vector.load %arg4[%c1_178, %c0_179, %c0_180] : memref<5x112x160xf32, #tpu.memory_space<vmem>>, vector<1x112x160xf32>
    %189 = vector.shape_cast %188 : vector<1x112x160xf32> to vector<112x160xf32>
    %cst_181 = arith.constant dense<0.000000e+00> : vector<10x160xf32>
    %190 = tpu.matmul %187, %189, %cst_181 {dimension_numbers = #tpu.dot_dimension_numbers<[1], [0], [0], [1], [0, 0, 1, 1], [], []>} : vector<10x112xf32>, vector<112x160xf32>, vector<10x160xf32> -> vector<10x160xf32>
    %191 = arith.addf %186, %190 : vector<10x160xf32>
    %c16_182 = arith.constant 16 : index
    %c0_183 = arith.constant 0 : index
    %192 = vector.load %arg17[%c16_182, %c0_183] : memref<28x112xf32, #tpu.memory_space<vmem>>, vector<10x112xf32>
    %c2_184 = arith.constant 2 : index
    %c0_185 = arith.constant 0 : index
    %c0_186 = arith.constant 0 : index
    %193 = vector.load %arg4[%c2_184, %c0_185, %c0_186] : memref<5x112x160xf32, #tpu.memory_space<vmem>>, vector<1x112x160xf32>
    %194 = vector.shape_cast %193 : vector<1x112x160xf32> to vector<112x160xf32>
    %cst_187 = arith.constant dense<0.000000e+00> : vector<10x160xf32>
    %195 = tpu.matmul %192, %194, %cst_187 {dimension_numbers = #tpu.dot_dimension_numbers<[1], [0], [0], [1], [0, 0, 1, 1], [], []>} : vector<10x112xf32>, vector<112x160xf32>, vector<10x160xf32> -> vector<10x160xf32>
    %196 = arith.addf %191, %195 : vector<10x160xf32>
    %c17_188 = arith.constant 17 : index
    %c0_189 = arith.constant 0 : index
    %197 = vector.load %arg17[%c17_188, %c0_189] : memref<28x112xf32, #tpu.memory_space<vmem>>, vector<10x112xf32>
    %c3_190 = arith.constant 3 : index
    %c0_191 = arith.constant 0 : index
    %c0_192 = arith.constant 0 : index
    %198 = vector.load %arg4[%c3_190, %c0_191, %c0_192] : memref<5x112x160xf32, #tpu.memory_space<vmem>>, vector<1x112x160xf32>
    %199 = vector.shape_cast %198 : vector<1x112x160xf32> to vector<112x160xf32>
    %cst_193 = arith.constant dense<0.000000e+00> : vector<10x160xf32>
    %200 = tpu.matmul %197, %199, %cst_193 {dimension_numbers = #tpu.dot_dimension_numbers<[1], [0], [0], [1], [0, 0, 1, 1], [], []>} : vector<10x112xf32>, vector<112x160xf32>, vector<10x160xf32> -> vector<10x160xf32>
    %201 = arith.addf %196, %200 : vector<10x160xf32>
    %c18_194 = arith.constant 18 : index
    %c0_195 = arith.constant 0 : index
    %202 = vector.load %arg17[%c18_194, %c0_195] : memref<28x112xf32, #tpu.memory_space<vmem>>, vector<10x112xf32>
    %c4_196 = arith.constant 4 : index
    %c0_197 = arith.constant 0 : index
    %c0_198 = arith.constant 0 : index
    %203 = vector.load %arg4[%c4_196, %c0_197, %c0_198] : memref<5x112x160xf32, #tpu.memory_space<vmem>>, vector<1x112x160xf32>
    %204 = vector.shape_cast %203 : vector<1x112x160xf32> to vector<112x160xf32>
    %cst_199 = arith.constant dense<0.000000e+00> : vector<10x160xf32>
    %205 = tpu.matmul %202, %204, %cst_199 {dimension_numbers = #tpu.dot_dimension_numbers<[1], [0], [0], [1], [0, 0, 1, 1], [], []>} : vector<10x112xf32>, vector<112x160xf32>, vector<10x160xf32> -> vector<10x160xf32>
    %206 = arith.addf %201, %205 : vector<10x160xf32>
    %207 = vector.extract_strided_slice %206 {offsets = [0, 0], sizes = [10, 80], strides = [1, 1]} : vector<10x160xf32> to vector<10x80xf32>
    %208 = vector.extract_strided_slice %206 {offsets = [0, 80], sizes = [10, 80], strides = [1, 1]} : vector<10x160xf32> to vector<10x80xf32>
    %209 = arith.maximumf %207, %208 : vector<10x80xf32>
    %210 = vector.extract_strided_slice %209 {offsets = [0, 0], sizes = [1, 80], strides = [1, 1]} : vector<10x80xf32> to vector<1x80xf32>
    %211 = vector.extract_strided_slice %209 {offsets = [1, 0], sizes = [1, 80], strides = [1, 1]} : vector<10x80xf32> to vector<1x80xf32>
    %212 = arith.maximumf %210, %211 : vector<1x80xf32>
    %c0_200 = arith.constant 0 : index
    %c0_201 = arith.constant 0 : index
    %213 = vector.load %arg5[%c0_200, %c0_201] : memref<1x80xf32, #tpu.memory_space<vmem>>, vector<1x80xf32>
    %214 = arith.addf %212, %213 : vector<1x80xf32>
    %cst_202 = arith.constant 0.000000e+00 : f32
    %215 = vector.broadcast %cst_202 : f32 to vector<1x80xf32>
    %216 = arith.maximumf %214, %215 : vector<1x80xf32>
    %c1_203 = arith.constant 1 : index
    %c0_204 = arith.constant 0 : index
    %217 = vector.load %arg18[%c1_203, %c0_204] : memref<2x400xf32, #tpu.memory_space<vmem>>, vector<1x80xf32>
    tpu.vector_store %arg18[%c1_203, %c0_204], %216 {strides = array<i32>} : memref<2x400xf32, #tpu.memory_space<vmem>>, vector<1x80xf32>,
    %218 = vector.extract_strided_slice %209 {offsets = [2, 0], sizes = [1, 80], strides = [1, 1]} : vector<10x80xf32> to vector<1x80xf32>
    %219 = vector.extract_strided_slice %209 {offsets = [3, 0], sizes = [1, 80], strides = [1, 1]} : vector<10x80xf32> to vector<1x80xf32>
    %220 = arith.maximumf %218, %219 : vector<1x80xf32>
    %c0_205 = arith.constant 0 : index
    %c0_206 = arith.constant 0 : index
    %221 = vector.load %arg5[%c0_205, %c0_206] : memref<1x80xf32, #tpu.memory_space<vmem>>, vector<1x80xf32>
    %222 = arith.addf %220, %221 : vector<1x80xf32>
    %cst_207 = arith.constant 0.000000e+00 : f32
    %223 = vector.broadcast %cst_207 : f32 to vector<1x80xf32>
    %224 = arith.maximumf %222, %223 : vector<1x80xf32>
    %c1_208 = arith.constant 1 : index
    %c80_209 = arith.constant 80 : index
    %225 = vector.load %arg18[%c1_208, %c80_209] : memref<2x400xf32, #tpu.memory_space<vmem>>, vector<1x80xf32>
    tpu.vector_store %arg18[%c1_208, %c80_209], %224 {strides = array<i32>} : memref<2x400xf32, #tpu.memory_space<vmem>>, vector<1x80xf32>,
    %226 = vector.extract_strided_slice %209 {offsets = [4, 0], sizes = [1, 80], strides = [1, 1]} : vector<10x80xf32> to vector<1x80xf32>
    %227 = vector.extract_strided_slice %209 {offsets = [5, 0], sizes = [1, 80], strides = [1, 1]} : vector<10x80xf32> to vector<1x80xf32>
    %228 = arith.maximumf %226, %227 : vector<1x80xf32>
    %c0_210 = arith.constant 0 : index
    %c0_211 = arith.constant 0 : index
    %229 = vector.load %arg5[%c0_210, %c0_211] : memref<1x80xf32, #tpu.memory_space<vmem>>, vector<1x80xf32>
    %230 = arith.addf %228, %229 : vector<1x80xf32>
    %cst_212 = arith.constant 0.000000e+00 : f32
    %231 = vector.broadcast %cst_212 : f32 to vector<1x80xf32>
    %232 = arith.maximumf %230, %231 : vector<1x80xf32>
    %c1_213 = arith.constant 1 : index
    %c160_214 = arith.constant 160 : index
    %233 = vector.load %arg18[%c1_213, %c160_214] : memref<2x400xf32, #tpu.memory_space<vmem>>, vector<1x80xf32>
    tpu.vector_store %arg18[%c1_213, %c160_214], %232 {strides = array<i32>} : memref<2x400xf32, #tpu.memory_space<vmem>>, vector<1x80xf32>,
    %234 = vector.extract_strided_slice %209 {offsets = [6, 0], sizes = [1, 80], strides = [1, 1]} : vector<10x80xf32> to vector<1x80xf32>
    %235 = vector.extract_strided_slice %209 {offsets = [7, 0], sizes = [1, 80], strides = [1, 1]} : vector<10x80xf32> to vector<1x80xf32>
    %236 = arith.maximumf %234, %235 : vector<1x80xf32>
    %c0_215 = arith.constant 0 : index
    %c0_216 = arith.constant 0 : index
    %237 = vector.load %arg5[%c0_215, %c0_216] : memref<1x80xf32, #tpu.memory_space<vmem>>, vector<1x80xf32>
    %238 = arith.addf %236, %237 : vector<1x80xf32>
    %cst_217 = arith.constant 0.000000e+00 : f32
    %239 = vector.broadcast %cst_217 : f32 to vector<1x80xf32>
    %240 = arith.maximumf %238, %239 : vector<1x80xf32>
    %c1_218 = arith.constant 1 : index
    %c240_219 = arith.constant 240 : index
    %241 = vector.load %arg18[%c1_218, %c240_219] : memref<2x400xf32, #tpu.memory_space<vmem>>, vector<1x80xf32>
    tpu.vector_store %arg18[%c1_218, %c240_219], %240 {strides = array<i32>} : memref<2x400xf32, #tpu.memory_space<vmem>>, vector<1x80xf32>,
    %242 = vector.extract_strided_slice %209 {offsets = [8, 0], sizes = [1, 80], strides = [1, 1]} : vector<10x80xf32> to vector<1x80xf32>
    %243 = vector.extract_strided_slice %209 {offsets = [9, 0], sizes = [1, 80], strides = [1, 1]} : vector<10x80xf32> to vector<1x80xf32>
    %244 = arith.maximumf %242, %243 : vector<1x80xf32>
    %c0_220 = arith.constant 0 : index
    %c0_221 = arith.constant 0 : index
    %245 = vector.load %arg5[%c0_220, %c0_221] : memref<1x80xf32, #tpu.memory_space<vmem>>, vector<1x80xf32>
    %246 = arith.addf %244, %245 : vector<1x80xf32>
    %cst_222 = arith.constant 0.000000e+00 : f32
    %247 = vector.broadcast %cst_222 : f32 to vector<1x80xf32>
    %248 = arith.maximumf %246, %247 : vector<1x80xf32>
    %c1_223 = arith.constant 1 : index
    %c320_224 = arith.constant 320 : index
    %249 = vector.load %arg18[%c1_223, %c320_224] : memref<2x400xf32, #tpu.memory_space<vmem>>, vector<1x80xf32>
    tpu.vector_store %arg18[%c1_223, %c320_224], %248 {strides = array<i32>} : memref<2x400xf32, #tpu.memory_space<vmem>>, vector<1x80xf32>,
    %c0_225 = arith.constant 0 : index
    %c0_226 = arith.constant 0 : index
    %250 = vector.load %arg18[%c0_225, %c0_226] : memref<2x400xf32, #tpu.memory_space<vmem>>, vector<2x400xf32>
    %c0_227 = arith.constant 0 : index
    %c0_228 = arith.constant 0 : index
    %251 = vector.load %arg6[%c0_227, %c0_228] : memref<400x120xf32, #tpu.memory_space<vmem>>, vector<400x120xf32>
    %cst_229 = arith.constant dense<0.000000e+00> : vector<2x120xf32>
    %252 = tpu.matmul %250, %251, %cst_229 {dimension_numbers = #tpu.dot_dimension_numbers<[1], [0], [0], [1], [0, 0, 1, 1], [], []>} : vector<2x400xf32>, vector<400x120xf32>, vector<2x120xf32> -> vector<2x120xf32>
    %c0_230 = arith.constant 0 : index
    %c0_231 = arith.constant 0 : index
    %253 = vector.load %arg7[%c0_230, %c0_231] : memref<1x120xf32, #tpu.memory_space<vmem>>, vector<1x120xf32>
    %254 = vector.broadcast %253 : vector<1x120xf32> to vector<2x120xf32>
    %255 = arith.addf %252, %254 : vector<2x120xf32>
    %c0_232 = arith.constant 0 : index
    %c0_233 = arith.constant 0 : index
    %256 = vector.load %arg8[%c0_232, %c0_233] : memref<1x120xf32, #tpu.memory_space<vmem>>, vector<1x120xf32>
    %c0_234 = arith.constant 0 : index
    %c0_235 = arith.constant 0 : index
    %257 = vector.load %arg9[%c0_234, %c0_235] : memref<1x120xf32, #tpu.memory_space<vmem>>, vector<1x120xf32>
    %cst_236 = arith.constant dense<0.000000e+00> : vector<120xf32>
    %258 = vector.multi_reduction <add>, %255, %cst_236 [0] : vector<2x120xf32> to vector<120xf32>
    %259 = vector.shape_cast %258 : vector<120xf32> to vector<1x120xf32>
    %cst_237 = arith.constant 2.000000e+00 : f32
    %260 = vector.broadcast %cst_237 : f32 to vector<1x120xf32>
    %261 = arith.divf %259, %260 : vector<1x120xf32>
    %262 = vector.broadcast %261 : vector<1x120xf32> to vector<2x120xf32>
    %263 = arith.subf %255, %262 : vector<2x120xf32>
    %264 = arith.mulf %263, %263 : vector<2x120xf32>
    %cst_238 = arith.constant dense<0.000000e+00> : vector<120xf32>
    %265 = vector.multi_reduction <add>, %264, %cst_238 [0] : vector<2x120xf32> to vector<120xf32>
    %266 = vector.shape_cast %265 : vector<120xf32> to vector<1x120xf32>
    %cst_239 = arith.constant 2.000000e+00 : f32
    %267 = vector.broadcast %cst_239 : f32 to vector<1x120xf32>
    %268 = arith.divf %266, %267 : vector<1x120xf32>
    %269 = vector.broadcast %261 : vector<1x120xf32> to vector<2x120xf32>
    %270 = arith.subf %255, %269 : vector<2x120xf32>
    %cst_240 = arith.constant 9.99999974E-6 : f32
    %271 = vector.broadcast %cst_240 : f32 to vector<1x120xf32>
    %272 = arith.addf %268, %271 : vector<1x120xf32>
    %273 = math.rsqrt %272 : vector<1x120xf32>
    %274 = vector.broadcast %273 : vector<1x120xf32> to vector<2x120xf32>
    %275 = arith.mulf %270, %274 : vector<2x120xf32>
    %276 = vector.broadcast %256 : vector<1x120xf32> to vector<2x120xf32>
    %277 = arith.mulf %275, %276 : vector<2x120xf32>
    %278 = vector.broadcast %257 : vector<1x120xf32> to vector<2x120xf32>
    %279 = arith.addf %277, %278 : vector<2x120xf32>
    %cst_241 = arith.constant 0.000000e+00 : f32
    %280 = vector.broadcast %cst_241 : f32 to vector<2x120xf32>
    %281 = arith.maximumf %279, %280 : vector<2x120xf32>
    %c0_242 = arith.constant 0 : index
    %c0_243 = arith.constant 0 : index
    %282 = vector.load %arg10[%c0_242, %c0_243] : memref<120x84xf32, #tpu.memory_space<vmem>>, vector<120x84xf32>
    %cst_244 = arith.constant dense<0.000000e+00> : vector<2x84xf32>
    %283 = tpu.matmul %281, %282, %cst_244 {dimension_numbers = #tpu.dot_dimension_numbers<[1], [0], [0], [1], [0, 0, 1, 1], [], []>} : vector<2x120xf32>, vector<120x84xf32>, vector<2x84xf32> -> vector<2x84xf32>
    %c0_245 = arith.constant 0 : index
    %c0_246 = arith.constant 0 : index
    %284 = vector.load %arg11[%c0_245, %c0_246] : memref<1x84xf32, #tpu.memory_space<vmem>>, vector<1x84xf32>
    %285 = vector.broadcast %284 : vector<1x84xf32> to vector<2x84xf32>
    %286 = arith.addf %283, %285 : vector<2x84xf32>
    %c0_247 = arith.constant 0 : index
    %c0_248 = arith.constant 0 : index
    %287 = vector.load %arg12[%c0_247, %c0_248] : memref<1x84xf32, #tpu.memory_space<vmem>>, vector<1x84xf32>
    %c0_249 = arith.constant 0 : index
    %c0_250 = arith.constant 0 : index
    %288 = vector.load %arg13[%c0_249, %c0_250] : memref<1x84xf32, #tpu.memory_space<vmem>>, vector<1x84xf32>
    %cst_251 = arith.constant dense<0.000000e+00> : vector<84xf32>
    %289 = vector.multi_reduction <add>, %286, %cst_251 [0] : vector<2x84xf32> to vector<84xf32>
    %290 = vector.shape_cast %289 : vector<84xf32> to vector<1x84xf32>
    %cst_252 = arith.constant 2.000000e+00 : f32
    %291 = vector.broadcast %cst_252 : f32 to vector<1x84xf32>
    %292 = arith.divf %290, %291 : vector<1x84xf32>
    %293 = vector.broadcast %292 : vector<1x84xf32> to vector<2x84xf32>
    %294 = arith.subf %286, %293 : vector<2x84xf32>
    %295 = arith.mulf %294, %294 : vector<2x84xf32>
    %cst_253 = arith.constant dense<0.000000e+00> : vector<84xf32>
    %296 = vector.multi_reduction <add>, %295, %cst_253 [0] : vector<2x84xf32> to vector<84xf32>
    %297 = vector.shape_cast %296 : vector<84xf32> to vector<1x84xf32>
    %cst_254 = arith.constant 2.000000e+00 : f32
    %298 = vector.broadcast %cst_254 : f32 to vector<1x84xf32>
    %299 = arith.divf %297, %298 : vector<1x84xf32>
    %300 = vector.broadcast %292 : vector<1x84xf32> to vector<2x84xf32>
    %301 = arith.subf %286, %300 : vector<2x84xf32>
    %cst_255 = arith.constant 9.99999974E-6 : f32
    %302 = vector.broadcast %cst_255 : f32 to vector<1x84xf32>
    %303 = arith.addf %299, %302 : vector<1x84xf32>
    %304 = math.rsqrt %303 : vector<1x84xf32>
    %305 = vector.broadcast %304 : vector<1x84xf32> to vector<2x84xf32>
    %306 = arith.mulf %301, %305 : vector<2x84xf32>
    %307 = vector.broadcast %287 : vector<1x84xf32> to vector<2x84xf32>
    %308 = arith.mulf %306, %307 : vector<2x84xf32>
    %309 = vector.broadcast %288 : vector<1x84xf32> to vector<2x84xf32>
    %310 = arith.addf %308, %309 : vector<2x84xf32>
    %cst_256 = arith.constant 0.000000e+00 : f32
    %311 = vector.broadcast %cst_256 : f32 to vector<2x84xf32>
    %312 = arith.maximumf %310, %311 : vector<2x84xf32>
    %c0_257 = arith.constant 0 : index
    %c0_258 = arith.constant 0 : index
    %313 = vector.load %arg14[%c0_257, %c0_258] : memref<84x10xf32, #tpu.memory_space<vmem>>, vector<84x10xf32>
    %cst_259 = arith.constant dense<0.000000e+00> : vector<2x10xf32>
    %314 = tpu.matmul %312, %313, %cst_259 {dimension_numbers = #tpu.dot_dimension_numbers<[1], [0], [0], [1], [0, 0, 1, 1], [], []>} : vector<2x84xf32>, vector<84x10xf32>, vector<2x10xf32> -> vector<2x10xf32>
    %c0_260 = arith.constant 0 : index
    %c0_261 = arith.constant 0 : index
    %315 = vector.load %arg15[%c0_260, %c0_261] : memref<1x10xf32, #tpu.memory_space<vmem>>, vector<1x10xf32>
    %316 = vector.broadcast %315 : vector<1x10xf32> to vector<2x10xf32>
    %317 = arith.addf %314, %316 : vector<2x10xf32>
    %c0_262 = arith.constant 0 : index
    %c0_263 = arith.constant 0 : index
    %318 = vector.load %arg16[%c0_262, %c0_263] : memref<2x10xf32, #tpu.memory_space<vmem>>, vector<2x10xf32>
    tpu.vector_store %arg16[%c0_262, %c0_263], %317 {strides = array<i32>} : memref<2x10xf32, #tpu.memory_space<vmem>>, vector<2x10xf32>,
    return
  }
}

</mosaic_0001>

<llo_original>
// kernel: cnn_forward.1
$region0: #{cnn_forward.1}
  #allocation0 [shape = 'u32[]', space=smem, size = 0x4, offset = 0x4, fixed_abs, tag = 'smem constant byte address 0x4 - core index']
  #allocation1 [shape = 'u32[72,128]{1,0:T(1,128)}', space=vmem, size = 0x9000, scoped, tag = 'internal scratch']
  #allocation2 [shape = 'f32[28,112]{1,0:T(8,128)}', space=vmem, size = 0x4000, scoped, tag = 'scratch operand']
  #allocation3 [shape = 'f32[2,400]{1,0:T(2,128)}', space=vmem, size = 0x1000, scoped, tag = 'scratch operand']
  %s0 = inlined_call_operand.vmem [shape: f32[32,96], index: 0, kind: input, shape index: {}]
  %s1 = inlined_call_operand.vmem [shape: f32[32,96], index: 1, kind: input, shape index: {}]
  %s2 = inlined_call_operand.vmem [shape: f32[5,96,224], index: 2, kind: input, shape index: {}]
  %s3 = inlined_call_operand.vmem [shape: f32[1,112], index: 3, kind: input, shape index: {}]
  %s4 = inlined_call_operand.vmem [shape: f32[5,112,160], index: 4, kind: input, shape index: {}]
  %s5 = inlined_call_operand.vmem [shape: f32[1,80], index: 5, kind: input, shape index: {}]
  %s6 = inlined_call_operand.vmem [shape: f32[400,120], index: 6, kind: input, shape index: {}]
  %s7 = inlined_call_operand.vmem [shape: f32[1,120], index: 7, kind: input, shape index: {}]
  %s8 = inlined_call_operand.vmem [shape: f32[1,120], index: 8, kind: input, shape index: {}]
  %s9 = inlined_call_operand.vmem [shape: f32[1,120], index: 9, kind: input, shape index: {}]
  %s10 = inlined_call_operand.vmem [shape: f32[120,84], index: 10, kind: input, shape index: {}]
  %s11 = inlined_call_operand.vmem [shape: f32[1,84], index: 11, kind: input, shape index: {}]
  %s12 = inlined_call_operand.vmem [shape: f32[1,84], index: 12, kind: input, shape index: {}]
  %s13 = inlined_call_operand.vmem [shape: f32[1,84], index: 13, kind: input, shape index: {}]
  %s14 = inlined_call_operand.vmem [shape: f32[84,10], index: 14, kind: input, shape index: {}]
  %s15 = inlined_call_operand.vmem [shape: f32[1,10], index: 15, kind: input, shape index: {}]
  %s16 = inlined_call_operand.hbm [shape: f32[2,10], index: 16, kind: output, shape index: {}]
  %s17 = sld [smem:[#allocation0]]
  $region74: #{cnn_forward.1} parent=0
    _
  %s19 = ssub.s32 1, %s17
  %s20 = scalar_select 0, %s19, %s17
  $region1: #{cnn_forward.1} parent=0
    #allocation4 [shape = 'u8[1024]{0}', space=vmem, size = 0x400, scoped, tag = 'output window, operand 0, single buffered']
    #allocation5 [shape = 's32[1]{0}', space=sflag, size = 0x4, scoped, tag = 'scoped memory for cnn_forward.1']
    %21 = vsyncpa [#allocation5], 0
    // Predicated region
    $region2: #{cnn_forward.1} parent=1 // pred_check
      _
    $region3: #{cnn_forward.1} parent=1 // pred_check_branch
      %23 = sbr.rel (0) target = $region5
    $region4: #{cnn_forward.1} parent=1 // pred_region
      _
    $region5: #{cnn_forward.1} parent=1 // pred_fallthru
      _
    // Predicated region
    $region6: #{cnn_forward.1} parent=1 // pred_check
      _
    $region7: #{cnn_forward.1} parent=1 // pred_check_branch
      %25 = sbr.rel (0) target = $region9
    $region8: #{cnn_forward.1} parent=1 // pred_region
      _
    $region9: #{cnn_forward.1} parent=1 // pred_fallthru
      _
    // Predicated region
    $region10: #{cnn_forward.1} parent=1 // pred_check
      _
    $region11: #{cnn_forward.1} parent=1 // pred_check_branch
      %27 = sbr.rel (0) target = $region13
    $region12: #{cnn_forward.1} parent=1 // pred_region
      _
    $region13: #{cnn_forward.1} parent=1 // pred_fallthru
      _
    // Predicated region
    $region14: #{cnn_forward.1} parent=1 // pred_check
      _
    $region15: #{cnn_forward.1} parent=1 // pred_check_branch
      %29 = sbr.rel (0) target = $region17
    $region16: #{cnn_forward.1} parent=1 // pred_region
      _
    $region17: #{cnn_forward.1} parent=1 // pred_fallthru
      _
    // Predicated region
    $region18: #{cnn_forward.1} parent=1 // pred_check
      _
    $region19: #{cnn_forward.1} parent=1 // pred_check_branch
      %31 = sbr.rel (0) target = $region21
    $region20: #{cnn_forward.1} parent=1 // pred_region
      _
    $region21: #{cnn_forward.1} parent=1 // pred_fallthru
      _
    // Predicated region
    $region22: #{cnn_forward.1} parent=1 // pred_check
      _
    $region23: #{cnn_forward.1} parent=1 // pred_check_branch
      %33 = sbr.rel (0) target = $region25
    $region24: #{cnn_forward.1} parent=1 // pred_region
      _
    $region25: #{cnn_forward.1} parent=1 // pred_fallthru
      _
    // Predicated region
    $region26: #{cnn_forward.1} parent=1 // pred_check
      _
    $region27: #{cnn_forward.1} parent=1 // pred_check_branch
      %35 = sbr.rel (0) target = $region29
    $region28: #{cnn_forward.1} parent=1 // pred_region
      _
    $region29: #{cnn_forward.1} parent=1 // pred_fallthru
      _
    // Predicated region
    $region30: #{cnn_forward.1} parent=1 // pred_check
      _
    $region31: #{cnn_forward.1} parent=1 // pred_check_branch
      %37 = sbr.rel (0) target = $region33
    $region32: #{cnn_forward.1} parent=1 // pred_region
      _
    $region33: #{cnn_forward.1} parent=1 // pred_fallthru
      _
    // Predicated region
    $region34: #{cnn_forward.1} parent=1 // pred_check
      _
    $region35: #{cnn_forward.1} parent=1 // pred_check_branch
      %39 = sbr.rel (0) target = $region37
    $region36: #{cnn_forward.1} parent=1 // pred_region
      _
    $region37: #{cnn_forward.1} parent=1 // pred_fallthru
      _
    // Predicated region
    $region38: #{cnn_forward.1} parent=1 // pred_check
      _
    $region39: #{cnn_forward.1} parent=1 // pred_check_branch
      %41 = sbr.rel (0) target = $region41
    $region40: #{cnn_forward.1} parent=1 // pred_region
      _
    $region41: #{cnn_forward.1} parent=1 // pred_fallthru
      _
    // Predicated region
    $region42: #{cnn_forward.1} parent=1 // pred_check
      _
    $region43: #{cnn_forward.1} parent=1 // pred_check_branch
      %43 = sbr.rel (0) target = $region45
    $region44: #{cnn_forward.1} parent=1 // pred_region
      _
    $region45: #{cnn_forward.1} parent=1 // pred_fallthru
      _
    // Predicated region
    $region46: #{cnn_forward.1} parent=1 // pred_check
      _
    $region47: #{cnn_forward.1} parent=1 // pred_check_branch
      %45 = sbr.rel (0) target = $region49
    $region48: #{cnn_forward.1} parent=1 // pred_region
      _
    $region49: #{cnn_forward.1} parent=1 // pred_fallthru
      _
    // Predicated region
    $region50: #{cnn_forward.1} parent=1 // pred_check
      _
    $region51: #{cnn_forward.1} parent=1 // pred_check_branch
      %47 = sbr.rel (0) target = $region53
    $region52: #{cnn_forward.1} parent=1 // pred_region
      _
    $region53: #{cnn_forward.1} parent=1 // pred_fallthru
      _
    // Predicated region
    $region54: #{cnn_forward.1} parent=1 // pred_check
      _
    $region55: #{cnn_forward.1} parent=1 // pred_check_branch
      %49 = sbr.rel (0) target = $region57
    $region56: #{cnn_forward.1} parent=1 // pred_region
      _
    $region57: #{cnn_forward.1} parent=1 // pred_fallthru
      _
    // Predicated region
    $region58: #{cnn_forward.1} parent=1 // pred_check
      _
    $region59: #{cnn_forward.1} parent=1 // pred_check_branch
      %51 = sbr.rel (0) target = $region61
    $region60: #{cnn_forward.1} parent=1 // pred_region
      _
    $region61: #{cnn_forward.1} parent=1 // pred_fallthru
      _
    // Predicated region
    $region62: #{cnn_forward.1} parent=1 // pred_check
      _
    $region63: #{cnn_forward.1} parent=1 // pred_check_branch
      %53 = sbr.rel (0) target = $region65
    $region64: #{cnn_forward.1} parent=1 // pred_region
      _
    $region65: #{cnn_forward.1} parent=1 // pred_fallthru
      _
    %v54 = vld [vmem:[%s0] sm:$0xff]
    %v55 = vld [vmem:[%s0 + $0x8] sm:$0x3f]
    %v56 = vld [vmem:[%s2] sm:$0xff]
    %v57 = vld [vmem:[%s2 + $0x8] sm:$0xff]
    %v58 = vld [vmem:[%s2 + $0x10] sm:$0xff]
    %v59 = vld [vmem:[%s2 + $0x18] sm:$0xff]
    %v60 = vld [vmem:[%s2 + $0x20] sm:$0xff]
    %v61 = vld [vmem:[%s2 + $0x28] sm:$0xff]
    %v62 = vld [vmem:[%s2 + $0x30] sm:$0xff]
    %v63 = vld [vmem:[%s2 + $0x38] sm:$0xff]
    %v64 = vld [vmem:[%s2 + $0x40] sm:$0xff]
    %v65 = vld [vmem:[%s2 + $0x48] sm:$0xff]
    %v66 = vld [vmem:[%s2 + $0x50] sm:$0xff]
    %v67 = vld [vmem:[%s2 + $0x58] sm:$0xff]
    %v68 = vld [vmem:[%s2 + $0x60] sm:$0xff]
    %v69 = vld [vmem:[%s2 + $0x68] sm:$0xff]
    %v70 = vld [vmem:[%s2 + $0x70] sm:$0xff]
    %v71 = vld [vmem:[%s2 + $0x78] sm:$0xff]
    %v72 = vld [vmem:[%s2 + $0x80] sm:$0xff]
    %v73 = vld [vmem:[%s2 + $0x88] sm:$0xff]
    %v74 = vld [vmem:[%s2 + $0x90] sm:$0xff]
    %v75 = vld [vmem:[%s2 + $0x98] sm:$0xff]
    %v76 = vld [vmem:[%s2 + $0xa0] sm:$0xff]
    %v77 = vld [vmem:[%s2 + $0xa8] sm:$0xff]
    %v78 = vld [vmem:[%s2 + $0xb0] sm:$0xff]
    %v79 = vld [vmem:[%s2 + $0xb8] sm:$0xff]
    %v80 = vld [vmem:[%s1] sm:$0xff]
    %v81 = vld [vmem:[%s1 + $0x8] sm:$0x3f]
    %s82 = scalar_lea.vmem %s2, 192
    %v83 = vld [vmem:[%s82] sm:$0xff]
    %v84 = vld [vmem:[%s82 + $0x8] sm:$0xff]
    %v85 = vld [vmem:[%s82 + $0x10] sm:$0xff]
    %v86 = vld [vmem:[%s82 + $0x18] sm:$0xff]
    %v87 = vld [vmem:[%s82 + $0x20] sm:$0xff]
    %v88 = vld [vmem:[%s82 + $0x28] sm:$0xff]
    %v89 = vld [vmem:[%s82 + $0x30] sm:$0xff]
    %v90 = vld [vmem:[%s82 + $0x38] sm:$0xff]
    %v91 = vld [vmem:[%s82 + $0x40] sm:$0xff]
    %v92 = vld [vmem:[%s82 + $0x48] sm:$0xff]
    %v93 = vld [vmem:[%s82 + $0x50] sm:$0xff]
    %v94 = vld [vmem:[%s82 + $0x58] sm:$0xff]
    %v95 = vld [vmem:[%s82 + $0x60] sm:$0xff]
    %v96 = vld [vmem:[%s82 + $0x68] sm:$0xff]
    %v97 = vld [vmem:[%s82 + $0x70] sm:$0xff]
    %v98 = vld [vmem:[%s82 + $0x78] sm:$0xff]
    %v99 = vld [vmem:[%s82 + $0x80] sm:$0xff]
    %v100 = vld [vmem:[%s82 + $0x88] sm:$0xff]
    %v101 = vld [vmem:[%s82 + $0x90] sm:$0xff]
    %v102 = vld [vmem:[%s82 + $0x98] sm:$0xff]
    %v103 = vld [vmem:[%s82 + $0xa0] sm:$0xff]
    %v104 = vld [vmem:[%s82 + $0xa8] sm:$0xff]
    %v105 = vld [vmem:[%s82 + $0xb0] sm:$0xff]
    %v106 = vld [vmem:[%s82 + $0xb8] sm:$0xff]
    %vm107 = vcmask 785408
    %v109 = vsel %vm107, %v80, 0
    %v112 = vsel %vm107, %v81, 0
    %114 = vmatpush.msra.mxu0 0.0
    %115 = vmatpush.msra.mxu0 0.0
    %116 = vmatpush.msra.mxu0 0.0
    %117 = vmatpush.msra.mxu0 0.0
    %118 = vmatpush.msra.mxu0 %v105
    %119 = vmatpush.msra.mxu0 %v103
    %120 = vmatpush.msra.mxu0 %v101
    %121 = vmatpush.msra.mxu0 %v99
    %122 = vmatpush.msra.mxu0 %v97
    %123 = vmatpush.msra.mxu0 %v95
    %124 = vmatpush.msra.mxu0 %v93
    %125 = vmatpush.msra.mxu0 %v91
    %126 = vmatpush.msra.mxu0 %v89
    %127 = vmatpush.msra.mxu0 %v87
    %128 = vmatpush.msra.mxu0 %v85
    %129 = vmatpush.msra.mxu0 %v83
    %130 = vmatmul.f32.gmra.mxu0 %v109
    %v131 = vpop.f32.mrf.mxu0
    %v132 = vadd.f32 0.0, %v131
    %133 = vmatmul.f32.gmra.mxu0 %v112
    %v134 = vpop.f32.mrf.mxu0
    %v135 = vadd.f32 0.0, %v134
    %136 = vdwg.mxu0
    %137 = vmatpush.msra.mxu0 0.0
    %138 = vmatpush.msra.mxu0 0.0
    %139 = vmatpush.msra.mxu0 0.0
    %140 = vmatpush.msra.mxu0 0.0
    %141 = vmatpush.msra.mxu0 %v106
    %142 = vmatpush.msra.mxu0 %v104
    %143 = vmatpush.msra.mxu0 %v102
    %144 = vmatpush.msra.mxu0 %v100
    %145 = vmatpush.msra.mxu0 %v98
    %146 = vmatpush.msra.mxu0 %v96
    %147 = vmatpush.msra.mxu0 %v94
    %148 = vmatpush.msra.mxu0 %v92
    %149 = vmatpush.msra.mxu0 %v90
    %150 = vmatpush.msra.mxu0 %v88
    %151 = vmatpush.msra.mxu0 %v86
    %152 = vmatpush.msra.mxu0 %v84
    %153 = vmatmul.f32.gmra.mxu0 %v109
    %v154 = vpop.f32.mrf.mxu0
    %v155 = vadd.f32 0.0, %v154
    %156 = vmatmul.f32.gmra.mxu0 %v112
    %v157 = vpop.f32.mrf.mxu0
    %v158 = vadd.f32 0.0, %v157
    %159 = vdwg.mxu0
    %v161 = vsel %vm107, %v54, 0
    %v164 = vsel %vm107, %v55, 0
    %166 = vmatpush.msra.mxu0 0.0
    %167 = vmatpush.msra.mxu0 0.0
    %168 = vmatpush.msra.mxu0 0.0
    %169 = vmatpush.msra.mxu0 0.0
    %170 = vmatpush.msra.mxu0 %v78
    %171 = vmatpush.msra.mxu0 %v76
    %172 = vmatpush.msra.mxu0 %v74
    %173 = vmatpush.msra.mxu0 %v72
    %174 = vmatpush.msra.mxu0 %v70
    %175 = vmatpush.msra.mxu0 %v68
    %176 = vmatpush.msra.mxu0 %v66
    %177 = vmatpush.msra.mxu0 %v64
    %178 = vmatpush.msra.mxu0 %v62
    %179 = vmatpush.msra.mxu0 %v60
    %180 = vmatpush.msra.mxu0 %v58
    %181 = vmatpush.msra.mxu0 %v56
    %182 = vmatmul.f32.gmra.mxu0 %v161
    %v183 = vpop.f32.mrf.mxu0
    %v184 = vadd.f32 %v132, %v183
    %185 = vmatmul.f32.gmra.mxu0 %v164
    %v186 = vpop.f32.mrf.mxu0
    %v187 = vadd.f32 %v135, %v186
    %188 = vdwg.mxu0
    %189 = vmatpush.msra.mxu0 0.0
    %190 = vmatpush.msra.mxu0 0.0
    %191 = vmatpush.msra.mxu0 0.0
    %192 = vmatpush.msra.mxu0 0.0
    %193 = vmatpush.msra.mxu0 %v79
    %194 = vmatpush.msra.mxu0 %v77
    %195 = vmatpush.msra.mxu0 %v75
    %196 = vmatpush.msra.mxu0 %v73
    %197 = vmatpush.msra.mxu0 %v71
    %198 = vmatpush.msra.mxu0 %v69
    %199 = vmatpush.msra.mxu0 %v67
    %200 = vmatpush.msra.mxu0 %v65
    %201 = vmatpush.msra.mxu0 %v63
    %202 = vmatpush.msra.mxu0 %v61
    %203 = vmatpush.msra.mxu0 %v59
    %204 = vmatpush.msra.mxu0 %v57
    %205 = vmatmul.f32.gmra.mxu0 %v161
    %v206 = vpop.f32.mrf.mxu0
    %v207 = vadd.f32 %v155, %v206
    %208 = vmatmul.f32.gmra.mxu0 %v164
    %v209 = vpop.f32.mrf.mxu0
    %v210 = vadd.f32 %v158, %v209
    %211 = vdwg.mxu0
    %v212 = vld [vmem:[%s0 + $0x1] sm:$0xff]
    %v213 = vld [vmem:[%s0 + $0x9] sm:$0x3f]
    %s214 = scalar_lea.vmem %s2, 384
    %v215 = vld [vmem:[%s214] sm:$0xff]
    %v216 = vld [vmem:[%s214 + $0x8] sm:$0xff]
    %v217 = vld [vmem:[%s214 + $0x10] sm:$0xff]
    %v218 = vld [vmem:[%s214 + $0x18] sm:$0xff]
    %v219 = vld [vmem:[%s214 + $0x20] sm:$0xff]
    %v220 = vld [vmem:[%s214 + $0x28] sm:$0xff]
    %v221 = vld [vmem:[%s214 + $0x30] sm:$0xff]
    %v222 = vld [vmem:[%s214 + $0x38] sm:$0xff]
    %v223 = vld [vmem:[%s214 + $0x40] sm:$0xff]
    %v224 = vld [vmem:[%s214 + $0x48] sm:$0xff]
    %v225 = vld [vmem:[%s214 + $0x50] sm:$0xff]
    %v226 = vld [vmem:[%s214 + $0x58] sm:$0xff]
    %v227 = vld [vmem:[%s214 + $0x60] sm:$0xff]
    %v228 = vld [vmem:[%s214 + $0x68] sm:$0xff]
    %v229 = vld [vmem:[%s214 + $0x70] sm:$0xff]
    %v230 = vld [vmem:[%s214 + $0x78] sm:$0xff]
    %v231 = vld [vmem:[%s214 + $0x80] sm:$0xff]
    %v232 = vld [vmem:[%s214 + $0x88] sm:$0xff]
    %v233 = vld [vmem:[%s214 + $0x90] sm:$0xff]
    %v234 = vld [vmem:[%s214 + $0x98] sm:$0xff]
    %v235 = vld [vmem:[%s214 + $0xa0] sm:$0xff]
    %v236 = vld [vmem:[%s214 + $0xa8] sm:$0xff]
    %v237 = vld [vmem:[%s214 + $0xb0] sm:$0xff]
    %v238 = vld [vmem:[%s214 + $0xb8] sm:$0xff]
    %v240 = vsel %vm107, %v212, 0
    %v243 = vsel %vm107, %v213, 0
    %245 = vmatpush.msra.mxu0 0.0
    %246 = vmatpush.msra.mxu0 0.0
    %247 = vmatpush.msra.mxu0 0.0
    %248 = vmatpush.msra.mxu0 0.0
    %249 = vmatpush.msra.mxu0 %v237
    %250 = vmatpush.msra.mxu0 %v235
    %251 = vmatpush.msra.mxu0 %v233
    %252 = vmatpush.msra.mxu0 %v231
    %253 = vmatpush.msra.mxu0 %v229
    %254 = vmatpush.msra.mxu0 %v227
    %255 = vmatpush.msra.mxu0 %v225
    %256 = vmatpush.msra.mxu0 %v223
    %257 = vmatpush.msra.mxu0 %v221
    %258 = vmatpush.msra.mxu0 %v219
    %259 = vmatpush.msra.mxu0 %v217
    %260 = vmatpush.msra.mxu0 %v215
    %261 = vmatmul.f32.gmra.mxu0 %v240
    %v262 = vpop.f32.mrf.mxu0
    %v263 = vadd.f32 0.0, %v262
    %264 = vmatmul.f32.gmra.mxu0 %v243
    %v265 = vpop.f32.mrf.mxu0
    %v266 = vadd.f32 0.0, %v265
    %267 = vdwg.mxu0
    %268 = vmatpush.msra.mxu0 0.0
    %269 = vmatpush.msra.mxu0 0.0
    %270 = vmatpush.msra.mxu0 0.0
    %271 = vmatpush.msra.mxu0 0.0
    %272 = vmatpush.msra.mxu0 %v238
    %273 = vmatpush.msra.mxu0 %v236
    %274 = vmatpush.msra.mxu0 %v234
    %275 = vmatpush.msra.mxu0 %v232
    %276 = vmatpush.msra.mxu0 %v230
    %277 = vmatpush.msra.mxu0 %v228
    %278 = vmatpush.msra.mxu0 %v226
    %279 = vmatpush.msra.mxu0 %v224
    %280 = vmatpush.msra.mxu0 %v222
    %281 = vmatpush.msra.mxu0 %v220
    %282 = vmatpush.msra.mxu0 %v218
    %283 = vmatpush.msra.mxu0 %v216
    %284 = vmatmul.f32.gmra.mxu0 %v240
    %v285 = vpop.f32.mrf.mxu0
    %v286 = vadd.f32 0.0, %v285
    %287 = vmatmul.f32.gmra.mxu0 %v243
    %v288 = vpop.f32.mrf.mxu0
    %v289 = vadd.f32 0.0, %v288
    %290 = vdwg.mxu0
    %v291 = vadd.f32 %v184, %v263
    %v292 = vadd.f32 %v207, %v286
    %v293 = vadd.f32 %v187, %v266
    %v294 = vadd.f32 %v210, %v289
    %v295 = vld [vmem:[%s1 + $0x1] sm:$0xff]
    %v296 = vld [vmem:[%s1 + $0x9] sm:$0x3f]
    %s297 = scalar_lea.vmem %s2, 576
    %v298 = vld [vmem:[%s297] sm:$0xff]
    %v299 = vld [vmem:[%s297 + $0x8] sm:$0xff]
    %v300 = vld [vmem:[%s297 + $0x10] sm:$0xff]
    %v301 = vld [vmem:[%s297 + $0x18] sm:$0xff]
    %v302 = vld [vmem:[%s297 + $0x20] sm:$0xff]
    %v303 = vld [vmem:[%s297 + $0x28] sm:$0xff]
    %v304 = vld [vmem:[%s297 + $0x30] sm:$0xff]
    %v305 = vld [vmem:[%s297 + $0x38] sm:$0xff]
    %v306 = vld [vmem:[%s297 + $0x40] sm:$0xff]
    %v307 = vld [vmem:[%s297 + $0x48] sm:$0xff]
    %v308 = vld [vmem:[%s297 + $0x50] sm:$0xff]
    %v309 = vld [vmem:[%s297 + $0x58] sm:$0xff]
    %v310 = vld [vmem:[%s297 + $0x60] sm:$0xff]
    %v311 = vld [vmem:[%s297 + $0x68] sm:$0xff]
    %v312 = vld [vmem:[%s297 + $0x70] sm:$0xff]
    %v313 = vld [vmem:[%s297 + $0x78] sm:$0xff]
    %v314 = vld [vmem:[%s297 + $0x80] sm:$0xff]
    %v315 = vld [vmem:[%s297 + $0x88] sm:$0xff]
    %v316 = vld [vmem:[%s297 + $0x90] sm:$0xff]
    %v317 = vld [vmem:[%s297 + $0x98] sm:$0xff]
    %v318 = vld [vmem:[%s297 + $0xa0] sm:$0xff]
    %v319 = vld [vmem:[%s297 + $0xa8] sm:$0xff]
    %v320 = vld [vmem:[%s297 + $0xb0] sm:$0xff]
    %v321 = vld [vmem:[%s297 + $0xb8] sm:$0xff]
    %v323 = vsel %vm107, %v295, 0
    %v326 = vsel %vm107, %v296, 0
    %328 = vmatpush.msra.mxu0 0.0
    %329 = vmatpush.msra.mxu0 0.0
    %330 = vmatpush.msra.mxu0 0.0
    %331 = vmatpush.msra.mxu0 0.0
    %332 = vmatpush.msra.mxu0 %v320
    %333 = vmatpush.msra.mxu0 %v318
    %334 = vmatpush.msra.mxu0 %v316
    %335 = vmatpush.msra.mxu0 %v314
    %336 = vmatpush.msra.mxu0 %v312
    %337 = vmatpush.msra.mxu0 %v310
    %338 = vmatpush.msra.mxu0 %v308
    %339 = vmatpush.msra.mxu0 %v306
    %340 = vmatpush.msra.mxu0 %v304
    %341 = vmatpush.msra.mxu0 %v302
    %342 = vmatpush.msra.mxu0 %v300
    %343 = vmatpush.msra.mxu0 %v298
    %344 = vmatmul.f32.gmra.mxu0 %v323
    %v345 = vpop.f32.mrf.mxu0
    %v346 = vadd.f32 0.0, %v345
    %347 = vmatmul.f32.gmra.mxu0 %v326
    %v348 = vpop.f32.mrf.mxu0
    %v349 = vadd.f32 0.0, %v348
    %350 = vdwg.mxu0
    %351 = vmatpush.msra.mxu0 0.0
    %352 = vmatpush.msra.mxu0 0.0
    %353 = vmatpush.msra.mxu0 0.0
    %354 = vmatpush.msra.mxu0 0.0
    %355 = vmatpush.msra.mxu0 %v321
    %356 = vmatpush.msra.mxu0 %v319
    %357 = vmatpush.msra.mxu0 %v317
    %358 = vmatpush.msra.mxu0 %v315
    %359 = vmatpush.msra.mxu0 %v313
    %360 = vmatpush.msra.mxu0 %v311
    %361 = vmatpush.msra.mxu0 %v309
    %362 = vmatpush.msra.mxu0 %v307
    %363 = vmatpush.msra.mxu0 %v305
    %364 = vmatpush.msra.mxu0 %v303
    %365 = vmatpush.msra.mxu0 %v301
    %366 = vmatpush.msra.mxu0 %v299
    %367 = vmatmul.f32.gmra.mxu0 %v323
    %v368 = vpop.f32.mrf.mxu0
    %v369 = vadd.f32 0.0, %v368
    %370 = vmatmul.f32.gmra.mxu0 %v326
    %v371 = vpop.f32.mrf.mxu0
    %v372 = vadd.f32 0.0, %v371
    %373 = vdwg.mxu0
    %v374 = vadd.f32 %v291, %v346
    %v375 = vadd.f32 %v292, %v369
    %v376 = vadd.f32 %v293, %v349
    %v377 = vadd.f32 %v294, %v372
    %v378 = vld [vmem:[%s0 + $0x2] sm:$0xff]
    %v379 = vld [vmem:[%s0 + $0xa] sm:$0x3f]
    %s380 = scalar_lea.vmem %s2, 768
    %v381 = vld [vmem:[%s380] sm:$0xff]
    %v382 = vld [vmem:[%s380 + $0x8] sm:$0xff]
    %v383 = vld [vmem:[%s380 + $0x10] sm:$0xff]
    %v384 = vld [vmem:[%s380 + $0x18] sm:$0xff]
    %v385 = vld [vmem:[%s380 + $0x20] sm:$0xff]
    %v386 = vld [vmem:[%s380 + $0x28] sm:$0xff]
    %v387 = vld [vmem:[%s380 + $0x30] sm:$0xff]
    %v388 = vld [vmem:[%s380 + $0x38] sm:$0xff]
    %v389 = vld [vmem:[%s380 + $0x40] sm:$0xff]
    %v390 = vld [vmem:[%s380 + $0x48] sm:$0xff]
    %v391 = vld [vmem:[%s380 + $0x50] sm:$0xff]
    %v392 = vld [vmem:[%s380 + $0x58] sm:$0xff]
    %v393 = vld [vmem:[%s380 + $0x60] sm:$0xff]
    %v394 = vld [vmem:[%s380 + $0x68] sm:$0xff]
    %v395 = vld [vmem:[%s380 + $0x70] sm:$0xff]
    %v396 = vld [vmem:[%s380 + $0x78] sm:$0xff]
    %v397 = vld [vmem:[%s380 + $0x80] sm:$0xff]
    %v398 = vld [vmem:[%s380 + $0x88] sm:$0xff]
    %v399 = vld [vmem:[%s380 + $0x90] sm:$0xff]
    %v400 = vld [vmem:[%s380 + $0x98] sm:$0xff]
    %v401 = vld [vmem:[%s380 + $0xa0] sm:$0xff]
    %v402 = vld [vmem:[%s380 + $0xa8] sm:$0xff]
    %v403 = vld [vmem:[%s380 + $0xb0] sm:$0xff]
    %v404 = vld [vmem:[%s380 + $0xb8] sm:$0xff]
    %v406 = vsel %vm107, %v378, 0
    %v409 = vsel %vm107, %v379, 0
    %411 = vmatpush.msra.mxu0 0.0
    %412 = vmatpush.msra.mxu0 0.0
    %413 = vmatpush.msra.mxu0 0.0
    %414 = vmatpush.msra.mxu0 0.0
    %415 = vmatpush.msra.mxu0 %v403
    %416 = vmatpush.msra.mxu0 %v401
    %417 = vmatpush.msra.mxu0 %v399
    %418 = vmatpush.msra.mxu0 %v397
    %419 = vmatpush.msra.mxu0 %v395
    %420 = vmatpush.msra.mxu0 %v393
    %421 = vmatpush.msra.mxu0 %v391
    %422 = vmatpush.msra.mxu0 %v389
    %423 = vmatpush.msra.mxu0 %v387
    %424 = vmatpush.msra.mxu0 %v385
    %425 = vmatpush.msra.mxu0 %v383
    %426 = vmatpush.msra.mxu0 %v381
    %427 = vmatmul.f32.gmra.mxu0 %v406
    %v428 = vpop.f32.mrf.mxu0
    %v429 = vadd.f32 0.0, %v428
    %430 = vmatmul.f32.gmra.mxu0 %v409
    %v431 = vpop.f32.mrf.mxu0
    %v432 = vadd.f32 0.0, %v431
    %433 = vdwg.mxu0
    %434 = vmatpush.msra.mxu0 0.0
    %435 = vmatpush.msra.mxu0 0.0
    %436 = vmatpush.msra.mxu0 0.0
    %437 = vmatpush.msra.mxu0 0.0
    %438 = vmatpush.msra.mxu0 %v404
    %439 = vmatpush.msra.mxu0 %v402
    %440 = vmatpush.msra.mxu0 %v400
    %441 = vmatpush.msra.mxu0 %v398
    %442 = vmatpush.msra.mxu0 %v396
    %443 = vmatpush.msra.mxu0 %v394
    %444 = vmatpush.msra.mxu0 %v392
    %445 = vmatpush.msra.mxu0 %v390
    %446 = vmatpush.msra.mxu0 %v388
    %447 = vmatpush.msra.mxu0 %v386
    %448 = vmatpush.msra.mxu0 %v384
    %449 = vmatpush.msra.mxu0 %v382
    %450 = vmatmul.f32.gmra.mxu0 %v406
    %v451 = vpop.f32.mrf.mxu0
    %v452 = vadd.f32 0.0, %v451
    %453 = vmatmul.f32.gmra.mxu0 %v409
    %v454 = vpop.f32.mrf.mxu0
    %v455 = vadd.f32 0.0, %v454
    %456 = vdwg.mxu0
    %v457 = vadd.f32 %v374, %v429
    %v458 = vadd.f32 %v375, %v452
    %v459 = vadd.f32 %v376, %v432
    %v460 = vadd.f32 %v377, %v455
    %461 = vmatpush.msra.mxu0 0.0
    %462 = vmatpush.msra.mxu0 0.0
    %463 = vmatpush.msra.mxu0 0.0
    %464 = vmatpush.msra.mxu0 0.0
    %465 = vmatpush.msra.mxu0 %v105
    %466 = vmatpush.msra.mxu0 %v103
    %467 = vmatpush.msra.mxu0 %v101
    %468 = vmatpush.msra.mxu0 %v99
    %469 = vmatpush.msra.mxu0 %v97
    %470 = vmatpush.msra.mxu0 %v95
    %471 = vmatpush.msra.mxu0 %v93
    %472 = vmatpush.msra.mxu0 %v91
    %473 = vmatpush.msra.mxu0 %v89
    %474 = vmatpush.msra.mxu0 %v87
    %475 = vmatpush.msra.mxu0 %v85
    %476 = vmatpush.msra.mxu0 %v83
    %477 = vmatmul.f32.gmra.mxu0 %v240
    %v478 = vpop.f32.mrf.mxu0
    %v479 = vadd.f32 0.0, %v478
    %480 = vmatmul.f32.gmra.mxu0 %v243
    %v481 = vpop.f32.mrf.mxu0
    %v482 = vadd.f32 0.0, %v481
    %483 = vdwg.mxu0
    %484 = vmatpush.msra.mxu0 0.0
    %485 = vmatpush.msra.mxu0 0.0
    %486 = vmatpush.msra.mxu0 0.0
    %487 = vmatpush.msra.mxu0 0.0
    %488 = vmatpush.msra.mxu0 %v106
    %489 = vmatpush.msra.mxu0 %v104
    %490 = vmatpush.msra.mxu0 %v102
    %491 = vmatpush.msra.mxu0 %v100
    %492 = vmatpush.msra.mxu0 %v98
    %493 = vmatpush.msra.mxu0 %v96
    %494 = vmatpush.msra.mxu0 %v94
    %495 = vmatpush.msra.mxu0 %v92
    %496 = vmatpush.msra.mxu0 %v90
    %497 = vmatpush.msra.mxu0 %v88
    %498 = vmatpush.msra.mxu0 %v86
    %499 = vmatpush.msra.mxu0 %v84
    %500 = vmatmul.f32.gmra.mxu0 %v240
    %v501 = vpop.f32.mrf.mxu0
    %v502 = vadd.f32 0.0, %v501
    %503 = vmatmul.f32.gmra.mxu0 %v243
    %v504 = vpop.f32.mrf.mxu0
    %v505 = vadd.f32 0.0, %v504
    %506 = vdwg.mxu0
    %507 = vmatpush.msra.mxu0 0.0
    %508 = vmatpush.msra.mxu0 0.0
    %509 = vmatpush.msra.mxu0 0.0
    %510 = vmatpush.msra.mxu0 0.0
    %511 = vmatpush.msra.mxu0 %v78
    %512 = vmatpush.msra.mxu0 %v76
    %513 = vmatpush.msra.mxu0 %v74
    %514 = vmatpush.msra.mxu0 %v72
    %515 = vmatpush.msra.mxu0 %v70
    %516 = vmatpush.msra.mxu0 %v68
    %517 = vmatpush.msra.mxu0 %v66
    %518 = vmatpush.msra.mxu0 %v64
    %519 = vmatpush.msra.mxu0 %v62
    %520 = vmatpush.msra.mxu0 %v60
    %521 = vmatpush.msra.mxu0 %v58
    %522 = vmatpush.msra.mxu0 %v56
    %523 = vmatmul.f32.gmra.mxu0 %v109
    %v524 = vpop.f32.mrf.mxu0
    %v525 = vadd.f32 %v479, %v524
    %526 = vmatmul.f32.gmra.mxu0 %v112
    %v527 = vpop.f32.mrf.mxu0
    %v528 = vadd.f32 %v482, %v527
    %529 = vdwg.mxu0
    %530 = vmatpush.msra.mxu0 0.0
    %531 = vmatpush.msra.mxu0 0.0
    %532 = vmatpush.msra.mxu0 0.0
    %533 = vmatpush.msra.mxu0 0.0
    %534 = vmatpush.msra.mxu0 %v79
    %535 = vmatpush.msra.mxu0 %v77
    %536 = vmatpush.msra.mxu0 %v75
    %537 = vmatpush.msra.mxu0 %v73
    %538 = vmatpush.msra.mxu0 %v71
    %539 = vmatpush.msra.mxu0 %v69
    %540 = vmatpush.msra.mxu0 %v67
    %541 = vmatpush.msra.mxu0 %v65
    %542 = vmatpush.msra.mxu0 %v63
    %543 = vmatpush.msra.mxu0 %v61
    %544 = vmatpush.msra.mxu0 %v59
    %545 = vmatpush.msra.mxu0 %v57
    %546 = vmatmul.f32.gmra.mxu0 %v109
    %v547 = vpop.f32.mrf.mxu0
    %v548 = vadd.f32 %v502, %v547
    %549 = vmatmul.f32.gmra.mxu0 %v112
    %v550 = vpop.f32.mrf.mxu0
    %v551 = vadd.f32 %v505, %v550
    %552 = vdwg.mxu0
    %553 = vmatpush.msra.mxu0 0.0
    %554 = vmatpush.msra.mxu0 0.0
    %555 = vmatpush.msra.mxu0 0.0
    %556 = vmatpush.msra.mxu0 0.0
    %557 = vmatpush.msra.mxu0 %v237
    %558 = vmatpush.msra.mxu0 %v235
    %559 = vmatpush.msra.mxu0 %v233
    %560 = vmatpush.msra.mxu0 %v231
    %561 = vmatpush.msra.mxu0 %v229
    %562 = vmatpush.msra.mxu0 %v227
    %563 = vmatpush.msra.mxu0 %v225
    %564 = vmatpush.msra.mxu0 %v223
    %565 = vmatpush.msra.mxu0 %v221
    %566 = vmatpush.msra.mxu0 %v219
    %567 = vmatpush.msra.mxu0 %v217
    %568 = vmatpush.msra.mxu0 %v215
    %569 = vmatmul.f32.gmra.mxu0 %v323
    %v570 = vpop.f32.mrf.mxu0
    %v571 = vadd.f32 0.0, %v570
    %572 = vmatmul.f32.gmra.mxu0 %v326
    %v573 = vpop.f32.mrf.mxu0
    %v574 = vadd.f32 0.0, %v573
    %575 = vdwg.mxu0
    %576 = vmatpush.msra.mxu0 0.0
    %577 = vmatpush.msra.mxu0 0.0
    %578 = vmatpush.msra.mxu0 0.0
    %579 = vmatpush.msra.mxu0 0.0
    %580 = vmatpush.msra.mxu0 %v238
    %581 = vmatpush.msra.mxu0 %v236
    %582 = vmatpush.msra.mxu0 %v234
    %583 = vmatpush.msra.mxu0 %v232
    %584 = vmatpush.msra.mxu0 %v230
    %585 = vmatpush.msra.mxu0 %v228
    %586 = vmatpush.msra.mxu0 %v226
    %587 = vmatpush.msra.mxu0 %v224
    %588 = vmatpush.msra.mxu0 %v222
    %589 = vmatpush.msra.mxu0 %v220
    %590 = vmatpush.msra.mxu0 %v218
    %591 = vmatpush.msra.mxu0 %v216
    %592 = vmatmul.f32.gmra.mxu0 %v323
    %v593 = vpop.f32.mrf.mxu0
    %v594 = vadd.f32 0.0, %v593
    %595 = vmatmul.f32.gmra.mxu0 %v326
    %v596 = vpop.f32.mrf.mxu0
    %v597 = vadd.f32 0.0, %v596
    %598 = vdwg.mxu0
    %v599 = vadd.f32 %v525, %v571
    %v600 = vadd.f32 %v548, %v594
    %v601 = vadd.f32 %v528, %v574
    %v602 = vadd.f32 %v551, %v597
    %603 = vmatpush.msra.mxu0 0.0
    %604 = vmatpush.msra.mxu0 0.0
    %605 = vmatpush.msra.mxu0 0.0
    %606 = vmatpush.msra.mxu0 0.0
    %607 = vmatpush.msra.mxu0 %v320
    %608 = vmatpush.msra.mxu0 %v318
    %609 = vmatpush.msra.mxu0 %v316
    %610 = vmatpush.msra.mxu0 %v314
    %611 = vmatpush.msra.mxu0 %v312
    %612 = vmatpush.msra.mxu0 %v310
    %613 = vmatpush.msra.mxu0 %v308
    %614 = vmatpush.msra.mxu0 %v306
    %615 = vmatpush.msra.mxu0 %v304
    %616 = vmatpush.msra.mxu0 %v302
    %617 = vmatpush.msra.mxu0 %v300
    %618 = vmatpush.msra.mxu0 %v298
    %619 = vmatmul.f32.gmra.mxu0 %v406
    %v620 = vpop.f32.mrf.mxu0
    %v621 = vadd.f32 0.0, %v620
    %622 = vmatmul.f32.gmra.mxu0 %v409
    %v623 = vpop.f32.mrf.mxu0
    %v624 = vadd.f32 0.0, %v623
    %625 = vdwg.mxu0
    %626 = vmatpush.msra.mxu0 0.0
    %627 = vmatpush.msra.mxu0 0.0
    %628 = vmatpush.msra.mxu0 0.0
    %629 = vmatpush.msra.mxu0 0.0
    %630 = vmatpush.msra.mxu0 %v321
    %631 = vmatpush.msra.mxu0 %v319
    %632 = vmatpush.msra.mxu0 %v317
    %633 = vmatpush.msra.mxu0 %v315
    %634 = vmatpush.msra.mxu0 %v313
    %635 = vmatpush.msra.mxu0 %v311
    %636 = vmatpush.msra.mxu0 %v309
    %637 = vmatpush.msra.mxu0 %v307
    %638 = vmatpush.msra.mxu0 %v305
    %639 = vmatpush.msra.mxu0 %v303
    %640 = vmatpush.msra.mxu0 %v301
    %641 = vmatpush.msra.mxu0 %v299
    %642 = vmatmul.f32.gmra.mxu0 %v406
    %v643 = vpop.f32.mrf.mxu0
    %v644 = vadd.f32 0.0, %v643
    %645 = vmatmul.f32.gmra.mxu0 %v409
    %v646 = vpop.f32.mrf.mxu0
    %v647 = vadd.f32 0.0, %v646
    %648 = vdwg.mxu0
    %v649 = vadd.f32 %v599, %v621
    %v650 = vadd.f32 %v600, %v644
    %v651 = vadd.f32 %v601, %v624
    %v652 = vadd.f32 %v602, %v647
    %v653 = vld [vmem:[%s1 + $0x2] sm:$0xff]
    %v654 = vld [vmem:[%s1 + $0xa] sm:$0x3f]
    %v656 = vsel %vm107, %v653, 0
    %v659 = vsel %vm107, %v654, 0
    %661 = vmatpush.msra.mxu0 0.0
    %662 = vmatpush.msra.mxu0 0.0
    %663 = vmatpush.msra.mxu0 0.0
    %664 = vmatpush.msra.mxu0 0.0
    %665 = vmatpush.msra.mxu0 %v403
    %666 = vmatpush.msra.mxu0 %v401
    %667 = vmatpush.msra.mxu0 %v399
    %668 = vmatpush.msra.mxu0 %v397
    %669 = vmatpush.msra.mxu0 %v395
    %670 = vmatpush.msra.mxu0 %v393
    %671 = vmatpush.msra.mxu0 %v391
    %672 = vmatpush.msra.mxu0 %v389
    %673 = vmatpush.msra.mxu0 %v387
    %674 = vmatpush.msra.mxu0 %v385
    %675 = vmatpush.msra.mxu0 %v383
    %676 = vmatpush.msra.mxu0 %v381
    %677 = vmatmul.f32.gmra.mxu0 %v656
    %v678 = vpop.f32.mrf.mxu0
    %v679 = vadd.f32 0.0, %v678
    %680 = vmatmul.f32.gmra.mxu0 %v659
    %v681 = vpop.f32.mrf.mxu0
    %v682 = vadd.f32 0.0, %v681
    %683 = vdwg.mxu0
    %684 = vmatpush.msra.mxu0 0.0
    %685 = vmatpush.msra.mxu0 0.0
    %686 = vmatpush.msra.mxu0 0.0
    %687 = vmatpush.msra.mxu0 0.0
    %688 = vmatpush.msra.mxu0 %v404
    %689 = vmatpush.msra.mxu0 %v402
    %690 = vmatpush.msra.mxu0 %v400
    %691 = vmatpush.msra.mxu0 %v398
    %692 = vmatpush.msra.mxu0 %v396
    %693 = vmatpush.msra.mxu0 %v394
    %694 = vmatpush.msra.mxu0 %v392
    %695 = vmatpush.msra.mxu0 %v390
    %696 = vmatpush.msra.mxu0 %v388
    %697 = vmatpush.msra.mxu0 %v386
    %698 = vmatpush.msra.mxu0 %v384
    %699 = vmatpush.msra.mxu0 %v382
    %700 = vmatmul.f32.gmra.mxu0 %v656
    %v701 = vpop.f32.mrf.mxu0
    %v702 = vadd.f32 0.0, %v701
    %703 = vmatmul.f32.gmra.mxu0 %v659
    %v704 = vpop.f32.mrf.mxu0
    %v705 = vadd.f32 0.0, %v704
    %706 = vdwg.mxu0
    %v707 = vadd.f32 %v649, %v679
    %v708 = vadd.f32 %v650, %v702
    %v709 = vadd.f32 %v651, %v682
    %v710 = vadd.f32 %v652, %v705
    %v711 = vmax.f32 %v457, %v707
    %v712 = vmax.f32 %v458, %v708
    %v713 = vmax.f32 %v459, %v709
    %v714 = vmax.f32 %v460, %v710
    %719 = vrot.lane.b32.xlu0 %v711, 16
    %v720 = vpop.permute.xlu0 %719
    %721 = vrot.lane.b32.xlu0 %v712, 16
    %v722 = vpop.permute.xlu0 %721
    %723 = vrot.lane.b32.xlu0 %v713, 16
    %v724 = vpop.permute.xlu0 %723
    %725 = vrot.lane.b32.xlu0 %v714, 16
    %v726 = vpop.permute.xlu0 %725
    %vm727 = vcmask 130048
    %v728 = vsel %vm727, %v720, %v722
    %v729 = vsel %vm727, %v724, %v726
    %v732 = vmax.f32 %v711, %v728
    %v733 = vmax.f32 %v713, %v729
    %v734 = vld [vmem:[%s3] sm:$0x1]
    %v736 = vperm.slane %v734, 0
    %v738 = vadd.f32 %v732, %v736
    %v739 = vadd.f32 %v733, %v736
    %v740 = vmax.f32 %v738, 0.0
    %v741 = vmax.f32 %v739, 0.0
    %vm742 = vcmask 916480
    %743 = vst.msk [vmem:[#allocation2] sm:$0xff] %vm742, %v740
    %vm744 = vcmask 914432
    %745 = vst.msk [vmem:[#allocation2 + $0x8] sm:$0x3f] %vm744, %v741
    %v746 = vld [vmem:[#allocation2] sm:$0xff]
    %v747 = vld [vmem:[#allocation2 + $0x8] sm:$0x3]
    %v748 = vld [vmem:[%s4] sm:$0xff]
    %v749 = vld [vmem:[%s4 + $0x8] sm:$0xff]
    %v750 = vld [vmem:[%s4 + $0x10] sm:$0xff]
    %v751 = vld [vmem:[%s4 + $0x18] sm:$0xff]
    %v752 = vld [vmem:[%s4 + $0x20] sm:$0xff]
    %v753 = vld [vmem:[%s4 + $0x28] sm:$0xff]
    %v754 = vld [vmem:[%s4 + $0x30] sm:$0xff]
    %v755 = vld [vmem:[%s4 + $0x38] sm:$0xff]
    %v756 = vld [vmem:[%s4 + $0x40] sm:$0xff]
    %v757 = vld [vmem:[%s4 + $0x48] sm:$0xff]
    %v758 = vld [vmem:[%s4 + $0x50] sm:$0xff]
    %v759 = vld [vmem:[%s4 + $0x58] sm:$0xff]
    %v760 = vld [vmem:[%s4 + $0x60] sm:$0xff]
    %v761 = vld [vmem:[%s4 + $0x68] sm:$0xff]
    %v762 = vld [vmem:[%s4 + $0x70] sm:$0xff]
    %v763 = vld [vmem:[%s4 + $0x78] sm:$0xff]
    %v764 = vld [vmem:[%s4 + $0x80] sm:$0xff]
    %v765 = vld [vmem:[%s4 + $0x88] sm:$0xff]
    %v766 = vld [vmem:[%s4 + $0x90] sm:$0xff]
    %v767 = vld [vmem:[%s4 + $0x98] sm:$0xff]
    %v768 = vld [vmem:[%s4 + $0xa0] sm:$0xff]
    %v769 = vld [vmem:[%s4 + $0xa8] sm:$0xff]
    %v770 = vld [vmem:[%s4 + $0xb0] sm:$0xff]
    %v771 = vld [vmem:[%s4 + $0xb8] sm:$0xff]
    %v772 = vld [vmem:[%s4 + $0xc0] sm:$0xff]
    %v773 = vld [vmem:[%s4 + $0xc8] sm:$0xff]
    %v774 = vld [vmem:[%s4 + $0xd0] sm:$0xff]
    %v775 = vld [vmem:[%s4 + $0xd8] sm:$0xff]
    %v776 = vld [vmem:[#allocation2 + $0x1] sm:$0xff]
    %v777 = vld [vmem:[#allocation2 + $0x9] sm:$0x3]
    %s778 = scalar_lea.vmem %s4, 224
    %v779 = vld [vmem:[%s778] sm:$0xff]
    %v780 = vld [vmem:[%s778 + $0x8] sm:$0xff]
    %v781 = vld [vmem:[%s778 + $0x10] sm:$0xff]
    %v782 = vld [vmem:[%s778 + $0x18] sm:$0xff]
    %v783 = vld [vmem:[%s778 + $0x20] sm:$0xff]
    %v784 = vld [vmem:[%s778 + $0x28] sm:$0xff]
    %v785 = vld [vmem:[%s778 + $0x30] sm:$0xff]
    %v786 = vld [vmem:[%s778 + $0x38] sm:$0xff]
    %v787 = vld [vmem:[%s778 + $0x40] sm:$0xff]
    %v788 = vld [vmem:[%s778 + $0x48] sm:$0xff]
    %v789 = vld [vmem:[%s778 + $0x50] sm:$0xff]
    %v790 = vld [vmem:[%s778 + $0x58] sm:$0xff]
    %v791 = vld [vmem:[%s778 + $0x60] sm:$0xff]
    %v792 = vld [vmem:[%s778 + $0x68] sm:$0xff]
    %v793 = vld [vmem:[%s778 + $0x70] sm:$0xff]
    %v794 = vld [vmem:[%s778 + $0x78] sm:$0xff]
    %v795 = vld [vmem:[%s778 + $0x80] sm:$0xff]
    %v796 = vld [vmem:[%s778 + $0x88] sm:$0xff]
    %v797 = vld [vmem:[%s778 + $0x90] sm:$0xff]
    %v798 = vld [vmem:[%s778 + $0x98] sm:$0xff]
    %v799 = vld [vmem:[%s778 + $0xa0] sm:$0xff]
    %v800 = vld [vmem:[%s778 + $0xa8] sm:$0xff]
    %v801 = vld [vmem:[%s778 + $0xb0] sm:$0xff]
    %v802 = vld [vmem:[%s778 + $0xb8] sm:$0xff]
    %v803 = vld [vmem:[%s778 + $0xc0] sm:$0xff]
    %v804 = vld [vmem:[%s778 + $0xc8] sm:$0xff]
    %v805 = vld [vmem:[%s778 + $0xd0] sm:$0xff]
    %v806 = vld [vmem:[%s778 + $0xd8] sm:$0xff]
    %v808 = vsel %vm742, %v776, 0
    %v811 = vsel %vm742, %v777, 0
    %813 = vmatpush.msra.mxu0 0.0
    %814 = vmatpush.msra.mxu0 0.0
    %815 = vmatpush.msra.mxu0 %v805
    %816 = vmatpush.msra.mxu0 %v803
    %817 = vmatpush.msra.mxu0 %v801
    %818 = vmatpush.msra.mxu0 %v799
    %819 = vmatpush.msra.mxu0 %v797
    %820 = vmatpush.msra.mxu0 %v795
    %821 = vmatpush.msra.mxu0 %v793
    %822 = vmatpush.msra.mxu0 %v791
    %823 = vmatpush.msra.mxu0 %v789
    %824 = vmatpush.msra.mxu0 %v787
    %825 = vmatpush.msra.mxu0 %v785
    %826 = vmatpush.msra.mxu0 %v783
    %827 = vmatpush.msra.mxu0 %v781
    %828 = vmatpush.msra.mxu0 %v779
    %829 = vmatmul.f32.gmra.mxu0 %v808
    %v830 = vpop.f32.mrf.mxu0
    %v831 = vadd.f32 0.0, %v830
    %832 = vmatmul.f32.gmra.mxu0 %v811
    %v833 = vpop.f32.mrf.mxu0
    %v834 = vadd.f32 0.0, %v833
    %835 = vdwg.mxu0
    %836 = vmatpush.msra.mxu0 0.0
    %837 = vmatpush.msra.mxu0 0.0
    %838 = vmatpush.msra.mxu0 %v806
    %839 = vmatpush.msra.mxu0 %v804
    %840 = vmatpush.msra.mxu0 %v802
    %841 = vmatpush.msra.mxu0 %v800
    %842 = vmatpush.msra.mxu0 %v798
    %843 = vmatpush.msra.mxu0 %v796
    %844 = vmatpush.msra.mxu0 %v794
    %845 = vmatpush.msra.mxu0 %v792
    %846 = vmatpush.msra.mxu0 %v790
    %847 = vmatpush.msra.mxu0 %v788
    %848 = vmatpush.msra.mxu0 %v786
    %849 = vmatpush.msra.mxu0 %v784
    %850 = vmatpush.msra.mxu0 %v782
    %851 = vmatpush.msra.mxu0 %v780
    %852 = vmatmul.f32.gmra.mxu0 %v808
    %v853 = vpop.f32.mrf.mxu0
    %v854 = vadd.f32 0.0, %v853
    %855 = vmatmul.f32.gmra.mxu0 %v811
    %v856 = vpop.f32.mrf.mxu0
    %v857 = vadd.f32 0.0, %v856
    %858 = vdwg.mxu0
    %v860 = vsel %vm742, %v746, 0
    %v863 = vsel %vm742, %v747, 0
    %865 = vmatpush.msra.mxu0 0.0
    %866 = vmatpush.msra.mxu0 0.0
    %867 = vmatpush.msra.mxu0 %v774
    %868 = vmatpush.msra.mxu0 %v772
    %869 = vmatpush.msra.mxu0 %v770
    %870 = vmatpush.msra.mxu0 %v768
    %871 = vmatpush.msra.mxu0 %v766
    %872 = vmatpush.msra.mxu0 %v764
    %873 = vmatpush.msra.mxu0 %v762
    %874 = vmatpush.msra.mxu0 %v760
    %875 = vmatpush.msra.mxu0 %v758
    %876 = vmatpush.msra.mxu0 %v756
    %877 = vmatpush.msra.mxu0 %v754
    %878 = vmatpush.msra.mxu0 %v752
    %879 = vmatpush.msra.mxu0 %v750
    %880 = vmatpush.msra.mxu0 %v748
    %881 = vmatmul.f32.gmra.mxu0 %v860
    %v882 = vpop.f32.mrf.mxu0
    %v883 = vadd.f32 %v831, %v882
    %884 = vmatmul.f32.gmra.mxu0 %v863
    %v885 = vpop.f32.mrf.mxu0
    %v886 = vadd.f32 %v834, %v885
    %887 = vdwg.mxu0
    %888 = vmatpush.msra.mxu0 0.0
    %889 = vmatpush.msra.mxu0 0.0
    %890 = vmatpush.msra.mxu0 %v775
    %891 = vmatpush.msra.mxu0 %v773
    %892 = vmatpush.msra.mxu0 %v771
    %893 = vmatpush.msra.mxu0 %v769
    %894 = vmatpush.msra.mxu0 %v767
    %895 = vmatpush.msra.mxu0 %v765
    %896 = vmatpush.msra.mxu0 %v763
    %897 = vmatpush.msra.mxu0 %v761
    %898 = vmatpush.msra.mxu0 %v759
    %899 = vmatpush.msra.mxu0 %v757
    %900 = vmatpush.msra.mxu0 %v755
    %901 = vmatpush.msra.mxu0 %v753
    %902 = vmatpush.msra.mxu0 %v751
    %903 = vmatpush.msra.mxu0 %v749
    %904 = vmatmul.f32.gmra.mxu0 %v860
    %v905 = vpop.f32.mrf.mxu0
    %v906 = vadd.f32 %v854, %v905
    %907 = vmatmul.f32.gmra.mxu0 %v863
    %v908 = vpop.f32.mrf.mxu0
    %v909 = vadd.f32 %v857, %v908
    %910 = vdwg.mxu0
    %v911 = vld [vmem:[#allocation2 + $0x2] sm:$0xff]
    %v912 = vld [vmem:[#allocation2 + $0xa] sm:$0x3]
    %s913 = scalar_lea.vmem %s4, 448
    %v914 = vld [vmem:[%s913] sm:$0xff]
    %v915 = vld [vmem:[%s913 + $0x8] sm:$0xff]
    %v916 = vld [vmem:[%s913 + $0x10] sm:$0xff]
    %v917 = vld [vmem:[%s913 + $0x18] sm:$0xff]
    %v918 = vld [vmem:[%s913 + $0x20] sm:$0xff]
    %v919 = vld [vmem:[%s913 + $0x28] sm:$0xff]
    %v920 = vld [vmem:[%s913 + $0x30] sm:$0xff]
    %v921 = vld [vmem:[%s913 + $0x38] sm:$0xff]
    %v922 = vld [vmem:[%s913 + $0x40] sm:$0xff]
    %v923 = vld [vmem:[%s913 + $0x48] sm:$0xff]
    %v924 = vld [vmem:[%s913 + $0x50] sm:$0xff]
    %v925 = vld [vmem:[%s913 + $0x58] sm:$0xff]
    %v926 = vld [vmem:[%s913 + $0x60] sm:$0xff]
    %v927 = vld [vmem:[%s913 + $0x68] sm:$0xff]
    %v928 = vld [vmem:[%s913 + $0x70] sm:$0xff]
    %v929 = vld [vmem:[%s913 + $0x78] sm:$0xff]
    %v930 = vld [vmem:[%s913 + $0x80] sm:$0xff]
    %v931 = vld [vmem:[%s913 + $0x88] sm:$0xff]
    %v932 = vld [vmem:[%s913 + $0x90] sm:$0xff]
    %v933 = vld [vmem:[%s913 + $0x98] sm:$0xff]
    %v934 = vld [vmem:[%s913 + $0xa0] sm:$0xff]
    %v935 = vld [vmem:[%s913 + $0xa8] sm:$0xff]
    %v936 = vld [vmem:[%s913 + $0xb0] sm:$0xff]
    %v937 = vld [vmem:[%s913 + $0xb8] sm:$0xff]
    %v938 = vld [vmem:[%s913 + $0xc0] sm:$0xff]
    %v939 = vld [vmem:[%s913 + $0xc8] sm:$0xff]
    %v940 = vld [vmem:[%s913 + $0xd0] sm:$0xff]
    %v941 = vld [vmem:[%s913 + $0xd8] sm:$0xff]
    %v943 = vsel %vm742, %v911, 0
    %v946 = vsel %vm742, %v912, 0
    %948 = vmatpush.msra.mxu0 0.0
    %949 = vmatpush.msra.mxu0 0.0
    %950 = vmatpush.msra.mxu0 %v940
    %951 = vmatpush.msra.mxu0 %v938
    %952 = vmatpush.msra.mxu0 %v936
    %953 = vmatpush.msra.mxu0 %v934
    %954 = vmatpush.msra.mxu0 %v932
    %955 = vmatpush.msra.mxu0 %v930
    %956 = vmatpush.msra.mxu0 %v928
    %957 = vmatpush.msra.mxu0 %v926
    %958 = vmatpush.msra.mxu0 %v924
    %959 = vmatpush.msra.mxu0 %v922
    %960 = vmatpush.msra.mxu0 %v920
    %961 = vmatpush.msra.mxu0 %v918
    %962 = vmatpush.msra.mxu0 %v916
    %963 = vmatpush.msra.mxu0 %v914
    %964 = vmatmul.f32.gmra.mxu0 %v943
    %v965 = vpop.f32.mrf.mxu0
    %v966 = vadd.f32 0.0, %v965
    %967 = vmatmul.f32.gmra.mxu0 %v946
    %v968 = vpop.f32.mrf.mxu0
    %v969 = vadd.f32 0.0, %v968
    %970 = vdwg.mxu0
    %971 = vmatpush.msra.mxu0 0.0
    %972 = vmatpush.msra.mxu0 0.0
    %973 = vmatpush.msra.mxu0 %v941
    %974 = vmatpush.msra.mxu0 %v939
    %975 = vmatpush.msra.mxu0 %v937
    %976 = vmatpush.msra.mxu0 %v935
    %977 = vmatpush.msra.mxu0 %v933
    %978 = vmatpush.msra.mxu0 %v931
    %979 = vmatpush.msra.mxu0 %v929
    %980 = vmatpush.msra.mxu0 %v927
    %981 = vmatpush.msra.mxu0 %v925
    %982 = vmatpush.msra.mxu0 %v923
    %983 = vmatpush.msra.mxu0 %v921
    %984 = vmatpush.msra.mxu0 %v919
    %985 = vmatpush.msra.mxu0 %v917
    %986 = vmatpush.msra.mxu0 %v915
    %987 = vmatmul.f32.gmra.mxu0 %v943
    %v988 = vpop.f32.mrf.mxu0
    %v989 = vadd.f32 0.0, %v988
    %990 = vmatmul.f32.gmra.mxu0 %v946
    %v991 = vpop.f32.mrf.mxu0
    %v992 = vadd.f32 0.0, %v991
    %993 = vdwg.mxu0
    %v994 = vadd.f32 %v883, %v966
    %v995 = vadd.f32 %v906, %v989
    %v996 = vadd.f32 %v886, %v969
    %v997 = vadd.f32 %v909, %v992
    %v998 = vld [vmem:[#allocation2 + $0x3] sm:$0xff]
    %v999 = vld [vmem:[#allocation2 + $0xb] sm:$0x3]
    %s1000 = scalar_lea.vmem %s4, 672
    %v1001 = vld [vmem:[%s1000] sm:$0xff]
    %v1002 = vld [vmem:[%s1000 + $0x8] sm:$0xff]
    %v1003 = vld [vmem:[%s1000 + $0x10] sm:$0xff]
    %v1004 = vld [vmem:[%s1000 + $0x18] sm:$0xff]
    %v1005 = vld [vmem:[%s1000 + $0x20] sm:$0xff]
    %v1006 = vld [vmem:[%s1000 + $0x28] sm:$0xff]
    %v1007 = vld [vmem:[%s1000 + $0x30] sm:$0xff]
    %v1008 = vld [vmem:[%s1000 + $0x38] sm:$0xff]
    %v1009 = vld [vmem:[%s1000 + $0x40] sm:$0xff]
    %v1010 = vld [vmem:[%s1000 + $0x48] sm:$0xff]
    %v1011 = vld [vmem:[%s1000 + $0x50] sm:$0xff]
    %v1012 = vld [vmem:[%s1000 + $0x58] sm:$0xff]
    %v1013 = vld [vmem:[%s1000 + $0x60] sm:$0xff]
    %v1014 = vld [vmem:[%s1000 + $0x68] sm:$0xff]
    %v1015 = vld [vmem:[%s1000 + $0x70] sm:$0xff]
    %v1016 = vld [vmem:[%s1000 + $0x78] sm:$0xff]
    %v1017 = vld [vmem:[%s1000 + $0x80] sm:$0xff]
    %v1018 = vld [vmem:[%s1000 + $0x88] sm:$0xff]
    %v1019 = vld [vmem:[%s1000 + $0x90] sm:$0xff]
    %v1020 = vld [vmem:[%s1000 + $0x98] sm:$0xff]
    %v1021 = vld [vmem:[%s1000 + $0xa0] sm:$0xff]
    %v1022 = vld [vmem:[%s1000 + $0xa8] sm:$0xff]
    %v1023 = vld [vmem:[%s1000 + $0xb0] sm:$0xff]
    %v1024 = vld [vmem:[%s1000 + $0xb8] sm:$0xff]
    %v1025 = vld [vmem:[%s1000 + $0xc0] sm:$0xff]
    %v1026 = vld [vmem:[%s1000 + $0xc8] sm:$0xff]
    %v1027 = vld [vmem:[%s1000 + $0xd0] sm:$0xff]
    %v1028 = vld [vmem:[%s1000 + $0xd8] sm:$0xff]
    %v1030 = vsel %vm742, %v998, 0
    %v1033 = vsel %vm742, %v999, 0
    %1035 = vmatpush.msra.mxu0 0.0
    %1036 = vmatpush.msra.mxu0 0.0
    %1037 = vmatpush.msra.mxu0 %v1027
    %1038 = vmatpush.msra.mxu0 %v1025
    %1039 = vmatpush.msra.mxu0 %v1023
    %1040 = vmatpush.msra.mxu0 %v1021
    %1041 = vmatpush.msra.mxu0 %v1019
    %1042 = vmatpush.msra.mxu0 %v1017
    %1043 = vmatpush.msra.mxu0 %v1015
    %1044 = vmatpush.msra.mxu0 %v1013
    %1045 = vmatpush.msra.mxu0 %v1011
    %1046 = vmatpush.msra.mxu0 %v1009
    %1047 = vmatpush.msra.mxu0 %v1007
    %1048 = vmatpush.msra.mxu0 %v1005
    %1049 = vmatpush.msra.mxu0 %v1003
    %1050 = vmatpush.msra.mxu0 %v1001
    %1051 = vmatmul.f32.gmra.mxu0 %v1030
    %v1052 = vpop.f32.mrf.mxu0
    %v1053 = vadd.f32 0.0, %v1052
    %1054 = vmatmul.f32.gmra.mxu0 %v1033
    %v1055 = vpop.f32.mrf.mxu0
    %v1056 = vadd.f32 0.0, %v1055
    %1057 = vdwg.mxu0
    %1058 = vmatpush.msra.mxu0 0.0
    %1059 = vmatpush.msra.mxu0 0.0
    %1060 = vmatpush.msra.mxu0 %v1028
    %1061 = vmatpush.msra.mxu0 %v1026
    %1062 = vmatpush.msra.mxu0 %v1024
    %1063 = vmatpush.msra.mxu0 %v1022
    %1064 = vmatpush.msra.mxu0 %v1020
    %1065 = vmatpush.msra.mxu0 %v1018
    %1066 = vmatpush.msra.mxu0 %v1016
    %1067 = vmatpush.msra.mxu0 %v1014
    %1068 = vmatpush.msra.mxu0 %v1012
    %1069 = vmatpush.msra.mxu0 %v1010
    %1070 = vmatpush.msra.mxu0 %v1008
    %1071 = vmatpush.msra.mxu0 %v1006
    %1072 = vmatpush.msra.mxu0 %v1004
    %1073 = vmatpush.msra.mxu0 %v1002
    %1074 = vmatmul.f32.gmra.mxu0 %v1030
    %v1075 = vpop.f32.mrf.mxu0
    %v1076 = vadd.f32 0.0, %v1075
    %1077 = vmatmul.f32.gmra.mxu0 %v1033
    %v1078 = vpop.f32.mrf.mxu0
    %v1079 = vadd.f32 0.0, %v1078
    %1080 = vdwg.mxu0
    %v1081 = vadd.f32 %v994, %v1053
    %v1082 = vadd.f32 %v995, %v1076
    %v1083 = vadd.f32 %v996, %v1056
    %v1084 = vadd.f32 %v997, %v1079
    %v1085 = vld [vmem:[#allocation2 + $0x4] sm:$0xff]
    %v1086 = vld [vmem:[#allocation2 + $0xc] sm:$0x3]
    %s1087 = scalar_lea.vmem %s4, 896
    %v1088 = vld [vmem:[%s1087] sm:$0xff]
    %v1089 = vld [vmem:[%s1087 + $0x8] sm:$0xff]
    %v1090 = vld [vmem:[%s1087 + $0x10] sm:$0xff]
    %v1091 = vld [vmem:[%s1087 + $0x18] sm:$0xff]
    %v1092 = vld [vmem:[%s1087 + $0x20] sm:$0xff]
    %v1093 = vld [vmem:[%s1087 + $0x28] sm:$0xff]
    %v1094 = vld [vmem:[%s1087 + $0x30] sm:$0xff]
    %v1095 = vld [vmem:[%s1087 + $0x38] sm:$0xff]
    %v1096 = vld [vmem:[%s1087 + $0x40] sm:$0xff]
    %v1097 = vld [vmem:[%s1087 + $0x48] sm:$0xff]
    %v1098 = vld [vmem:[%s1087 + $0x50] sm:$0xff]
    %v1099 = vld [vmem:[%s1087 + $0x58] sm:$0xff]
    %v1100 = vld [vmem:[%s1087 + $0x60] sm:$0xff]
    %v1101 = vld [vmem:[%s1087 + $0x68] sm:$0xff]
    %v1102 = vld [vmem:[%s1087 + $0x70] sm:$0xff]
    %v1103 = vld [vmem:[%s1087 + $0x78] sm:$0xff]
    %v1104 = vld [vmem:[%s1087 + $0x80] sm:$0xff]
    %v1105 = vld [vmem:[%s1087 + $0x88] sm:$0xff]
    %v1106 = vld [vmem:[%s1087 + $0x90] sm:$0xff]
    %v1107 = vld [vmem:[%s1087 + $0x98] sm:$0xff]
    %v1108 = vld [vmem:[%s1087 + $0xa0] sm:$0xff]
    %v1109 = vld [vmem:[%s1087 + $0xa8] sm:$0xff]
    %v1110 = vld [vmem:[%s1087 + $0xb0] sm:$0xff]
    %v1111 = vld [vmem:[%s1087 + $0xb8] sm:$0xff]
    %v1112 = vld [vmem:[%s1087 + $0xc0] sm:$0xff]
    %v1113 = vld [vmem:[%s1087 + $0xc8] sm:$0xff]
    %v1114 = vld [vmem:[%s1087 + $0xd0] sm:$0xff]
    %v1115 = vld [vmem:[%s1087 + $0xd8] sm:$0xff]
    %v1117 = vsel %vm742, %v1085, 0
    %v1120 = vsel %vm742, %v1086, 0
    %1122 = vmatpush.msra.mxu0 0.0
    %1123 = vmatpush.msra.mxu0 0.0
    %1124 = vmatpush.msra.mxu0 %v1114
    %1125 = vmatpush.msra.mxu0 %v1112
    %1126 = vmatpush.msra.mxu0 %v1110
    %1127 = vmatpush.msra.mxu0 %v1108
    %1128 = vmatpush.msra.mxu0 %v1106
    %1129 = vmatpush.msra.mxu0 %v1104
    %1130 = vmatpush.msra.mxu0 %v1102
    %1131 = vmatpush.msra.mxu0 %v1100
    %1132 = vmatpush.msra.mxu0 %v1098
    %1133 = vmatpush.msra.mxu0 %v1096
    %1134 = vmatpush.msra.mxu0 %v1094
    %1135 = vmatpush.msra.mxu0 %v1092
    %1136 = vmatpush.msra.mxu0 %v1090
    %1137 = vmatpush.msra.mxu0 %v1088
    %1138 = vmatmul.f32.gmra.mxu0 %v1117
    %v1139 = vpop.f32.mrf.mxu0
    %v1140 = vadd.f32 0.0, %v1139
    %1141 = vmatmul.f32.gmra.mxu0 %v1120
    %v1142 = vpop.f32.mrf.mxu0
    %v1143 = vadd.f32 0.0, %v1142
    %1144 = vdwg.mxu0
    %1145 = vmatpush.msra.mxu0 0.0
    %1146 = vmatpush.msra.mxu0 0.0
    %1147 = vmatpush.msra.mxu0 %v1115
    %1148 = vmatpush.msra.mxu0 %v1113
    %1149 = vmatpush.msra.mxu0 %v1111
    %1150 = vmatpush.msra.mxu0 %v1109
    %1151 = vmatpush.msra.mxu0 %v1107
    %1152 = vmatpush.msra.mxu0 %v1105
    %1153 = vmatpush.msra.mxu0 %v1103
    %1154 = vmatpush.msra.mxu0 %v1101
    %1155 = vmatpush.msra.mxu0 %v1099
    %1156 = vmatpush.msra.mxu0 %v1097
    %1157 = vmatpush.msra.mxu0 %v1095
    %1158 = vmatpush.msra.mxu0 %v1093
    %1159 = vmatpush.msra.mxu0 %v1091
    %1160 = vmatpush.msra.mxu0 %v1089
    %1161 = vmatmul.f32.gmra.mxu0 %v1117
    %v1162 = vpop.f32.mrf.mxu0
    %v1163 = vadd.f32 0.0, %v1162
    %1164 = vmatmul.f32.gmra.mxu0 %v1120
    %v1165 = vpop.f32.mrf.mxu0
    %v1166 = vadd.f32 0.0, %v1165
    %1167 = vdwg.mxu0
    %v1168 = vadd.f32 %v1081, %v1140
    %v1169 = vadd.f32 %v1082, %v1163
    %v1170 = vadd.f32 %v1083, %v1143
    %v1171 = vadd.f32 %v1084, %v1166
    %1176 = vrot.lane.b32.xlu0 %v1168, 48
    %v1177 = vpop.permute.xlu0 %1176
    %1178 = vrot.lane.b32.xlu0 %v1169, 48
    %v1179 = vpop.permute.xlu0 %1178
    %1180 = vrot.lane.b32.xlu0 %v1170, 48
    %v1181 = vpop.permute.xlu0 %1180
    %1182 = vrot.lane.b32.xlu0 %v1171, 48
    %v1183 = vpop.permute.xlu0 %1182
    %vm1184 = vcmask 392192
    %v1185 = vsel %vm1184, %v1177, %v1179
    %v1186 = vsel %vm1184, %v1181, %v1183
    %v1189 = vmax.f32 %v1168, %v1185
    %v1190 = vmax.f32 %v1170, %v1186
    %v1192 = vrot.slane %v1189, 1
    %v1194 = vmax.f32 %v1189, %v1192
    %v1195 = vld [vmem:[%s5] sm:$0x1]
    %v1196 = vadd.f32 %v1194, %v1195
    %v1197 = vmax.f32 %v1196, 0.0
    %vm1198 = vcmask 647168
    %1199 = vst.msk [vmem:[#allocation3] sm:$0x1] %vm1198, %v1197
    %v1200 = vld [vmem:[%s5] sm:$0x1]
    %v1202 = vperm.slane %v1200, 0
    %v1204 = vadd.f32 %v1194, %v1202
    %v1205 = vmax.f32 %v1204, 0.0
    %1207 = vst.sshfl [vmem:[#allocation1] sm:$0xff pattern:$0x73625140] %v1205
    %s1208 = scalar_lea.vmem [#allocation1], 1
    %v1209 = vld [vmem:[%s1208] ss:$4 sm:$0xff]
    %1210 = vrot.lane.b32.xlu0 %v1209, 80
    %v1211 = vpop.permute.xlu0 %1210
    %v1212 = vrot.slane %v1211, 6
    %vm1213 = vcmask 654336
    %v1214 = vsel %vm1213, %v1212, %v1211
    %vm1216 = vcmask 1041024
    %vm1217 = vcmask 256002
    %vm1218 = vmor %vm1217, %vm1216
    %1219 = vst.msk [vmem:[#allocation3] sm:$0x5] %vm1218, %v1214
    %v1220 = vld [vmem:[%s5] sm:$0x1]
    %v1222 = vperm.slane %v1220, 0
    %v1224 = vadd.f32 %v1194, %v1222
    %v1225 = vmax.f32 %v1224, 0.0
    %1227 = vst.sshfl [vmem:[#allocation1] sm:$0xff pattern:$0x73625140] %v1225
    %s1228 = scalar_lea.vmem [#allocation1], 2
    %v1229 = vld [vmem:[%s1228] ss:$4 sm:$0xff]
    %1230 = vrot.lane.b32.xlu0 %v1229, 32
    %v1231 = vpop.permute.xlu0 %1230
    %vm1233 = vcmask 909568
    %1234 = vst.msk [vmem:[#allocation3 + $0x2] sm:$0x1] %vm1233, %v1231
    %v1235 = vld [vmem:[%s5] sm:$0x1]
    %v1237 = vperm.slane %v1235, 0
    %v1239 = vadd.f32 %v1194, %v1237
    %v1240 = vmax.f32 %v1239, 0.0
    %1242 = vst.sshfl [vmem:[#allocation1] sm:$0xff pattern:$0x73625140] %v1240
    %s1243 = scalar_lea.vmem [#allocation1], 3
    %v1244 = vld [vmem:[%s1243] ss:$4 sm:$0xff]
    %1245 = vrot.lane.b32.xlu0 %v1244, 112
    %v1246 = vpop.permute.xlu0 %1245
    %v1247 = vrot.slane %v1246, 6
    %v1248 = vsel %vm742, %v1247, %v1246
    %vm1250 = vcmask 1041280
    %vm1251 = vcmask 518146
    %vm1252 = vmor %vm1251, %vm1250
    %1253 = vst.msk [vmem:[#allocation3 + $0x2] sm:$0x5] %vm1252, %v1248
    %v1255 = vrot.slane %v1190, 1
    %v1257 = vmax.f32 %v1190, %v1255
    %v1258 = vld [vmem:[%s5] sm:$0x1]
    %v1259 = vadd.f32 %v1257, %v1258
    %v1260 = vmax.f32 %v1259, 0.0
    %1262 = vrot.lane.b32.xlu0 %v1260, 64
    %v1263 = vpop.permute.xlu0 %1262
    %v1264 = vrot.slane %v1263, 6
    %vm1265 = vcmask 523264
    %v1266 = vsel %vm1265, %v1264, %v1263
    %vm1268 = vcmask 1040896
    %vm1269 = vcmask 124930
    %vm1270 = vmor %vm1269, %vm1268
    %1271 = vst.msk [vmem:[#allocation3 + $0x4] sm:$0x5] %vm1270, %v1266
    %v1272 = vld [vmem:[%s0 + $0x10] sm:$0xff]
    %v1273 = vld [vmem:[%s0 + $0x18] sm:$0x3f]
    %v1274 = vld [vmem:[%s2] sm:$0xff]
    %v1275 = vld [vmem:[%s2 + $0x8] sm:$0xff]
    %v1276 = vld [vmem:[%s2 + $0x10] sm:$0xff]
    %v1277 = vld [vmem:[%s2 + $0x18] sm:$0xff]
    %v1278 = vld [vmem:[%s2 + $0x20] sm:$0xff]
    %v1279 = vld [vmem:[%s2 + $0x28] sm:$0xff]
    %v1280 = vld [vmem:[%s2 + $0x30] sm:$0xff]
    %v1281 = vld [vmem:[%s2 + $0x38] sm:$0xff]
    %v1282 = vld [vmem:[%s2 + $0x40] sm:$0xff]
    %v1283 = vld [vmem:[%s2 + $0x48] sm:$0xff]
    %v1284 = vld [vmem:[%s2 + $0x50] sm:$0xff]
    %v1285 = vld [vmem:[%s2 + $0x58] sm:$0xff]
    %v1286 = vld [vmem:[%s2 + $0x60] sm:$0xff]
    %v1287 = vld [vmem:[%s2 + $0x68] sm:$0xff]
    %v1288 = vld [vmem:[%s2 + $0x70] sm:$0xff]
    %v1289 = vld [vmem:[%s2 + $0x78] sm:$0xff]
    %v1290 = vld [vmem:[%s2 + $0x80] sm:$0xff]
    %v1291 = vld [vmem:[%s2 + $0x88] sm:$0xff]
    %v1292 = vld [vmem:[%s2 + $0x90] sm:$0xff]
    %v1293 = vld [vmem:[%s2 + $0x98] sm:$0xff]
    %v1294 = vld [vmem:[%s2 + $0xa0] sm:$0xff]
    %v1295 = vld [vmem:[%s2 + $0xa8] sm:$0xff]
    %v1296 = vld [vmem:[%s2 + $0xb0] sm:$0xff]
    %v1297 = vld [vmem:[%s2 + $0xb8] sm:$0xff]
    %v1298 = vld [vmem:[%s1 + $0x10] sm:$0xff]
    %v1299 = vld [vmem:[%s1 + $0x18] sm:$0x3f]
    %v1300 = vld [vmem:[%s82] sm:$0xff]
    %v1301 = vld [vmem:[%s82 + $0x8] sm:$0xff]
    %v1302 = vld [vmem:[%s82 + $0x10] sm:$0xff]
    %v1303 = vld [vmem:[%s82 + $0x18] sm:$0xff]
    %v1304 = vld [vmem:[%s82 + $0x20] sm:$0xff]
    %v1305 = vld [vmem:[%s82 + $0x28] sm:$0xff]
    %v1306 = vld [vmem:[%s82 + $0x30] sm:$0xff]
    %v1307 = vld [vmem:[%s82 + $0x38] sm:$0xff]
    %v1308 = vld [vmem:[%s82 + $0x40] sm:$0xff]
    %v1309 = vld [vmem:[%s82 + $0x48] sm:$0xff]
    %v1310 = vld [vmem:[%s82 + $0x50] sm:$0xff]
    %v1311 = vld [vmem:[%s82 + $0x58] sm:$0xff]
    %v1312 = vld [vmem:[%s82 + $0x60] sm:$0xff]
    %v1313 = vld [vmem:[%s82 + $0x68] sm:$0xff]
    %v1314 = vld [vmem:[%s82 + $0x70] sm:$0xff]
    %v1315 = vld [vmem:[%s82 + $0x78] sm:$0xff]
    %v1316 = vld [vmem:[%s82 + $0x80] sm:$0xff]
    %v1317 = vld [vmem:[%s82 + $0x88] sm:$0xff]
    %v1318 = vld [vmem:[%s82 + $0x90] sm:$0xff]
    %v1319 = vld [vmem:[%s82 + $0x98] sm:$0xff]
    %v1320 = vld [vmem:[%s82 + $0xa0] sm:$0xff]
    %v1321 = vld [vmem:[%s82 + $0xa8] sm:$0xff]
    %v1322 = vld [vmem:[%s82 + $0xb0] sm:$0xff]
    %v1323 = vld [vmem:[%s82 + $0xb8] sm:$0xff]
    %v1325 = vsel %vm107, %v1298, 0
    %v1328 = vsel %vm107, %v1299, 0
    %1330 = vmatpush.msra.mxu0 0.0
    %1331 = vmatpush.msra.mxu0 0.0
    %1332 = vmatpush.msra.mxu0 0.0
    %1333 = vmatpush.msra.mxu0 0.0
    %1334 = vmatpush.msra.mxu0 %v1322
    %1335 = vmatpush.msra.mxu0 %v1320
    %1336 = vmatpush.msra.mxu0 %v1318
    %1337 = vmatpush.msra.mxu0 %v1316
    %1338 = vmatpush.msra.mxu0 %v1314
    %1339 = vmatpush.msra.mxu0 %v1312
    %1340 = vmatpush.msra.mxu0 %v1310
    %1341 = vmatpush.msra.mxu0 %v1308
    %1342 = vmatpush.msra.mxu0 %v1306
    %1343 = vmatpush.msra.mxu0 %v1304
    %1344 = vmatpush.msra.mxu0 %v1302
    %1345 = vmatpush.msra.mxu0 %v1300
    %1346 = vmatmul.f32.gmra.mxu0 %v1325
    %v1347 = vpop.f32.mrf.mxu0
    %v1348 = vadd.f32 0.0, %v1347
    %1349 = vmatmul.f32.gmra.mxu0 %v1328
    %v1350 = vpop.f32.mrf.mxu0
    %v1351 = vadd.f32 0.0, %v1350
    %1352 = vdwg.mxu0
    %1353 = vmatpush.msra.mxu0 0.0
    %1354 = vmatpush.msra.mxu0 0.0
    %1355 = vmatpush.msra.mxu0 0.0
    %1356 = vmatpush.msra.mxu0 0.0
    %1357 = vmatpush.msra.mxu0 %v1323
    %1358 = vmatpush.msra.mxu0 %v1321
    %1359 = vmatpush.msra.mxu0 %v1319
    %1360 = vmatpush.msra.mxu0 %v1317
    %1361 = vmatpush.msra.mxu0 %v1315
    %1362 = vmatpush.msra.mxu0 %v1313
    %1363 = vmatpush.msra.mxu0 %v1311
    %1364 = vmatpush.msra.mxu0 %v1309
    %1365 = vmatpush.msra.mxu0 %v1307
    %1366 = vmatpush.msra.mxu0 %v1305
    %1367 = vmatpush.msra.mxu0 %v1303
    %1368 = vmatpush.msra.mxu0 %v1301
    %1369 = vmatmul.f32.gmra.mxu0 %v1325
    %v1370 = vpop.f32.mrf.mxu0
    %v1371 = vadd.f32 0.0, %v1370
    %1372 = vmatmul.f32.gmra.mxu0 %v1328
    %v1373 = vpop.f32.mrf.mxu0
    %v1374 = vadd.f32 0.0, %v1373
    %1375 = vdwg.mxu0
    %v1377 = vsel %vm107, %v1272, 0
    %v1380 = vsel %vm107, %v1273, 0
    %1382 = vmatpush.msra.mxu0 0.0
    %1383 = vmatpush.msra.mxu0 0.0
    %1384 = vmatpush.msra.mxu0 0.0
    %1385 = vmatpush.msra.mxu0 0.0
    %1386 = vmatpush.msra.mxu0 %v1296
    %1387 = vmatpush.msra.mxu0 %v1294
    %1388 = vmatpush.msra.mxu0 %v1292
    %1389 = vmatpush.msra.mxu0 %v1290
    %1390 = vmatpush.msra.mxu0 %v1288
    %1391 = vmatpush.msra.mxu0 %v1286
    %1392 = vmatpush.msra.mxu0 %v1284
    %1393 = vmatpush.msra.mxu0 %v1282
    %1394 = vmatpush.msra.mxu0 %v1280
    %1395 = vmatpush.msra.mxu0 %v1278
    %1396 = vmatpush.msra.mxu0 %v1276
    %1397 = vmatpush.msra.mxu0 %v1274
    %1398 = vmatmul.f32.gmra.mxu0 %v1377
    %v1399 = vpop.f32.mrf.mxu0
    %v1400 = vadd.f32 %v1348, %v1399
    %1401 = vmatmul.f32.gmra.mxu0 %v1380
    %v1402 = vpop.f32.mrf.mxu0
    %v1403 = vadd.f32 %v1351, %v1402
    %1404 = vdwg.mxu0
    %1405 = vmatpush.msra.mxu0 0.0
    %1406 = vmatpush.msra.mxu0 0.0
    %1407 = vmatpush.msra.mxu0 0.0
    %1408 = vmatpush.msra.mxu0 0.0
    %1409 = vmatpush.msra.mxu0 %v1297
    %1410 = vmatpush.msra.mxu0 %v1295
    %1411 = vmatpush.msra.mxu0 %v1293
    %1412 = vmatpush.msra.mxu0 %v1291
    %1413 = vmatpush.msra.mxu0 %v1289
    %1414 = vmatpush.msra.mxu0 %v1287
    %1415 = vmatpush.msra.mxu0 %v1285
    %1416 = vmatpush.msra.mxu0 %v1283
    %1417 = vmatpush.msra.mxu0 %v1281
    %1418 = vmatpush.msra.mxu0 %v1279
    %1419 = vmatpush.msra.mxu0 %v1277
    %1420 = vmatpush.msra.mxu0 %v1275
    %1421 = vmatmul.f32.gmra.mxu0 %v1377
    %v1422 = vpop.f32.mrf.mxu0
    %v1423 = vadd.f32 %v1371, %v1422
    %1424 = vmatmul.f32.gmra.mxu0 %v1380
    %v1425 = vpop.f32.mrf.mxu0
    %v1426 = vadd.f32 %v1374, %v1425
    %1427 = vdwg.mxu0
    %v1428 = vld [vmem:[%s0 + $0x11] sm:$0xff]
    %v1429 = vld [vmem:[%s0 + $0x19] sm:$0x3f]
    %v1430 = vld [vmem:[%s214] sm:$0xff]
    %v1431 = vld [vmem:[%s214 + $0x8] sm:$0xff]
    %v1432 = vld [vmem:[%s214 + $0x10] sm:$0xff]
    %v1433 = vld [vmem:[%s214 + $0x18] sm:$0xff]
    %v1434 = vld [vmem:[%s214 + $0x20] sm:$0xff]
    %v1435 = vld [vmem:[%s214 + $0x28] sm:$0xff]
    %v1436 = vld [vmem:[%s214 + $0x30] sm:$0xff]
    %v1437 = vld [vmem:[%s214 + $0x38] sm:$0xff]
    %v1438 = vld [vmem:[%s214 + $0x40] sm:$0xff]
    %v1439 = vld [vmem:[%s214 + $0x48] sm:$0xff]
    %v1440 = vld [vmem:[%s214 + $0x50] sm:$0xff]
    %v1441 = vld [vmem:[%s214 + $0x58] sm:$0xff]
    %v1442 = vld [vmem:[%s214 + $0x60] sm:$0xff]
    %v1443 = vld [vmem:[%s214 + $0x68] sm:$0xff]
    %v1444 = vld [vmem:[%s214 + $0x70] sm:$0xff]
    %v1445 = vld [vmem:[%s214 + $0x78] sm:$0xff]
    %v1446 = vld [vmem:[%s214 + $0x80] sm:$0xff]
    %v1447 = vld [vmem:[%s214 + $0x88] sm:$0xff]
    %v1448 = vld [vmem:[%s214 + $0x90] sm:$0xff]
    %v1449 = vld [vmem:[%s214 + $0x98] sm:$0xff]
    %v1450 = vld [vmem:[%s214 + $0xa0] sm:$0xff]
    %v1451 = vld [vmem:[%s214 + $0xa8] sm:$0xff]
    %v1452 = vld [vmem:[%s214 + $0xb0] sm:$0xff]
    %v1453 = vld [vmem:[%s214 + $0xb8] sm:$0xff]
    %v1455 = vsel %vm107, %v1428, 0
    %v1458 = vsel %vm107, %v1429, 0
    %1460 = vmatpush.msra.mxu0 0.0
    %1461 = vmatpush.msra.mxu0 0.0
    %1462 = vmatpush.msra.mxu0 0.0
    %1463 = vmatpush.msra.mxu0 0.0
    %1464 = vmatpush.msra.mxu0 %v1452
    %1465 = vmatpush.msra.mxu0 %v1450
    %1466 = vmatpush.msra.mxu0 %v1448
    %1467 = vmatpush.msra.mxu0 %v1446
    %1468 = vmatpush.msra.mxu0 %v1444
    %1469 = vmatpush.msra.mxu0 %v1442
    %1470 = vmatpush.msra.mxu0 %v1440
    %1471 = vmatpush.msra.mxu0 %v1438
    %1472 = vmatpush.msra.mxu0 %v1436
    %1473 = vmatpush.msra.mxu0 %v1434
    %1474 = vmatpush.msra.mxu0 %v1432
    %1475 = vmatpush.msra.mxu0 %v1430
    %1476 = vmatmul.f32.gmra.mxu0 %v1455
    %v1477 = vpop.f32.mrf.mxu0
    %v1478 = vadd.f32 0.0, %v1477
    %1479 = vmatmul.f32.gmra.mxu0 %v1458
    %v1480 = vpop.f32.mrf.mxu0
    %v1481 = vadd.f32 0.0, %v1480
    %1482 = vdwg.mxu0
    %1483 = vmatpush.msra.mxu0 0.0
    %1484 = vmatpush.msra.mxu0 0.0
    %1485 = vmatpush.msra.mxu0 0.0
    %1486 = vmatpush.msra.mxu0 0.0
    %1487 = vmatpush.msra.mxu0 %v1453
    %1488 = vmatpush.msra.mxu0 %v1451
    %1489 = vmatpush.msra.mxu0 %v1449
    %1490 = vmatpush.msra.mxu0 %v1447
    %1491 = vmatpush.msra.mxu0 %v1445
    %1492 = vmatpush.msra.mxu0 %v1443
    %1493 = vmatpush.msra.mxu0 %v1441
    %1494 = vmatpush.msra.mxu0 %v1439
    %1495 = vmatpush.msra.mxu0 %v1437
    %1496 = vmatpush.msra.mxu0 %v1435
    %1497 = vmatpush.msra.mxu0 %v1433
    %1498 = vmatpush.msra.mxu0 %v1431
    %1499 = vmatmul.f32.gmra.mxu0 %v1455
    %v1500 = vpop.f32.mrf.mxu0
    %v1501 = vadd.f32 0.0, %v1500
    %1502 = vmatmul.f32.gmra.mxu0 %v1458
    %v1503 = vpop.f32.mrf.mxu0
    %v1504 = vadd.f32 0.0, %v1503
    %1505 = vdwg.mxu0
    %v1506 = vadd.f32 %v1400, %v1478
    %v1507 = vadd.f32 %v1423, %v1501
    %v1508 = vadd.f32 %v1403, %v1481
    %v1509 = vadd.f32 %v1426, %v1504
    %v1510 = vld [vmem:[%s1 + $0x11] sm:$0xff]
    %v1511 = vld [vmem:[%s1 + $0x19] sm:$0x3f]
    %v1512 = vld [vmem:[%s297] sm:$0xff]
    %v1513 = vld [vmem:[%s297 + $0x8] sm:$0xff]
    %v1514 = vld [vmem:[%s297 + $0x10] sm:$0xff]
    %v1515 = vld [vmem:[%s297 + $0x18] sm:$0xff]
    %v1516 = vld [vmem:[%s297 + $0x20] sm:$0xff]
    %v1517 = vld [vmem:[%s297 + $0x28] sm:$0xff]
    %v1518 = vld [vmem:[%s297 + $0x30] sm:$0xff]
    %v1519 = vld [vmem:[%s297 + $0x38] sm:$0xff]
    %v1520 = vld [vmem:[%s297 + $0x40] sm:$0xff]
    %v1521 = vld [vmem:[%s297 + $0x48] sm:$0xff]
    %v1522 = vld [vmem:[%s297 + $0x50] sm:$0xff]
    %v1523 = vld [vmem:[%s297 + $0x58] sm:$0xff]
    %v1524 = vld [vmem:[%s297 + $0x60] sm:$0xff]
    %v1525 = vld [vmem:[%s297 + $0x68] sm:$0xff]
    %v1526 = vld [vmem:[%s297 + $0x70] sm:$0xff]
    %v1527 = vld [vmem:[%s297 + $0x78] sm:$0xff]
    %v1528 = vld [vmem:[%s297 + $0x80] sm:$0xff]
    %v1529 = vld [vmem:[%s297 + $0x88] sm:$0xff]
    %v1530 = vld [vmem:[%s297 + $0x90] sm:$0xff]
    %v1531 = vld [vmem:[%s297 + $0x98] sm:$0xff]
    %v1532 = vld [vmem:[%s297 + $0xa0] sm:$0xff]
    %v1533 = vld [vmem:[%s297 + $0xa8] sm:$0xff]
    %v1534 = vld [vmem:[%s297 + $0xb0] sm:$0xff]
    %v1535 = vld [vmem:[%s297 + $0xb8] sm:$0xff]
    %v1537 = vsel %vm107, %v1510, 0
    %v1540 = vsel %vm107, %v1511, 0
    %1542 = vmatpush.msra.mxu0 0.0
    %1543 = vmatpush.msra.mxu0 0.0
    %1544 = vmatpush.msra.mxu0 0.0
    %1545 = vmatpush.msra.mxu0 0.0
    %1546 = vmatpush.msra.mxu0 %v1534
    %1547 = vmatpush.msra.mxu0 %v1532
    %1548 = vmatpush.msra.mxu0 %v1530
    %1549 = vmatpush.msra.mxu0 %v1528
    %1550 = vmatpush.msra.mxu0 %v1526
    %1551 = vmatpush.msra.mxu0 %v1524
    %1552 = vmatpush.msra.mxu0 %v1522
    %1553 = vmatpush.msra.mxu0 %v1520
    %1554 = vmatpush.msra.mxu0 %v1518
    %1555 = vmatpush.msra.mxu0 %v1516
    %1556 = vmatpush.msra.mxu0 %v1514
    %1557 = vmatpush.msra.mxu0 %v1512
    %1558 = vmatmul.f32.gmra.mxu0 %v1537
    %v1559 = vpop.f32.mrf.mxu0
    %v1560 = vadd.f32 0.0, %v1559
    %1561 = vmatmul.f32.gmra.mxu0 %v1540
    %v1562 = vpop.f32.mrf.mxu0
    %v1563 = vadd.f32 0.0, %v1562
    %1564 = vdwg.mxu0
    %1565 = vmatpush.msra.mxu0 0.0
    %1566 = vmatpush.msra.mxu0 0.0
    %1567 = vmatpush.msra.mxu0 0.0
    %1568 = vmatpush.msra.mxu0 0.0
    %1569 = vmatpush.msra.mxu0 %v1535
    %1570 = vmatpush.msra.mxu0 %v1533
    %1571 = vmatpush.msra.mxu0 %v1531
    %1572 = vmatpush.msra.mxu0 %v1529
    %1573 = vmatpush.msra.mxu0 %v1527
    %1574 = vmatpush.msra.mxu0 %v1525
    %1575 = vmatpush.msra.mxu0 %v1523
    %1576 = vmatpush.msra.mxu0 %v1521
    %1577 = vmatpush.msra.mxu0 %v1519
    %1578 = vmatpush.msra.mxu0 %v1517
    %1579 = vmatpush.msra.mxu0 %v1515
    %1580 = vmatpush.msra.mxu0 %v1513
    %1581 = vmatmul.f32.gmra.mxu0 %v1537
    %v1582 = vpop.f32.mrf.mxu0
    %v1583 = vadd.f32 0.0, %v1582
    %1584 = vmatmul.f32.gmra.mxu0 %v1540
    %v1585 = vpop.f32.mrf.mxu0
    %v1586 = vadd.f32 0.0, %v1585
    %1587 = vdwg.mxu0
    %v1588 = vadd.f32 %v1506, %v1560
    %v1589 = vadd.f32 %v1507, %v1583
    %v1590 = vadd.f32 %v1508, %v1563
    %v1591 = vadd.f32 %v1509, %v1586
    %v1592 = vld [vmem:[%s0 + $0x12] sm:$0xff]
    %v1593 = vld [vmem:[%s0 + $0x1a] sm:$0x3f]
    %v1594 = vld [vmem:[%s380] sm:$0xff]
    %v1595 = vld [vmem:[%s380 + $0x8] sm:$0xff]
    %v1596 = vld [vmem:[%s380 + $0x10] sm:$0xff]
    %v1597 = vld [vmem:[%s380 + $0x18] sm:$0xff]
    %v1598 = vld [vmem:[%s380 + $0x20] sm:$0xff]
    %v1599 = vld [vmem:[%s380 + $0x28] sm:$0xff]
    %v1600 = vld [vmem:[%s380 + $0x30] sm:$0xff]
    %v1601 = vld [vmem:[%s380 + $0x38] sm:$0xff]
    %v1602 = vld [vmem:[%s380 + $0x40] sm:$0xff]
    %v1603 = vld [vmem:[%s380 + $0x48] sm:$0xff]
    %v1604 = vld [vmem:[%s380 + $0x50] sm:$0xff]
    %v1605 = vld [vmem:[%s380 + $0x58] sm:$0xff]
    %v1606 = vld [vmem:[%s380 + $0x60] sm:$0xff]
    %v1607 = vld [vmem:[%s380 + $0x68] sm:$0xff]
    %v1608 = vld [vmem:[%s380 + $0x70] sm:$0xff]
    %v1609 = vld [vmem:[%s380 + $0x78] sm:$0xff]
    %v1610 = vld [vmem:[%s380 + $0x80] sm:$0xff]
    %v1611 = vld [vmem:[%s380 + $0x88] sm:$0xff]
    %v1612 = vld [vmem:[%s380 + $0x90] sm:$0xff]
    %v1613 = vld [vmem:[%s380 + $0x98] sm:$0xff]
    %v1614 = vld [vmem:[%s380 + $0xa0] sm:$0xff]
    %v1615 = vld [vmem:[%s380 + $0xa8] sm:$0xff]
    %v1616 = vld [vmem:[%s380 + $0xb0] sm:$0xff]
    %v1617 = vld [vmem:[%s380 + $0xb8] sm:$0xff]
    %v1619 = vsel %vm107, %v1592, 0
    %v1622 = vsel %vm107, %v1593, 0
    %1624 = vmatpush.msra.mxu0 0.0
    %1625 = vmatpush.msra.mxu0 0.0
    %1626 = vmatpush.msra.mxu0 0.0
    %1627 = vmatpush.msra.mxu0 0.0
    %1628 = vmatpush.msra.mxu0 %v1616
    %1629 = vmatpush.msra.mxu0 %v1614
    %1630 = vmatpush.msra.mxu0 %v1612
    %1631 = vmatpush.msra.mxu0 %v1610
    %1632 = vmatpush.msra.mxu0 %v1608
    %1633 = vmatpush.msra.mxu0 %v1606
    %1634 = vmatpush.msra.mxu0 %v1604
    %1635 = vmatpush.msra.mxu0 %v1602
    %1636 = vmatpush.msra.mxu0 %v1600
    %1637 = vmatpush.msra.mxu0 %v1598
    %1638 = vmatpush.msra.mxu0 %v1596
    %1639 = vmatpush.msra.mxu0 %v1594
    %1640 = vmatmul.f32.gmra.mxu0 %v1619
    %v1641 = vpop.f32.mrf.mxu0
    %v1642 = vadd.f32 0.0, %v1641
    %1643 = vmatmul.f32.gmra.mxu0 %v1622
    %v1644 = vpop.f32.mrf.mxu0
    %v1645 = vadd.f32 0.0, %v1644
    %1646 = vdwg.mxu0
    %1647 = vmatpush.msra.mxu0 0.0
    %1648 = vmatpush.msra.mxu0 0.0
    %1649 = vmatpush.msra.mxu0 0.0
    %1650 = vmatpush.msra.mxu0 0.0
    %1651 = vmatpush.msra.mxu0 %v1617
    %1652 = vmatpush.msra.mxu0 %v1615
    %1653 = vmatpush.msra.mxu0 %v1613
    %1654 = vmatpush.msra.mxu0 %v1611
    %1655 = vmatpush.msra.mxu0 %v1609
    %1656 = vmatpush.msra.mxu0 %v1607
    %1657 = vmatpush.msra.mxu0 %v1605
    %1658 = vmatpush.msra.mxu0 %v1603
    %1659 = vmatpush.msra.mxu0 %v1601
    %1660 = vmatpush.msra.mxu0 %v1599
    %1661 = vmatpush.msra.mxu0 %v1597
    %1662 = vmatpush.msra.mxu0 %v1595
    %1663 = vmatmul.f32.gmra.mxu0 %v1619
    %v1664 = vpop.f32.mrf.mxu0
    %v1665 = vadd.f32 0.0, %v1664
    %1666 = vmatmul.f32.gmra.mxu0 %v1622
    %v1667 = vpop.f32.mrf.mxu0
    %v1668 = vadd.f32 0.0, %v1667
    %1669 = vdwg.mxu0
    %v1670 = vadd.f32 %v1588, %v1642
    %v1671 = vadd.f32 %v1589, %v1665
    %v1672 = vadd.f32 %v1590, %v1645
    %v1673 = vadd.f32 %v1591, %v1668
    %1674 = vmatpush.msra.mxu0 0.0
    %1675 = vmatpush.msra.mxu0 0.0
    %1676 = vmatpush.msra.mxu0 0.0
    %1677 = vmatpush.msra.mxu0 0.0
    %1678 = vmatpush.msra.mxu0 %v1322
    %1679 = vmatpush.msra.mxu0 %v1320
    %1680 = vmatpush.msra.mxu0 %v1318
    %1681 = vmatpush.msra.mxu0 %v1316
    %1682 = vmatpush.msra.mxu0 %v1314
    %1683 = vmatpush.msra.mxu0 %v1312
    %1684 = vmatpush.msra.mxu0 %v1310
    %1685 = vmatpush.msra.mxu0 %v1308
    %1686 = vmatpush.msra.mxu0 %v1306
    %1687 = vmatpush.msra.mxu0 %v1304
    %1688 = vmatpush.msra.mxu0 %v1302
    %1689 = vmatpush.msra.mxu0 %v1300
    %1690 = vmatmul.f32.gmra.mxu0 %v1455
    %v1691 = vpop.f32.mrf.mxu0
    %v1692 = vadd.f32 0.0, %v1691
    %1693 = vmatmul.f32.gmra.mxu0 %v1458
    %v1694 = vpop.f32.mrf.mxu0
    %v1695 = vadd.f32 0.0, %v1694
    %1696 = vdwg.mxu0
    %1697 = vmatpush.msra.mxu0 0.0
    %1698 = vmatpush.msra.mxu0 0.0
    %1699 = vmatpush.msra.mxu0 0.0
    %1700 = vmatpush.msra.mxu0 0.0
    %1701 = vmatpush.msra.mxu0 %v1323
    %1702 = vmatpush.msra.mxu0 %v1321
    %1703 = vmatpush.msra.mxu0 %v1319
    %1704 = vmatpush.msra.mxu0 %v1317
    %1705 = vmatpush.msra.mxu0 %v1315
    %1706 = vmatpush.msra.mxu0 %v1313
    %1707 = vmatpush.msra.mxu0 %v1311
    %1708 = vmatpush.msra.mxu0 %v1309
    %1709 = vmatpush.msra.mxu0 %v1307
    %1710 = vmatpush.msra.mxu0 %v1305
    %1711 = vmatpush.msra.mxu0 %v1303
    %1712 = vmatpush.msra.mxu0 %v1301
    %1713 = vmatmul.f32.gmra.mxu0 %v1455
    %v1714 = vpop.f32.mrf.mxu0
    %v1715 = vadd.f32 0.0, %v1714
    %1716 = vmatmul.f32.gmra.mxu0 %v1458
    %v1717 = vpop.f32.mrf.mxu0
    %v1718 = vadd.f32 0.0, %v1717
    %1719 = vdwg.mxu0
    %1720 = vmatpush.msra.mxu0 0.0
    %1721 = vmatpush.msra.mxu0 0.0
    %1722 = vmatpush.msra.mxu0 0.0
    %1723 = vmatpush.msra.mxu0 0.0
    %1724 = vmatpush.msra.mxu0 %v1296
    %1725 = vmatpush.msra.mxu0 %v1294
    %1726 = vmatpush.msra.mxu0 %v1292
    %1727 = vmatpush.msra.mxu0 %v1290
    %1728 = vmatpush.msra.mxu0 %v1288
    %1729 = vmatpush.msra.mxu0 %v1286
    %1730 = vmatpush.msra.mxu0 %v1284
    %1731 = vmatpush.msra.mxu0 %v1282
    %1732 = vmatpush.msra.mxu0 %v1280
    %1733 = vmatpush.msra.mxu0 %v1278
    %1734 = vmatpush.msra.mxu0 %v1276
    %1735 = vmatpush.msra.mxu0 %v1274
    %1736 = vmatmul.f32.gmra.mxu0 %v1325
    %v1737 = vpop.f32.mrf.mxu0
    %v1738 = vadd.f32 %v1692, %v1737
    %1739 = vmatmul.f32.gmra.mxu0 %v1328
    %v1740 = vpop.f32.mrf.mxu0
    %v1741 = vadd.f32 %v1695, %v1740
    %1742 = vdwg.mxu0
    %1743 = vmatpush.msra.mxu0 0.0
    %1744 = vmatpush.msra.mxu0 0.0
    %1745 = vmatpush.msra.mxu0 0.0
    %1746 = vmatpush.msra.mxu0 0.0
    %1747 = vmatpush.msra.mxu0 %v1297
    %1748 = vmatpush.msra.mxu0 %v1295
    %1749 = vmatpush.msra.mxu0 %v1293
    %1750 = vmatpush.msra.mxu0 %v1291
    %1751 = vmatpush.msra.mxu0 %v1289
    %1752 = vmatpush.msra.mxu0 %v1287
    %1753 = vmatpush.msra.mxu0 %v1285
    %1754 = vmatpush.msra.mxu0 %v1283
    %1755 = vmatpush.msra.mxu0 %v1281
    %1756 = vmatpush.msra.mxu0 %v1279
    %1757 = vmatpush.msra.mxu0 %v1277
    %1758 = vmatpush.msra.mxu0 %v1275
    %1759 = vmatmul.f32.gmra.mxu0 %v1325
    %v1760 = vpop.f32.mrf.mxu0
    %v1761 = vadd.f32 %v1715, %v1760
    %1762 = vmatmul.f32.gmra.mxu0 %v1328
    %v1763 = vpop.f32.mrf.mxu0
    %v1764 = vadd.f32 %v1718, %v1763
    %1765 = vdwg.mxu0
    %1766 = vmatpush.msra.mxu0 0.0
    %1767 = vmatpush.msra.mxu0 0.0
    %1768 = vmatpush.msra.mxu0 0.0
    %1769 = vmatpush.msra.mxu0 0.0
    %1770 = vmatpush.msra.mxu0 %v1452
    %1771 = vmatpush.msra.mxu0 %v1450
    %1772 = vmatpush.msra.mxu0 %v1448
    %1773 = vmatpush.msra.mxu0 %v1446
    %1774 = vmatpush.msra.mxu0 %v1444
    %1775 = vmatpush.msra.mxu0 %v1442
    %1776 = vmatpush.msra.mxu0 %v1440
    %1777 = vmatpush.msra.mxu0 %v1438
    %1778 = vmatpush.msra.mxu0 %v1436
    %1779 = vmatpush.msra.mxu0 %v1434
    %1780 = vmatpush.msra.mxu0 %v1432
    %1781 = vmatpush.msra.mxu0 %v1430
    %1782 = vmatmul.f32.gmra.mxu0 %v1537
    %v1783 = vpop.f32.mrf.mxu0
    %v1784 = vadd.f32 0.0, %v1783
    %1785 = vmatmul.f32.gmra.mxu0 %v1540
    %v1786 = vpop.f32.mrf.mxu0
    %v1787 = vadd.f32 0.0, %v1786
    %1788 = vdwg.mxu0
    %1789 = vmatpush.msra.mxu0 0.0
    %1790 = vmatpush.msra.mxu0 0.0
    %1791 = vmatpush.msra.mxu0 0.0
    %1792 = vmatpush.msra.mxu0 0.0
    %1793 = vmatpush.msra.mxu0 %v1453
    %1794 = vmatpush.msra.mxu0 %v1451
    %1795 = vmatpush.msra.mxu0 %v1449
    %1796 = vmatpush.msra.mxu0 %v1447
    %1797 = vmatpush.msra.mxu0 %v1445
    %1798 = vmatpush.msra.mxu0 %v1443
    %1799 = vmatpush.msra.mxu0 %v1441
    %1800 = vmatpush.msra.mxu0 %v1439
    %1801 = vmatpush.msra.mxu0 %v1437
    %1802 = vmatpush.msra.mxu0 %v1435
    %1803 = vmatpush.msra.mxu0 %v1433
    %1804 = vmatpush.msra.mxu0 %v1431
    %1805 = vmatmul.f32.gmra.mxu0 %v1537
    %v1806 = vpop.f32.mrf.mxu0
    %v1807 = vadd.f32 0.0, %v1806
    %1808 = vmatmul.f32.gmra.mxu0 %v1540
    %v1809 = vpop.f32.mrf.mxu0
    %v1810 = vadd.f32 0.0, %v1809
    %1811 = vdwg.mxu0
    %v1812 = vadd.f32 %v1738, %v1784
    %v1813 = vadd.f32 %v1761, %v1807
    %v1814 = vadd.f32 %v1741, %v1787
    %v1815 = vadd.f32 %v1764, %v1810
    %1816 = vmatpush.msra.mxu0 0.0
    %1817 = vmatpush.msra.mxu0 0.0
    %1818 = vmatpush.msra.mxu0 0.0
    %1819 = vmatpush.msra.mxu0 0.0
    %1820 = vmatpush.msra.mxu0 %v1534
    %1821 = vmatpush.msra.mxu0 %v1532
    %1822 = vmatpush.msra.mxu0 %v1530
    %1823 = vmatpush.msra.mxu0 %v1528
    %1824 = vmatpush.msra.mxu0 %v1526
    %1825 = vmatpush.msra.mxu0 %v1524
    %1826 = vmatpush.msra.mxu0 %v1522
    %1827 = vmatpush.msra.mxu0 %v1520
    %1828 = vmatpush.msra.mxu0 %v1518
    %1829 = vmatpush.msra.mxu0 %v1516
    %1830 = vmatpush.msra.mxu0 %v1514
    %1831 = vmatpush.msra.mxu0 %v1512
    %1832 = vmatmul.f32.gmra.mxu0 %v1619
    %v1833 = vpop.f32.mrf.mxu0
    %v1834 = vadd.f32 0.0, %v1833
    %1835 = vmatmul.f32.gmra.mxu0 %v1622
    %v1836 = vpop.f32.mrf.mxu0
    %v1837 = vadd.f32 0.0, %v1836
    %1838 = vdwg.mxu0
    %1839 = vmatpush.msra.mxu0 0.0
    %1840 = vmatpush.msra.mxu0 0.0
    %1841 = vmatpush.msra.mxu0 0.0
    %1842 = vmatpush.msra.mxu0 0.0
    %1843 = vmatpush.msra.mxu0 %v1535
    %1844 = vmatpush.msra.mxu0 %v1533
    %1845 = vmatpush.msra.mxu0 %v1531
    %1846 = vmatpush.msra.mxu0 %v1529
    %1847 = vmatpush.msra.mxu0 %v1527
    %1848 = vmatpush.msra.mxu0 %v1525
    %1849 = vmatpush.msra.mxu0 %v1523
    %1850 = vmatpush.msra.mxu0 %v1521
    %1851 = vmatpush.msra.mxu0 %v1519
    %1852 = vmatpush.msra.mxu0 %v1517
    %1853 = vmatpush.msra.mxu0 %v1515
    %1854 = vmatpush.msra.mxu0 %v1513
    %1855 = vmatmul.f32.gmra.mxu0 %v1619
    %v1856 = vpop.f32.mrf.mxu0
    %v1857 = vadd.f32 0.0, %v1856
    %1858 = vmatmul.f32.gmra.mxu0 %v1622
    %v1859 = vpop.f32.mrf.mxu0
    %v1860 = vadd.f32 0.0, %v1859
    %1861 = vdwg.mxu0
    %v1862 = vadd.f32 %v1812, %v1834
    %v1863 = vadd.f32 %v1813, %v1857
    %v1864 = vadd.f32 %v1814, %v1837
    %v1865 = vadd.f32 %v1815, %v1860
    %v1866 = vld [vmem:[%s1 + $0x12] sm:$0xff]
    %v1867 = vld [vmem:[%s1 + $0x1a] sm:$0x3f]
    %v1869 = vsel %vm107, %v1866, 0
    %v1872 = vsel %vm107, %v1867, 0
    %1874 = vmatpush.msra.mxu0 0.0
    %1875 = vmatpush.msra.mxu0 0.0
    %1876 = vmatpush.msra.mxu0 0.0
    %1877 = vmatpush.msra.mxu0 0.0
    %1878 = vmatpush.msra.mxu0 %v1616
    %1879 = vmatpush.msra.mxu0 %v1614
    %1880 = vmatpush.msra.mxu0 %v1612
    %1881 = vmatpush.msra.mxu0 %v1610
    %1882 = vmatpush.msra.mxu0 %v1608
    %1883 = vmatpush.msra.mxu0 %v1606
    %1884 = vmatpush.msra.mxu0 %v1604
    %1885 = vmatpush.msra.mxu0 %v1602
    %1886 = vmatpush.msra.mxu0 %v1600
    %1887 = vmatpush.msra.mxu0 %v1598
    %1888 = vmatpush.msra.mxu0 %v1596
    %1889 = vmatpush.msra.mxu0 %v1594
    %1890 = vmatmul.f32.gmra.mxu0 %v1869
    %v1891 = vpop.f32.mrf.mxu0
    %v1892 = vadd.f32 0.0, %v1891
    %1893 = vmatmul.f32.gmra.mxu0 %v1872
    %v1894 = vpop.f32.mrf.mxu0
    %v1895 = vadd.f32 0.0, %v1894
    %1896 = vdwg.mxu0
    %1897 = vmatpush.msra.mxu0 0.0
    %1898 = vmatpush.msra.mxu0 0.0
    %1899 = vmatpush.msra.mxu0 0.0
    %1900 = vmatpush.msra.mxu0 0.0
    %1901 = vmatpush.msra.mxu0 %v1617
    %1902 = vmatpush.msra.mxu0 %v1615
    %1903 = vmatpush.msra.mxu0 %v1613
    %1904 = vmatpush.msra.mxu0 %v1611
    %1905 = vmatpush.msra.mxu0 %v1609
    %1906 = vmatpush.msra.mxu0 %v1607
    %1907 = vmatpush.msra.mxu0 %v1605
    %1908 = vmatpush.msra.mxu0 %v1603
    %1909 = vmatpush.msra.mxu0 %v1601
    %1910 = vmatpush.msra.mxu0 %v1599
    %1911 = vmatpush.msra.mxu0 %v1597
    %1912 = vmatpush.msra.mxu0 %v1595
    %1913 = vmatmul.f32.gmra.mxu0 %v1869
    %v1914 = vpop.f32.mrf.mxu0
    %v1915 = vadd.f32 0.0, %v1914
    %1916 = vmatmul.f32.gmra.mxu0 %v1872
    %v1917 = vpop.f32.mrf.mxu0
    %v1918 = vadd.f32 0.0, %v1917
    %1919 = vdwg.mxu0
    %v1920 = vadd.f32 %v1862, %v1892
    %v1921 = vadd.f32 %v1863, %v1915
    %v1922 = vadd.f32 %v1864, %v1895
    %v1923 = vadd.f32 %v1865, %v1918
    %v1924 = vmax.f32 %v1670, %v1920
    %v1925 = vmax.f32 %v1671, %v1921
    %v1926 = vmax.f32 %v1672, %v1922
    %v1927 = vmax.f32 %v1673, %v1923
    %1932 = vrot.lane.b32.xlu0 %v1924, 16
    %v1933 = vpop.permute.xlu0 %1932
    %1934 = vrot.lane.b32.xlu0 %v1925, 16
    %v1935 = vpop.permute.xlu0 %1934
    %1936 = vrot.lane.b32.xlu0 %v1926, 16
    %v1937 = vpop.permute.xlu0 %1936
    %1938 = vrot.lane.b32.xlu0 %v1927, 16
    %v1939 = vpop.permute.xlu0 %1938
    %v1940 = vsel %vm727, %v1933, %v1935
    %v1941 = vsel %vm727, %v1937, %v1939
    %v1944 = vmax.f32 %v1924, %v1940
    %v1945 = vmax.f32 %v1926, %v1941
    %v1946 = vld [vmem:[%s3] sm:$0x1]
    %v1948 = vperm.slane %v1946, 0
    %v1950 = vadd.f32 %v1944, %v1948
    %v1951 = vadd.f32 %v1945, %v1948
    %v1952 = vmax.f32 %v1950, 0.0
    %v1953 = vmax.f32 %v1951, 0.0
    %1954 = vst.msk [vmem:[#allocation2 + $0xe] sm:$0xff] %vm742, %v1952
    %1955 = vst.msk [vmem:[#allocation2 + $0x16] sm:$0x3f] %vm744, %v1953
    %v1956 = vld [vmem:[#allocation2 + $0xe] sm:$0xff]
    %v1957 = vld [vmem:[#allocation2 + $0x16] sm:$0x3]
    %v1958 = vld [vmem:[%s4] sm:$0xff]
    %v1959 = vld [vmem:[%s4 + $0x8] sm:$0xff]
    %v1960 = vld [vmem:[%s4 + $0x10] sm:$0xff]
    %v1961 = vld [vmem:[%s4 + $0x18] sm:$0xff]
    %v1962 = vld [vmem:[%s4 + $0x20] sm:$0xff]
    %v1963 = vld [vmem:[%s4 + $0x28] sm:$0xff]
    %v1964 = vld [vmem:[%s4 + $0x30] sm:$0xff]
    %v1965 = vld [vmem:[%s4 + $0x38] sm:$0xff]
    %v1966 = vld [vmem:[%s4 + $0x40] sm:$0xff]
    %v1967 = vld [vmem:[%s4 + $0x48] sm:$0xff]
    %v1968 = vld [vmem:[%s4 + $0x50] sm:$0xff]
    %v1969 = vld [vmem:[%s4 + $0x58] sm:$0xff]
    %v1970 = vld [vmem:[%s4 + $0x60] sm:$0xff]
    %v1971 = vld [vmem:[%s4 + $0x68] sm:$0xff]
    %v1972 = vld [vmem:[%s4 + $0x70] sm:$0xff]
    %v1973 = vld [vmem:[%s4 + $0x78] sm:$0xff]
    %v1974 = vld [vmem:[%s4 + $0x80] sm:$0xff]
    %v1975 = vld [vmem:[%s4 + $0x88] sm:$0xff]
    %v1976 = vld [vmem:[%s4 + $0x90] sm:$0xff]
    %v1977 = vld [vmem:[%s4 + $0x98] sm:$0xff]
    %v1978 = vld [vmem:[%s4 + $0xa0] sm:$0xff]
    %v1979 = vld [vmem:[%s4 + $0xa8] sm:$0xff]
    %v1980 = vld [vmem:[%s4 + $0xb0] sm:$0xff]
    %v1981 = vld [vmem:[%s4 + $0xb8] sm:$0xff]
    %v1982 = vld [vmem:[%s4 + $0xc0] sm:$0xff]
    %v1983 = vld [vmem:[%s4 + $0xc8] sm:$0xff]
    %v1984 = vld [vmem:[%s4 + $0xd0] sm:$0xff]
    %v1985 = vld [vmem:[%s4 + $0xd8] sm:$0xff]
    %v1986 = vld [vmem:[#allocation2 + $0xf] sm:$0xff]
    %v1987 = vld [vmem:[#allocation2 + $0x17] sm:$0x3]
    %v1988 = vld [vmem:[%s778] sm:$0xff]
    %v1989 = vld [vmem:[%s778 + $0x8] sm:$0xff]
    %v1990 = vld [vmem:[%s778 + $0x10] sm:$0xff]
    %v1991 = vld [vmem:[%s778 + $0x18] sm:$0xff]
    %v1992 = vld [vmem:[%s778 + $0x20] sm:$0xff]
    %v1993 = vld [vmem:[%s778 + $0x28] sm:$0xff]
    %v1994 = vld [vmem:[%s778 + $0x30] sm:$0xff]
    %v1995 = vld [vmem:[%s778 + $0x38] sm:$0xff]
    %v1996 = vld [vmem:[%s778 + $0x40] sm:$0xff]
    %v1997 = vld [vmem:[%s778 + $0x48] sm:$0xff]
    %v1998 = vld [vmem:[%s778 + $0x50] sm:$0xff]
    %v1999 = vld [vmem:[%s778 + $0x58] sm:$0xff]
    %v2000 = vld [vmem:[%s778 + $0x60] sm:$0xff]
    %v2001 = vld [vmem:[%s778 + $0x68] sm:$0xff]
    %v2002 = vld [vmem:[%s778 + $0x70] sm:$0xff]
    %v2003 = vld [vmem:[%s778 + $0x78] sm:$0xff]
    %v2004 = vld [vmem:[%s778 + $0x80] sm:$0xff]
    %v2005 = vld [vmem:[%s778 + $0x88] sm:$0xff]
    %v2006 = vld [vmem:[%s778 + $0x90] sm:$0xff]
    %v2007 = vld [vmem:[%s778 + $0x98] sm:$0xff]
    %v2008 = vld [vmem:[%s778 + $0xa0] sm:$0xff]
    %v2009 = vld [vmem:[%s778 + $0xa8] sm:$0xff]
    %v2010 = vld [vmem:[%s778 + $0xb0] sm:$0xff]
    %v2011 = vld [vmem:[%s778 + $0xb8] sm:$0xff]
    %v2012 = vld [vmem:[%s778 + $0xc0] sm:$0xff]
    %v2013 = vld [vmem:[%s778 + $0xc8] sm:$0xff]
    %v2014 = vld [vmem:[%s778 + $0xd0] sm:$0xff]
    %v2015 = vld [vmem:[%s778 + $0xd8] sm:$0xff]
    %v2017 = vsel %vm742, %v1986, 0
    %v2020 = vsel %vm742, %v1987, 0
    %2022 = vmatpush.msra.mxu0 0.0
    %2023 = vmatpush.msra.mxu0 0.0
    %2024 = vmatpush.msra.mxu0 %v2014
    %2025 = vmatpush.msra.mxu0 %v2012
    %2026 = vmatpush.msra.mxu0 %v2010
    %2027 = vmatpush.msra.mxu0 %v2008
    %2028 = vmatpush.msra.mxu0 %v2006
    %2029 = vmatpush.msra.mxu0 %v2004
    %2030 = vmatpush.msra.mxu0 %v2002
    %2031 = vmatpush.msra.mxu0 %v2000
    %2032 = vmatpush.msra.mxu0 %v1998
    %2033 = vmatpush.msra.mxu0 %v1996
    %2034 = vmatpush.msra.mxu0 %v1994
    %2035 = vmatpush.msra.mxu0 %v1992
    %2036 = vmatpush.msra.mxu0 %v1990
    %2037 = vmatpush.msra.mxu0 %v1988
    %2038 = vmatmul.f32.gmra.mxu0 %v2017
    %v2039 = vpop.f32.mrf.mxu0
    %v2040 = vadd.f32 0.0, %v2039
    %2041 = vmatmul.f32.gmra.mxu0 %v2020
    %v2042 = vpop.f32.mrf.mxu0
    %v2043 = vadd.f32 0.0, %v2042
    %2044 = vdwg.mxu0
    %2045 = vmatpush.msra.mxu0 0.0
    %2046 = vmatpush.msra.mxu0 0.0
    %2047 = vmatpush.msra.mxu0 %v2015
    %2048 = vmatpush.msra.mxu0 %v2013
    %2049 = vmatpush.msra.mxu0 %v2011
    %2050 = vmatpush.msra.mxu0 %v2009
    %2051 = vmatpush.msra.mxu0 %v2007
    %2052 = vmatpush.msra.mxu0 %v2005
    %2053 = vmatpush.msra.mxu0 %v2003
    %2054 = vmatpush.msra.mxu0 %v2001
    %2055 = vmatpush.msra.mxu0 %v1999
    %2056 = vmatpush.msra.mxu0 %v1997
    %2057 = vmatpush.msra.mxu0 %v1995
    %2058 = vmatpush.msra.mxu0 %v1993
    %2059 = vmatpush.msra.mxu0 %v1991
    %2060 = vmatpush.msra.mxu0 %v1989
    %2061 = vmatmul.f32.gmra.mxu0 %v2017
    %v2062 = vpop.f32.mrf.mxu0
    %v2063 = vadd.f32 0.0, %v2062
    %2064 = vmatmul.f32.gmra.mxu0 %v2020
    %v2065 = vpop.f32.mrf.mxu0
    %v2066 = vadd.f32 0.0, %v2065
    %2067 = vdwg.mxu0
    %v2069 = vsel %vm742, %v1956, 0
    %v2072 = vsel %vm742, %v1957, 0
    %2074 = vmatpush.msra.mxu0 0.0
    %2075 = vmatpush.msra.mxu0 0.0
    %2076 = vmatpush.msra.mxu0 %v1984
    %2077 = vmatpush.msra.mxu0 %v1982
    %2078 = vmatpush.msra.mxu0 %v1980
    %2079 = vmatpush.msra.mxu0 %v1978
    %2080 = vmatpush.msra.mxu0 %v1976
    %2081 = vmatpush.msra.mxu0 %v1974
    %2082 = vmatpush.msra.mxu0 %v1972
    %2083 = vmatpush.msra.mxu0 %v1970
    %2084 = vmatpush.msra.mxu0 %v1968
    %2085 = vmatpush.msra.mxu0 %v1966
    %2086 = vmatpush.msra.mxu0 %v1964
    %2087 = vmatpush.msra.mxu0 %v1962
    %2088 = vmatpush.msra.mxu0 %v1960
    %2089 = vmatpush.msra.mxu0 %v1958
    %2090 = vmatmul.f32.gmra.mxu0 %v2069
    %v2091 = vpop.f32.mrf.mxu0
    %v2092 = vadd.f32 %v2040, %v2091
    %2093 = vmatmul.f32.gmra.mxu0 %v2072
    %v2094 = vpop.f32.mrf.mxu0
    %v2095 = vadd.f32 %v2043, %v2094
    %2096 = vdwg.mxu0
    %2097 = vmatpush.msra.mxu0 0.0
    %2098 = vmatpush.msra.mxu0 0.0
    %2099 = vmatpush.msra.mxu0 %v1985
    %2100 = vmatpush.msra.mxu0 %v1983
    %2101 = vmatpush.msra.mxu0 %v1981
    %2102 = vmatpush.msra.mxu0 %v1979
    %2103 = vmatpush.msra.mxu0 %v1977
    %2104 = vmatpush.msra.mxu0 %v1975
    %2105 = vmatpush.msra.mxu0 %v1973
    %2106 = vmatpush.msra.mxu0 %v1971
    %2107 = vmatpush.msra.mxu0 %v1969
    %2108 = vmatpush.msra.mxu0 %v1967
    %2109 = vmatpush.msra.mxu0 %v1965
    %2110 = vmatpush.msra.mxu0 %v1963
    %2111 = vmatpush.msra.mxu0 %v1961
    %2112 = vmatpush.msra.mxu0 %v1959
    %2113 = vmatmul.f32.gmra.mxu0 %v2069
    %v2114 = vpop.f32.mrf.mxu0
    %v2115 = vadd.f32 %v2063, %v2114
    %2116 = vmatmul.f32.gmra.mxu0 %v2072
    %v2117 = vpop.f32.mrf.mxu0
    %v2118 = vadd.f32 %v2066, %v2117
    %2119 = vdwg.mxu0
    %v2120 = vld [vmem:[#allocation2 + $0x10] sm:$0xff]
    %v2121 = vld [vmem:[#allocation2 + $0x18] sm:$0x3]
    %v2122 = vld [vmem:[%s913] sm:$0xff]
    %v2123 = vld [vmem:[%s913 + $0x8] sm:$0xff]
    %v2124 = vld [vmem:[%s913 + $0x10] sm:$0xff]
    %v2125 = vld [vmem:[%s913 + $0x18] sm:$0xff]
    %v2126 = vld [vmem:[%s913 + $0x20] sm:$0xff]
    %v2127 = vld [vmem:[%s913 + $0x28] sm:$0xff]
    %v2128 = vld [vmem:[%s913 + $0x30] sm:$0xff]
    %v2129 = vld [vmem:[%s913 + $0x38] sm:$0xff]
    %v2130 = vld [vmem:[%s913 + $0x40] sm:$0xff]
    %v2131 = vld [vmem:[%s913 + $0x48] sm:$0xff]
    %v2132 = vld [vmem:[%s913 + $0x50] sm:$0xff]
    %v2133 = vld [vmem:[%s913 + $0x58] sm:$0xff]
    %v2134 = vld [vmem:[%s913 + $0x60] sm:$0xff]
    %v2135 = vld [vmem:[%s913 + $0x68] sm:$0xff]
    %v2136 = vld [vmem:[%s913 + $0x70] sm:$0xff]
    %v2137 = vld [vmem:[%s913 + $0x78] sm:$0xff]
    %v2138 = vld [vmem:[%s913 + $0x80] sm:$0xff]
    %v2139 = vld [vmem:[%s913 + $0x88] sm:$0xff]
    %v2140 = vld [vmem:[%s913 + $0x90] sm:$0xff]
    %v2141 = vld [vmem:[%s913 + $0x98] sm:$0xff]
    %v2142 = vld [vmem:[%s913 + $0xa0] sm:$0xff]
    %v2143 = vld [vmem:[%s913 + $0xa8] sm:$0xff]
    %v2144 = vld [vmem:[%s913 + $0xb0] sm:$0xff]
    %v2145 = vld [vmem:[%s913 + $0xb8] sm:$0xff]
    %v2146 = vld [vmem:[%s913 + $0xc0] sm:$0xff]
    %v2147 = vld [vmem:[%s913 + $0xc8] sm:$0xff]
    %v2148 = vld [vmem:[%s913 + $0xd0] sm:$0xff]
    %v2149 = vld [vmem:[%s913 + $0xd8] sm:$0xff]
    %v2151 = vsel %vm742, %v2120, 0
    %v2154 = vsel %vm742, %v2121, 0
    %2156 = vmatpush.msra.mxu0 0.0
    %2157 = vmatpush.msra.mxu0 0.0
    %2158 = vmatpush.msra.mxu0 %v2148
    %2159 = vmatpush.msra.mxu0 %v2146
    %2160 = vmatpush.msra.mxu0 %v2144
    %2161 = vmatpush.msra.mxu0 %v2142
    %2162 = vmatpush.msra.mxu0 %v2140
    %2163 = vmatpush.msra.mxu0 %v2138
    %2164 = vmatpush.msra.mxu0 %v2136
    %2165 = vmatpush.msra.mxu0 %v2134
    %2166 = vmatpush.msra.mxu0 %v2132
    %2167 = vmatpush.msra.mxu0 %v2130
    %2168 = vmatpush.msra.mxu0 %v2128
    %2169 = vmatpush.msra.mxu0 %v2126
    %2170 = vmatpush.msra.mxu0 %v2124
    %2171 = vmatpush.msra.mxu0 %v2122
    %2172 = vmatmul.f32.gmra.mxu0 %v2151
    %v2173 = vpop.f32.mrf.mxu0
    %v2174 = vadd.f32 0.0, %v2173
    %2175 = vmatmul.f32.gmra.mxu0 %v2154
    %v2176 = vpop.f32.mrf.mxu0
    %v2177 = vadd.f32 0.0, %v2176
    %2178 = vdwg.mxu0
    %2179 = vmatpush.msra.mxu0 0.0
    %2180 = vmatpush.msra.mxu0 0.0
    %2181 = vmatpush.msra.mxu0 %v2149
    %2182 = vmatpush.msra.mxu0 %v2147
    %2183 = vmatpush.msra.mxu0 %v2145
    %2184 = vmatpush.msra.mxu0 %v2143
    %2185 = vmatpush.msra.mxu0 %v2141
    %2186 = vmatpush.msra.mxu0 %v2139
    %2187 = vmatpush.msra.mxu0 %v2137
    %2188 = vmatpush.msra.mxu0 %v2135
    %2189 = vmatpush.msra.mxu0 %v2133
    %2190 = vmatpush.msra.mxu0 %v2131
    %2191 = vmatpush.msra.mxu0 %v2129
    %2192 = vmatpush.msra.mxu0 %v2127
    %2193 = vmatpush.msra.mxu0 %v2125
    %2194 = vmatpush.msra.mxu0 %v2123
    %2195 = vmatmul.f32.gmra.mxu0 %v2151
    %v2196 = vpop.f32.mrf.mxu0
    %v2197 = vadd.f32 0.0, %v2196
    %2198 = vmatmul.f32.gmra.mxu0 %v2154
    %v2199 = vpop.f32.mrf.mxu0
    %v2200 = vadd.f32 0.0, %v2199
    %2201 = vdwg.mxu0
    %v2202 = vadd.f32 %v2092, %v2174
    %v2203 = vadd.f32 %v2115, %v2197
    %v2204 = vadd.f32 %v2095, %v2177
    %v2205 = vadd.f32 %v2118, %v2200
    %v2206 = vld [vmem:[#allocation2 + $0x11] sm:$0xff]
    %v2207 = vld [vmem:[#allocation2 + $0x19] sm:$0x3]
    %v2208 = vld [vmem:[%s1000] sm:$0xff]
    %v2209 = vld [vmem:[%s1000 + $0x8] sm:$0xff]
    %v2210 = vld [vmem:[%s1000 + $0x10] sm:$0xff]
    %v2211 = vld [vmem:[%s1000 + $0x18] sm:$0xff]
    %v2212 = vld [vmem:[%s1000 + $0x20] sm:$0xff]
    %v2213 = vld [vmem:[%s1000 + $0x28] sm:$0xff]
    %v2214 = vld [vmem:[%s1000 + $0x30] sm:$0xff]
    %v2215 = vld [vmem:[%s1000 + $0x38] sm:$0xff]
    %v2216 = vld [vmem:[%s1000 + $0x40] sm:$0xff]
    %v2217 = vld [vmem:[%s1000 + $0x48] sm:$0xff]
    %v2218 = vld [vmem:[%s1000 + $0x50] sm:$0xff]
    %v2219 = vld [vmem:[%s1000 + $0x58] sm:$0xff]
    %v2220 = vld [vmem:[%s1000 + $0x60] sm:$0xff]
    %v2221 = vld [vmem:[%s1000 + $0x68] sm:$0xff]
    %v2222 = vld [vmem:[%s1000 + $0x70] sm:$0xff]
    %v2223 = vld [vmem:[%s1000 + $0x78] sm:$0xff]
    %v2224 = vld [vmem:[%s1000 + $0x80] sm:$0xff]
    %v2225 = vld [vmem:[%s1000 + $0x88] sm:$0xff]
    %v2226 = vld [vmem:[%s1000 + $0x90] sm:$0xff]
    %v2227 = vld [vmem:[%s1000 + $0x98] sm:$0xff]
    %v2228 = vld [vmem:[%s1000 + $0xa0] sm:$0xff]
    %v2229 = vld [vmem:[%s1000 + $0xa8] sm:$0xff]
    %v2230 = vld [vmem:[%s1000 + $0xb0] sm:$0xff]
    %v2231 = vld [vmem:[%s1000 + $0xb8] sm:$0xff]
    %v2232 = vld [vmem:[%s1000 + $0xc0] sm:$0xff]
    %v2233 = vld [vmem:[%s1000 + $0xc8] sm:$0xff]
    %v2234 = vld [vmem:[%s1000 + $0xd0] sm:$0xff]
    %v2235 = vld [vmem:[%s1000 + $0xd8] sm:$0xff]
    %v2237 = vsel %vm742, %v2206, 0
    %v2240 = vsel %vm742, %v2207, 0
    %2242 = vmatpush.msra.mxu0 0.0
    %2243 = vmatpush.msra.mxu0 0.0
    %2244 = vmatpush.msra.mxu0 %v2234
    %2245 = vmatpush.msra.mxu0 %v2232
    %2246 = vmatpush.msra.mxu0 %v2230
    %2247 = vmatpush.msra.mxu0 %v2228
    %2248 = vmatpush.msra.mxu0 %v2226
    %2249 = vmatpush.msra.mxu0 %v2224
    %2250 = vmatpush.msra.mxu0 %v2222
    %2251 = vmatpush.msra.mxu0 %v2220
    %2252 = vmatpush.msra.mxu0 %v2218
    %2253 = vmatpush.msra.mxu0 %v2216
    %2254 = vmatpush.msra.mxu0 %v2214
    %2255 = vmatpush.msra.mxu0 %v2212
    %2256 = vmatpush.msra.mxu0 %v2210
    %2257 = vmatpush.msra.mxu0 %v2208
    %2258 = vmatmul.f32.gmra.mxu0 %v2237
    %v2259 = vpop.f32.mrf.mxu0
    %v2260 = vadd.f32 0.0, %v2259
    %2261 = vmatmul.f32.gmra.mxu0 %v2240
    %v2262 = vpop.f32.mrf.mxu0
    %v2263 = vadd.f32 0.0, %v2262
    %2264 = vdwg.mxu0
    %2265 = vmatpush.msra.mxu0 0.0
    %2266 = vmatpush.msra.mxu0 0.0
    %2267 = vmatpush.msra.mxu0 %v2235
    %2268 = vmatpush.msra.mxu0 %v2233
    %2269 = vmatpush.msra.mxu0 %v2231
    %2270 = vmatpush.msra.mxu0 %v2229
    %2271 = vmatpush.msra.mxu0 %v2227
    %2272 = vmatpush.msra.mxu0 %v2225
    %2273 = vmatpush.msra.mxu0 %v2223
    %2274 = vmatpush.msra.mxu0 %v2221
    %2275 = vmatpush.msra.mxu0 %v2219
    %2276 = vmatpush.msra.mxu0 %v2217
    %2277 = vmatpush.msra.mxu0 %v2215
    %2278 = vmatpush.msra.mxu0 %v2213
    %2279 = vmatpush.msra.mxu0 %v2211
    %2280 = vmatpush.msra.mxu0 %v2209
    %2281 = vmatmul.f32.gmra.mxu0 %v2237
    %v2282 = vpop.f32.mrf.mxu0
    %v2283 = vadd.f32 0.0, %v2282
    %2284 = vmatmul.f32.gmra.mxu0 %v2240
    %v2285 = vpop.f32.mrf.mxu0
    %v2286 = vadd.f32 0.0, %v2285
    %2287 = vdwg.mxu0
    %v2288 = vadd.f32 %v2202, %v2260
    %v2289 = vadd.f32 %v2203, %v2283
    %v2290 = vadd.f32 %v2204, %v2263
    %v2291 = vadd.f32 %v2205, %v2286
    %v2292 = vld [vmem:[#allocation2 + $0x12] sm:$0xff]
    %v2293 = vld [vmem:[#allocation2 + $0x1a] sm:$0x3]
    %v2294 = vld [vmem:[%s1087] sm:$0xff]
    %v2295 = vld [vmem:[%s1087 + $0x8] sm:$0xff]
    %v2296 = vld [vmem:[%s1087 + $0x10] sm:$0xff]
    %v2297 = vld [vmem:[%s1087 + $0x18] sm:$0xff]
    %v2298 = vld [vmem:[%s1087 + $0x20] sm:$0xff]
    %v2299 = vld [vmem:[%s1087 + $0x28] sm:$0xff]
    %v2300 = vld [vmem:[%s1087 + $0x30] sm:$0xff]
    %v2301 = vld [vmem:[%s1087 + $0x38] sm:$0xff]
    %v2302 = vld [vmem:[%s1087 + $0x40] sm:$0xff]
    %v2303 = vld [vmem:[%s1087 + $0x48] sm:$0xff]
    %v2304 = vld [vmem:[%s1087 + $0x50] sm:$0xff]
    %v2305 = vld [vmem:[%s1087 + $0x58] sm:$0xff]
    %v2306 = vld [vmem:[%s1087 + $0x60] sm:$0xff]
    %v2307 = vld [vmem:[%s1087 + $0x68] sm:$0xff]
    %v2308 = vld [vmem:[%s1087 + $0x70] sm:$0xff]
    %v2309 = vld [vmem:[%s1087 + $0x78] sm:$0xff]
    %v2310 = vld [vmem:[%s1087 + $0x80] sm:$0xff]
    %v2311 = vld [vmem:[%s1087 + $0x88] sm:$0xff]
    %v2312 = vld [vmem:[%s1087 + $0x90] sm:$0xff]
    %v2313 = vld [vmem:[%s1087 + $0x98] sm:$0xff]
    %v2314 = vld [vmem:[%s1087 + $0xa0] sm:$0xff]
    %v2315 = vld [vmem:[%s1087 + $0xa8] sm:$0xff]
    %v2316 = vld [vmem:[%s1087 + $0xb0] sm:$0xff]
    %v2317 = vld [vmem:[%s1087 + $0xb8] sm:$0xff]
    %v2318 = vld [vmem:[%s1087 + $0xc0] sm:$0xff]
    %v2319 = vld [vmem:[%s1087 + $0xc8] sm:$0xff]
    %v2320 = vld [vmem:[%s1087 + $0xd0] sm:$0xff]
    %v2321 = vld [vmem:[%s1087 + $0xd8] sm:$0xff]
    %v2323 = vsel %vm742, %v2292, 0
    %v2326 = vsel %vm742, %v2293, 0
    %2328 = vmatpush.msra.mxu0 0.0
    %2329 = vmatpush.msra.mxu0 0.0
    %2330 = vmatpush.msra.mxu0 %v2320
    %2331 = vmatpush.msra.mxu0 %v2318
    %2332 = vmatpush.msra.mxu0 %v2316
    %2333 = vmatpush.msra.mxu0 %v2314
    %2334 = vmatpush.msra.mxu0 %v2312
    %2335 = vmatpush.msra.mxu0 %v2310
    %2336 = vmatpush.msra.mxu0 %v2308
    %2337 = vmatpush.msra.mxu0 %v2306
    %2338 = vmatpush.msra.mxu0 %v2304
    %2339 = vmatpush.msra.mxu0 %v2302
    %2340 = vmatpush.msra.mxu0 %v2300
    %2341 = vmatpush.msra.mxu0 %v2298
    %2342 = vmatpush.msra.mxu0 %v2296
    %2343 = vmatpush.msra.mxu0 %v2294
    %2344 = vmatmul.f32.gmra.mxu0 %v2323
    %v2345 = vpop.f32.mrf.mxu0
    %v2346 = vadd.f32 0.0, %v2345
    %2347 = vmatmul.f32.gmra.mxu0 %v2326
    %v2348 = vpop.f32.mrf.mxu0
    %v2349 = vadd.f32 0.0, %v2348
    %2350 = vdwg.mxu0
    %2351 = vmatpush.msra.mxu0 0.0
    %2352 = vmatpush.msra.mxu0 0.0
    %2353 = vmatpush.msra.mxu0 %v2321
    %2354 = vmatpush.msra.mxu0 %v2319
    %2355 = vmatpush.msra.mxu0 %v2317
    %2356 = vmatpush.msra.mxu0 %v2315
    %2357 = vmatpush.msra.mxu0 %v2313
    %2358 = vmatpush.msra.mxu0 %v2311
    %2359 = vmatpush.msra.mxu0 %v2309
    %2360 = vmatpush.msra.mxu0 %v2307
    %2361 = vmatpush.msra.mxu0 %v2305
    %2362 = vmatpush.msra.mxu0 %v2303
    %2363 = vmatpush.msra.mxu0 %v2301
    %2364 = vmatpush.msra.mxu0 %v2299
    %2365 = vmatpush.msra.mxu0 %v2297
    %2366 = vmatpush.msra.mxu0 %v2295
    %2367 = vmatmul.f32.gmra.mxu0 %v2323
    %v2368 = vpop.f32.mrf.mxu0
    %v2369 = vadd.f32 0.0, %v2368
    %2370 = vmatmul.f32.gmra.mxu0 %v2326
    %v2371 = vpop.f32.mrf.mxu0
    %v2372 = vadd.f32 0.0, %v2371
    %2373 = vdwg.mxu0
    %v2374 = vadd.f32 %v2288, %v2346
    %v2375 = vadd.f32 %v2289, %v2369
    %v2376 = vadd.f32 %v2290, %v2349
    %v2377 = vadd.f32 %v2291, %v2372
    %2382 = vrot.lane.b32.xlu0 %v2374, 48
    %v2383 = vpop.permute.xlu0 %2382
    %2384 = vrot.lane.b32.xlu0 %v2375, 48
    %v2385 = vpop.permute.xlu0 %2384
    %2386 = vrot.lane.b32.xlu0 %v2376, 48
    %v2387 = vpop.permute.xlu0 %2386
    %2388 = vrot.lane.b32.xlu0 %v2377, 48
    %v2389 = vpop.permute.xlu0 %2388
    %v2390 = vsel %vm1184, %v2383, %v2385
    %v2391 = vsel %vm1184, %v2387, %v2389
    %v2394 = vmax.f32 %v2374, %v2390
    %v2395 = vmax.f32 %v2376, %v2391
    %v2397 = vrot.slane %v2394, 1
    %v2399 = vmax.f32 %v2394, %v2397
    %v2400 = vld [vmem:[%s5] sm:$0x1]
    %v2401 = vadd.f32 %v2399, %v2400
    %v2402 = vmax.f32 %v2401, 0.0
    %2403 = vst.msk [vmem:[#allocation3 + $0x1] sm:$0x1] %vm1198, %v2402
    %v2404 = vld [vmem:[%s5] sm:$0x1]
    %v2406 = vperm.slane %v2404, 0
    %v2408 = vadd.f32 %v2399, %v2406
    %v2409 = vmax.f32 %v2408, 0.0
    %2411 = vst.sshfl [vmem:[#allocation1] sm:$0xff pattern:$0x73625140] %v2409
    %s2412 = scalar_lea.vmem [#allocation1], 1
    %v2413 = vld [vmem:[%s2412] ss:$4 sm:$0xff]
    %2414 = vrot.lane.b32.xlu0 %v2413, 80
    %v2415 = vpop.permute.xlu0 %2414
    %v2416 = vrot.slane %v2415, 6
    %v2417 = vsel %vm1213, %v2416, %v2415
    %2419 = vst.msk [vmem:[#allocation3 + $0x1] sm:$0x5] %vm1218, %v2417
    %v2420 = vld [vmem:[%s5] sm:$0x1]
    %v2422 = vperm.slane %v2420, 0
    %v2424 = vadd.f32 %v2399, %v2422
    %v2425 = vmax.f32 %v2424, 0.0
    %2427 = vst.sshfl [vmem:[#allocation1] sm:$0xff pattern:$0x73625140] %v2425
    %s2428 = scalar_lea.vmem [#allocation1], 2
    %v2429 = vld [vmem:[%s2428] ss:$4 sm:$0xff]
    %2430 = vrot.lane.b32.xlu0 %v2429, 32
    %v2431 = vpop.permute.xlu0 %2430
    %2433 = vst.msk [vmem:[#allocation3 + $0x3] sm:$0x1] %vm1233, %v2431
    %v2434 = vld [vmem:[%s5] sm:$0x1]
    %v2436 = vperm.slane %v2434, 0
    %v2438 = vadd.f32 %v2399, %v2436
    %v2439 = vmax.f32 %v2438, 0.0
    %2441 = vst.sshfl [vmem:[#allocation1] sm:$0xff pattern:$0x73625140] %v2439
    %s2442 = scalar_lea.vmem [#allocation1], 3
    %v2443 = vld [vmem:[%s2442] ss:$4 sm:$0xff]
    %2444 = vrot.lane.b32.xlu0 %v2443, 112
    %v2445 = vpop.permute.xlu0 %2444
    %v2446 = vrot.slane %v2445, 6
    %v2447 = vsel %vm742, %v2446, %v2445
    %2449 = vst.msk [vmem:[#allocation3 + $0x3] sm:$0x5] %vm1252, %v2447
    %v2451 = vrot.slane %v2395, 1
    %v2453 = vmax.f32 %v2395, %v2451
    %v2454 = vld [vmem:[%s5] sm:$0x1]
    %v2455 = vadd.f32 %v2453, %v2454
    %v2456 = vmax.f32 %v2455, 0.0
    %2458 = vrot.lane.b32.xlu0 %v2456, 64
    %v2459 = vpop.permute.xlu0 %2458
    %v2460 = vrot.slane %v2459, 6
    %v2461 = vsel %vm1265, %v2460, %v2459
    %2463 = vst.msk [vmem:[#allocation3 + $0x5] sm:$0x5] %vm1270, %v2461
    %v2464 = vld [vmem:[#allocation3] sm:$0xff]
    %v2465 = vld [vmem:[%s6] sm:$0xff]
    %v2466 = vld [vmem:[%s6 + $0x8] sm:$0xff]
    %v2467 = vld [vmem:[%s6 + $0x10] sm:$0xff]
    %v2468 = vld [vmem:[%s6 + $0x18] sm:$0xff]
    %v2469 = vld [vmem:[%s6 + $0x20] sm:$0xff]
    %v2470 = vld [vmem:[%s6 + $0x28] sm:$0xff]
    %v2471 = vld [vmem:[%s6 + $0x30] sm:$0xff]
    %v2472 = vld [vmem:[%s6 + $0x38] sm:$0xff]
    %v2473 = vld [vmem:[%s6 + $0x40] sm:$0xff]
    %v2474 = vld [vmem:[%s6 + $0x48] sm:$0xff]
    %v2475 = vld [vmem:[%s6 + $0x50] sm:$0xff]
    %v2476 = vld [vmem:[%s6 + $0x58] sm:$0xff]
    %v2477 = vld [vmem:[%s6 + $0x60] sm:$0xff]
    %v2478 = vld [vmem:[%s6 + $0x68] sm:$0xff]
    %v2479 = vld [vmem:[%s6 + $0x70] sm:$0xff]
    %v2480 = vld [vmem:[%s6 + $0x78] sm:$0xff]
    %v2481 = vld [vmem:[%s6 + $0x80] sm:$0xff]
    %v2482 = vld [vmem:[%s6 + $0x88] sm:$0xff]
    %v2483 = vld [vmem:[%s6 + $0x90] sm:$0xff]
    %v2484 = vld [vmem:[%s6 + $0x98] sm:$0xff]
    %v2485 = vld [vmem:[%s6 + $0xa0] sm:$0xff]
    %v2486 = vld [vmem:[%s6 + $0xa8] sm:$0xff]
    %v2487 = vld [vmem:[%s6 + $0xb0] sm:$0xff]
    %v2488 = vld [vmem:[%s6 + $0xb8] sm:$0xff]
    %v2489 = vld [vmem:[%s6 + $0xc0] sm:$0xff]
    %v2490 = vld [vmem:[%s6 + $0xc8] sm:$0xff]
    %v2491 = vld [vmem:[%s6 + $0xd0] sm:$0xff]
    %v2492 = vld [vmem:[%s6 + $0xd8] sm:$0xff]
    %v2493 = vld [vmem:[%s6 + $0xe0] sm:$0xff]
    %v2494 = vld [vmem:[%s6 + $0xe8] sm:$0xff]
    %v2495 = vld [vmem:[%s6 + $0xf0] sm:$0xff]
    %v2496 = vld [vmem:[%s6 + $0xf8] sm:$0xff]
    %v2497 = vld [vmem:[%s6 + $0x100] sm:$0xff]
    %v2498 = vld [vmem:[%s6 + $0x108] sm:$0xff]
    %v2499 = vld [vmem:[%s6 + $0x110] sm:$0xff]
    %v2500 = vld [vmem:[%s6 + $0x118] sm:$0xff]
    %v2501 = vld [vmem:[%s6 + $0x120] sm:$0xff]
    %v2502 = vld [vmem:[%s6 + $0x128] sm:$0xff]
    %v2503 = vld [vmem:[%s6 + $0x130] sm:$0xff]
    %v2504 = vld [vmem:[%s6 + $0x138] sm:$0xff]
    %v2505 = vld [vmem:[%s6 + $0x140] sm:$0xff]
    %v2506 = vld [vmem:[%s6 + $0x148] sm:$0xff]
    %v2507 = vld [vmem:[%s6 + $0x150] sm:$0xff]
    %v2508 = vld [vmem:[%s6 + $0x158] sm:$0xff]
    %v2509 = vld [vmem:[%s6 + $0x160] sm:$0xff]
    %v2510 = vld [vmem:[%s6 + $0x168] sm:$0xff]
    %v2511 = vld [vmem:[%s6 + $0x170] sm:$0xff]
    %v2512 = vld [vmem:[%s6 + $0x178] sm:$0xff]
    %v2513 = vld [vmem:[%s6 + $0x180] sm:$0xff]
    %v2514 = vld [vmem:[%s6 + $0x188] sm:$0xff]
    %v2515 = vld [vmem:[%s7] sm:$0x1]
    %v2517 = vperm.slane %v2515, 0
    %2520 = vst [vmem:[#allocation1] ss:$4 sm:$0xff] %v2464
    %v2521 = vld.sshfl [vmem:[#allocation1] sm:$0xff pattern:$0x73625140]
    %v2522 = vld.sshfl [vmem:[#allocation1 + $0x8] sm:$0xff pattern:$0x73625140]
    %v2523 = vld.sshfl [vmem:[#allocation1 + $0x10] sm:$0xff pattern:$0x73625140]
    %v2524 = vld.sshfl [vmem:[#allocation1 + $0x18] sm:$0xff pattern:$0x73625140]
    %v2528 = vsel %vm727, %v2524, 0
    %2530 = vmatpush.msra.mxu0 %v2480
    %2531 = vmatpush.msra.mxu0 %v2479
    %2532 = vmatpush.msra.mxu0 %v2478
    %2533 = vmatpush.msra.mxu0 %v2477
    %2534 = vmatpush.msra.mxu0 %v2476
    %2535 = vmatpush.msra.mxu0 %v2475
    %2536 = vmatpush.msra.mxu0 %v2474
    %2537 = vmatpush.msra.mxu0 %v2473
    %2538 = vmatpush.msra.mxu0 %v2472
    %2539 = vmatpush.msra.mxu0 %v2471
    %2540 = vmatpush.msra.mxu0 %v2470
    %2541 = vmatpush.msra.mxu0 %v2469
    %2542 = vmatpush.msra.mxu0 %v2468
    %2543 = vmatpush.msra.mxu0 %v2467
    %2544 = vmatpush.msra.mxu0 %v2466
    %2545 = vmatpush.msra.mxu0 %v2465
    %2546 = vmatmul.f32.gmra.mxu0 %v2521
    %v2547 = vpop.f32.mrf.mxu0
    %v2548 = vadd.f32 %v2517, %v2547
    %2549 = vdwg.mxu0
    %2550 = vmatpush.msra.mxu0 %v2496
    %2551 = vmatpush.msra.mxu0 %v2495
    %2552 = vmatpush.msra.mxu0 %v2494
    %2553 = vmatpush.msra.mxu0 %v2493
    %2554 = vmatpush.msra.mxu0 %v2492
    %2555 = vmatpush.msra.mxu0 %v2491
    %2556 = vmatpush.msra.mxu0 %v2490
    %2557 = vmatpush.msra.mxu0 %v2489
    %2558 = vmatpush.msra.mxu0 %v2488
    %2559 = vmatpush.msra.mxu0 %v2487
    %2560 = vmatpush.msra.mxu0 %v2486
    %2561 = vmatpush.msra.mxu0 %v2485
    %2562 = vmatpush.msra.mxu0 %v2484
    %2563 = vmatpush.msra.mxu0 %v2483
    %2564 = vmatpush.msra.mxu0 %v2482
    %2565 = vmatpush.msra.mxu0 %v2481
    %2566 = vmatmul.f32.gmra.mxu0 %v2522
    %v2567 = vpop.f32.mrf.mxu0
    %v2568 = vadd.f32 %v2548, %v2567
    %2569 = vdwg.mxu0
    %2570 = vmatpush.msra.mxu0 %v2512
    %2571 = vmatpush.msra.mxu0 %v2511
    %2572 = vmatpush.msra.mxu0 %v2510
    %2573 = vmatpush.msra.mxu0 %v2509
    %2574 = vmatpush.msra.mxu0 %v2508
    %2575 = vmatpush.msra.mxu0 %v2507
    %2576 = vmatpush.msra.mxu0 %v2506
    %2577 = vmatpush.msra.mxu0 %v2505
    %2578 = vmatpush.msra.mxu0 %v2504
    %2579 = vmatpush.msra.mxu0 %v2503
    %2580 = vmatpush.msra.mxu0 %v2502
    %2581 = vmatpush.msra.mxu0 %v2501
    %2582 = vmatpush.msra.mxu0 %v2500
    %2583 = vmatpush.msra.mxu0 %v2499
    %2584 = vmatpush.msra.mxu0 %v2498
    %2585 = vmatpush.msra.mxu0 %v2497
    %2586 = vmatmul.f32.gmra.mxu0 %v2523
    %v2587 = vpop.f32.mrf.mxu0
    %v2588 = vadd.f32 %v2568, %v2587
    %2589 = vdwg.mxu0
    %2590 = vmatpush.msra.mxu0 0.0
    %2591 = vmatpush.msra.mxu0 0.0
    %2592 = vmatpush.msra.mxu0 0.0
    %2593 = vmatpush.msra.mxu0 0.0
    %2594 = vmatpush.msra.mxu0 0.0
    %2595 = vmatpush.msra.mxu0 0.0
    %2596 = vmatpush.msra.mxu0 0.0
    %2597 = vmatpush.msra.mxu0 0.0
    %2598 = vmatpush.msra.mxu0 0.0
    %2599 = vmatpush.msra.mxu0 0.0
    %2600 = vmatpush.msra.mxu0 0.0
    %2601 = vmatpush.msra.mxu0 0.0
    %2602 = vmatpush.msra.mxu0 0.0
    %2603 = vmatpush.msra.mxu0 0.0
    %2604 = vmatpush.msra.mxu0 %v2514
    %2605 = vmatpush.msra.mxu0 %v2513
    %2606 = vmatmul.f32.gmra.mxu0 %v2528
    %v2607 = vpop.f32.mrf.mxu0
    %v2608 = vadd.f32 %v2588, %v2607
    %2609 = vdwg.mxu0
    %v2610 = vld [vmem:[%s8] sm:$0x1]
    %v2611 = vld [vmem:[%s9] sm:$0x1]
    %vm2612 = vcmask 975872
    %v2613 = vsel %vm2612, %v2608, 0.0
    %v2614 = vrot.slane %v2613, 4
    %v2615 = vadd.f32 %v2613, %v2614
    %v2616 = vrot.slane %v2615, 2
    %v2617 = vadd.f32 %v2615, %v2616
    %v2618 = vrot.slane %v2617, 1
    %v2619 = vadd.f32 %v2617, %v2618
    %v2620 = vrcp.pop 2.0
    %v2621 = vmul.f32 2.0, %v2620
    %v2622 = vsub.f32 1.0, %v2621
    %v2623 = vmul.f32 %v2620, %v2622
    %v2624 = vadd.f32 %v2620, %v2623
    %vm2625 = vweird.f32 %v2620
    %v2626 = vsel %vm2625, %v2620, %v2624
    %v2627 = vmul.f32 %v2619, %v2626
    %v2628 = vsub.f32 %v2608, %v2627
    %v2629 = vmul.f32 %v2628, %v2628
    %v2630 = vsel %vm2612, %v2629, 0.0
    %v2631 = vrot.slane %v2630, 4
    %v2632 = vadd.f32 %v2630, %v2631
    %v2633 = vrot.slane %v2632, 2
    %v2634 = vadd.f32 %v2632, %v2633
    %v2635 = vrot.slane %v2634, 1
    %v2636 = vadd.f32 %v2634, %v2635
    %v2637 = vmul.f32 %v2636, %v2626
    %v2638 = vadd.f32 %v2637, 1e-05
    %v2639 = vrsqrt.pop %v2638
    %v2640 = vmul.f32 %v2639, %v2638
    %v2641 = vmul.f32 %v2640, %v2639
    %v2642 = vmul.f32 0.5, %v2641
    %v2643 = vsub.f32 1.5, %v2642
    %v2644 = vmul.f32 %v2639, %v2643
    %vm2645 = vweird.f32 %v2638
    %vm2646 = vweird.f32 %v2639
    %vm2647 = vmor %vm2645, %vm2646
    %v2648 = vsel %vm2647, %v2639, %v2644
    %v2649 = vmul.f32 %v2628, %v2648
    %v2651 = vperm.slane %v2610, 0
    %v2653 = vmul.f32 %v2649, %v2651
    %v2655 = vperm.slane %v2611, 0
    %v2657 = vadd.f32 %v2653, %v2655
    %v2658 = vmax.f32 %v2657, 0.0
    %v2659 = vld [vmem:[%s10] sm:$0xff]
    %v2660 = vld [vmem:[%s10 + $0x8] sm:$0xff]
    %v2661 = vld [vmem:[%s10 + $0x10] sm:$0xff]
    %v2662 = vld [vmem:[%s10 + $0x18] sm:$0xff]
    %v2663 = vld [vmem:[%s10 + $0x20] sm:$0xff]
    %v2664 = vld [vmem:[%s10 + $0x28] sm:$0xff]
    %v2665 = vld [vmem:[%s10 + $0x30] sm:$0xff]
    %v2666 = vld [vmem:[%s10 + $0x38] sm:$0xff]
    %v2667 = vld [vmem:[%s10 + $0x40] sm:$0xff]
    %v2668 = vld [vmem:[%s10 + $0x48] sm:$0xff]
    %v2669 = vld [vmem:[%s10 + $0x50] sm:$0xff]
    %v2670 = vld [vmem:[%s10 + $0x58] sm:$0xff]
    %v2671 = vld [vmem:[%s10 + $0x60] sm:$0xff]
    %v2672 = vld [vmem:[%s10 + $0x68] sm:$0xff]
    %v2673 = vld [vmem:[%s10 + $0x70] sm:$0xff]
    %v2674 = vld [vmem:[%s11] sm:$0x1]
    %v2676 = vperm.slane %v2674, 0
    %vm2678 = vcmask 982016
    %v2680 = vsel %vm2678, %v2658, 0
    %2682 = vmatpush.msra.mxu0 0.0
    %2683 = vmatpush.msra.mxu0 %v2673
    %2684 = vmatpush.msra.mxu0 %v2672
    %2685 = vmatpush.msra.mxu0 %v2671
    %2686 = vmatpush.msra.mxu0 %v2670
    %2687 = vmatpush.msra.mxu0 %v2669
    %2688 = vmatpush.msra.mxu0 %v2668
    %2689 = vmatpush.msra.mxu0 %v2667
    %2690 = vmatpush.msra.mxu0 %v2666
    %2691 = vmatpush.msra.mxu0 %v2665
    %2692 = vmatpush.msra.mxu0 %v2664
    %2693 = vmatpush.msra.mxu0 %v2663
    %2694 = vmatpush.msra.mxu0 %v2662
    %2695 = vmatpush.msra.mxu0 %v2661
    %2696 = vmatpush.msra.mxu0 %v2660
    %2697 = vmatpush.msra.mxu0 %v2659
    %2698 = vmatmul.f32.gmra.mxu0 %v2680
    %v2699 = vpop.f32.mrf.mxu0
    %v2700 = vadd.f32 %v2676, %v2699
    %2701 = vdwg.mxu0
    %v2702 = vld [vmem:[%s12] sm:$0x1]
    %v2703 = vld [vmem:[%s13] sm:$0x1]
    %vm2704 = vcmask 680960
    %v2705 = vsel %vm2704, %v2700, 0.0
    %v2706 = vrot.slane %v2705, 4
    %v2707 = vadd.f32 %v2705, %v2706
    %v2708 = vrot.slane %v2707, 2
    %v2709 = vadd.f32 %v2707, %v2708
    %v2710 = vrot.slane %v2709, 1
    %v2711 = vadd.f32 %v2709, %v2710
    %v2712 = vmul.f32 %v2711, %v2626
    %v2713 = vsub.f32 %v2700, %v2712
    %v2714 = vmul.f32 %v2713, %v2713
    %v2715 = vsel %vm2704, %v2714, 0.0
    %v2716 = vrot.slane %v2715, 4
    %v2717 = vadd.f32 %v2715, %v2716
    %v2718 = vrot.slane %v2717, 2
    %v2719 = vadd.f32 %v2717, %v2718
    %v2720 = vrot.slane %v2719, 1
    %v2721 = vadd.f32 %v2719, %v2720
    %v2722 = vmul.f32 %v2721, %v2626
    %v2723 = vadd.f32 %v2722, 1e-05
    %v2724 = vrsqrt.pop %v2723
    %v2725 = vmul.f32 %v2724, %v2723
    %v2726 = vmul.f32 %v2725, %v2724
    %v2727 = vmul.f32 0.5, %v2726
    %v2728 = vsub.f32 1.5, %v2727
    %v2729 = vmul.f32 %v2724, %v2728
    %vm2730 = vweird.f32 %v2723
    %vm2731 = vweird.f32 %v2724
    %vm2732 = vmor %vm2730, %vm2731
    %v2733 = vsel %vm2732, %v2724, %v2729
    %v2734 = vmul.f32 %v2713, %v2733
    %v2736 = vperm.slane %v2702, 0
    %v2738 = vmul.f32 %v2734, %v2736
    %v2740 = vperm.slane %v2703, 0
    %v2742 = vadd.f32 %v2738, %v2740
    %v2743 = vmax.f32 %v2742, 0.0
    %v2744 = vld [vmem:[%s14] sm:$0xff]
    %v2745 = vld [vmem:[%s14 + $0x8] sm:$0xff]
    %v2746 = vld [vmem:[%s14 + $0x10] sm:$0xff]
    %v2747 = vld [vmem:[%s14 + $0x18] sm:$0xff]
    %v2748 = vld [vmem:[%s14 + $0x20] sm:$0xff]
    %v2749 = vld [vmem:[%s14 + $0x28] sm:$0xff]
    %v2750 = vld [vmem:[%s14 + $0x30] sm:$0xff]
    %v2751 = vld [vmem:[%s14 + $0x38] sm:$0xff]
    %v2752 = vld [vmem:[%s14 + $0x40] sm:$0xff]
    %v2753 = vld [vmem:[%s14 + $0x48] sm:$0xff]
    %v2754 = vld [vmem:[%s14 + $0x50] sm:$0xf]
    %v2755 = vld [vmem:[%s15] sm:$0x1]
    %v2757 = vperm.slane %v2755, 0
    %vm2759 = vcmask 687104
    %v2761 = vsel %vm2759, %v2743, 0
    %vm2763 = vcmask 1043456
    %v2765 = vsel %vm2763, %v2754, 0
    %2767 = vmatpush.msra.mxu0 0.0
    %2768 = vmatpush.msra.mxu0 0.0
    %2769 = vmatpush.msra.mxu0 0.0
    %2770 = vmatpush.msra.mxu0 0.0
    %2771 = vmatpush.msra.mxu0 0.0
    %2772 = vmatpush.msra.mxu0 %v2765
    %2773 = vmatpush.msra.mxu0 %v2753
    %2774 = vmatpush.msra.mxu0 %v2752
    %2775 = vmatpush.msra.mxu0 %v2751
    %2776 = vmatpush.msra.mxu0 %v2750
    %2777 = vmatpush.msra.mxu0 %v2749
    %2778 = vmatpush.msra.mxu0 %v2748
    %2779 = vmatpush.msra.mxu0 %v2747
    %2780 = vmatpush.msra.mxu0 %v2746
    %2781 = vmatpush.msra.mxu0 %v2745
    %2782 = vmatpush.msra.mxu0 %v2744
    %2783 = vmatmul.f32.gmra.mxu0 %v2761
    %v2784 = vpop.f32.mrf.mxu0
    %v2785 = vadd.f32 %v2757, %v2784
    %2786 = vdwg.mxu0
    %vm2787 = vcmask 74752
    %2788 = vst.msk [vmem:[#allocation4] sm:$0x3] %vm2787, %v2785
    // Predicated region
    $region66: #{cnn_forward.1} parent=1 // pred_check
      _
    $region67: #{cnn_forward.1} parent=1 // pred_check_branch
      %2790 = sbr.rel (0) target = $region69
    $region68: #{cnn_forward.1} parent=1 // pred_region
      %2792 = vsyncadd [#allocation5], 0
      %s2794 = sshll.u32 [#allocation4], 4
      %s2795 = int_to_ptr.vmem [resolvable:$true] %s2794
      %s2796 = sshll.u32 %s16, 4
      %s2797 = int_to_ptr.hbm [resolvable:$true] %s2796
      %2799 = dma.vmem_to_hbm [thread:$0]  %s2795, 32, %s2797, [#allocation5]
    $region69: #{cnn_forward.1} parent=1 // pred_fallthru
      _
    // Predicated region
    $region70: #{cnn_forward.1} parent=1 // pred_check
      _
    $region71: #{cnn_forward.1} parent=1 // pred_check_branch
      %2801 = sbr.rel (0) target = $region73
    $region72: #{cnn_forward.1} parent=1 // pred_region
      %2803 = dma.done [#allocation5], 32
    $region73: #{cnn_forward.1} parent=1 // pred_fallthru
      _
    %2804 = vsyncpa [#allocation5], 1

</llo_original>
